<compile_context>
chip_gen: v5e
topology: v5e:2x2
jax: 0.10.0
libtpu: 0.0.40
codegen_flags: <defaults>
</compile_context>

<pallas_src>
import functools

import jax
import jax.numpy as jnp
from jax.experimental import pallas as pl
from jax.experimental.pallas import tpu as pltpu

_C = 768          # backbone channels (fc1 / fc3 input width)
_HID = 512        # per-head hidden width
_HID2 = 2 * _HID  # fused hidden width of both heads
_TB = 8           # batch tile (sublane-aligned M for the head matmuls)


def _round_up(x, m):
    return (x + m - 1) // m * m


def _make_kernel(inv_hw):
    """Builds the streaming pooling + fused-two-head kernel (inv_hw = 1/(H*W))."""

    def kernel(x_ref, w13_ref, b13_ref, w24_ref, b24_ref, out_ref, acc_ref):
        # grid = (batch_tiles [parallel], spatial_tiles [arbitrary, reduction])
        k = pl.program_id(1)

        @pl.when(k == 0)
        def _init():
            acc_ref[...] = jnp.zeros_like(acc_ref)

        # Streamed spatial-sum accumulation (pure vadds; the 1/(H*W) scale is
        # applied once in the epilogue).  Cast to f32 so bf16 inputs still
        # accumulate in f32.
        x = x_ref[...].astype(jnp.float32)                 # (TB, THW, C)
        acc_ref[...] += jnp.sum(x, axis=1)                  # (TB, C)

        @pl.when(k == pl.num_programs(1) - 1)
        def _heads():
            pooled = acc_ref[...] * inv_hw                   # == avgpool + flatten
            # fused fc1 || fc3 : one 768 -> 1024 MXU pass
            h = jnp.dot(pooled, w13_ref[...], preferred_element_type=jnp.float32)
            h = jnp.maximum(h + b13_ref[...], 0.0)           # ReLU (both heads)
            # fused fc2 / fc4 as a block-diagonal 1024 -> out_pad matmul
            out = jnp.dot(h, w24_ref[...], preferred_element_type=jnp.float32)
            out_ref[...] = (out + b24_ref[...]).astype(out_ref.dtype)

    return kernel


@functools.partial(jax.jit, static_argnames=("spatial_tile",))
def vssm_two_heads_forward(x_nhwc, params, spatial_tile=None):
    """x_nhwc: (B, H, W, 768) backbone features (NHWC, f32 or bf16).

    Returns (class_output, features_output), both f32.
    """
    B, H, W, C = x_nhwc.shape
    if C != _C:
        raise ValueError("fc1/fc3 expect 768 input features")
    HW = H * W

    nc = params["w2"].shape[1]
    nf = params["w4"].shape[1]
    out_pad = _round_up(nc + nf, 128)        # lane-dense output slab width

    # ---- pack weights: fuse the two heads -------------------------------
    w13 = jnp.concatenate([params["w1"], params["w3"]], axis=1).astype(jnp.float32)
    b13 = jnp.concatenate([params["b1"], params["b3"]], axis=1).astype(jnp.float32)
    w24 = jnp.zeros((_HID2, out_pad), jnp.float32)
    w24 = w24.at[:_HID, :nc].set(params["w2"].astype(jnp.float32))
    w24 = w24.at[_HID:, nc:nc + nf].set(params["w4"].astype(jnp.float32))
    b24 = jnp.zeros((1, out_pad), jnp.float32)
    b24 = b24.at[:, :nc].set(params["b2"].astype(jnp.float32))
    b24 = b24.at[:, nc:nc + nf].set(params["b4"].astype(jnp.float32))

    # ---- tile geometry ---------------------------------------------------
    if spatial_tile is None:
        spatial_tile = 256                   # default cap on spatial rows / step
    thw = _round_up(min(spatial_tile, _round_up(HW, 8)), 8)
    hw_pad = _round_up(HW, thw)
    b_pad = _round_up(B, _TB)

    x_flat = x_nhwc.reshape(B, HW, C)
    # Zero padding is safe: padded rows add 0 to the spatial sum and padded
    # batch rows are sliced off below.
    x_flat = jnp.pad(x_flat, ((0, b_pad - B), (0, hw_pad - HW), (0, 0)))

    grid = (b_pad // _TB, hw_pad // thw)

    tile_bytes = _TB * thw * C * x_flat.dtype.itemsize
    weight_bytes = 4 * (w13.size + b13.size + w24.size + b24.size)
    x_bytes = b_pad * hw_pad * C * x_flat.dtype.itemsize
    out_bytes = b_pad * out_pad * 4
    # Headroom for double-buffered x tiles + resident weights + scratch; keep
    # within v7x's 64 MiB physical VMEM.
    vmem_limit = int(min(
        64 << 20,
        max(32 << 20,
            2 * tile_bytes + weight_bytes + 2 * (_TB * out_pad * 4)
            + _TB * C * 4 + (8 << 20)),
    ))

    cost = pl.CostEstimate(
        flops=2 * b_pad * (_C * _HID2 + _HID2 * out_pad) + b_pad * hw_pad * _C,
        transcendentals=0,
        bytes_accessed=x_bytes + weight_bytes + out_bytes,
    )

    out = pl.pallas_call(
        _make_kernel(1.0 / float(HW)),
        out_shape=jax.ShapeDtypeStruct((b_pad, out_pad), jnp.float32),
        grid_spec=pltpu.PrefetchScalarGridSpec(
            num_scalar_prefetch=0,
            grid=grid,
            in_specs=[
                pl.BlockSpec((_TB, thw, C), lambda b, k: (b, k, 0)),   # streamed x
                pl.BlockSpec((_C, _HID2), lambda b, k: (0, 0)),        # w13 (resident)
                pl.BlockSpec((1, _HID2), lambda b, k: (0, 0)),         # b13
                pl.BlockSpec((_HID2, out_pad), lambda b, k: (0, 0)),   # w24 (resident)
                pl.BlockSpec((1, out_pad), lambda b, k: (0, 0)),       # b24
            ],
            out_specs=pl.BlockSpec((_TB, out_pad), lambda b, k: (b, 0)),
            scratch_shapes=[pltpu.VMEM((_TB, _C), jnp.float32)],       # pooled-sum acc
        ),
        compiler_params=pltpu.CompilerParams(
            dimension_semantics=("parallel", "arbitrary"),
            vmem_limit_bytes=vmem_limit,
        ),
        cost_estimate=cost,
    )(x_flat, w13, b13, w24, b24)

    class_output = out[:B, :nc]
    features_output = out[:B, nc:nc + nf]
    return class_output, features_output


def init_params(key, num_classes, num_additional_features):
    """PyTorch-Linear-style init: U(-1/sqrt(fan_in), 1/sqrt(fan_in)).

    Weights stored pre-transposed as (in_features, out_features); biases as
    (1, out_features).
    """
    def linear(key, fan_in, fan_out):
        kw, kb = jax.random.split(key)
        bound = 1.0 / jnp.sqrt(fan_in)
        w = jax.random.uniform(kw, (fan_in, fan_out), jnp.float32, -bound, bound)
        b = jax.random.uniform(kb, (1, fan_out), jnp.float32, -bound, bound)
        return w, b

    k1, k2, k3, k4 = jax.random.split(key, 4)
    w1, b1 = linear(k1, _C, _HID)
    w2, b2 = linear(k2, _HID, num_classes)
    w3, b3 = linear(k3, _C, _HID)
    w4, b4 = linear(k4, _HID, num_additional_features)
    return {"w1": w1, "b1": b1, "w2": w2, "b2": b2,
            "w3": w3, "b3": b3, "w4": w4, "b4": b4}


def reference_forward(x_nhwc, params):
    """Pure-JAX reference of the PyTorch forward (post-backbone)."""
    pooled = jnp.mean(x_nhwc.astype(jnp.float32), axis=(1, 2))
    h1 = jax.nn.relu(pooled @ params["w1"] + params["b1"])
    cls = h1 @ params["w2"] + params["b2"]
    h3 = jax.nn.relu(pooled @ params["w3"] + params["b3"])
    feat = h3 @ params["w4"] + params["b4"]
    return cls, feat


if __name__ == "__main__":
    # TODO(synk): the VSSM backbone (`original_model.forward_backbone`) is an
    # external module not defined in the source file; this kernel consumes its
    # NHWC (B, H, W, 768) output directly.
    B, H, W, C = 2, 8, 8, _C
    NUM_CLASSES = 10
    NUM_ADDITIONAL_FEATURES = 6

    key = jax.random.PRNGKey(0)
    kx, kp = jax.random.split(key)
    x = jax.random.normal(kx, (B, H, W, C), dtype=jnp.float32)
    params = init_params(kp, NUM_CLASSES, NUM_ADDITIONAL_FEATURES)

    # spatial_tile=32 -> 2 reduction steps, exercising the streamed accumulator
    # and the pl.when init/epilogue paths.
    cls_out, feat_out = vssm_two_heads_forward(x, params, spatial_tile=32)
    jax.block_until_ready((cls_out, feat_out))

    ref_cls, ref_feat = reference_forward(x, params)
    assert cls_out.shape == (B, NUM_CLASSES)
    assert feat_out.shape == (B, NUM_ADDITIONAL_FEATURES)
    assert jnp.allclose(cls_out, ref_cls, atol=2e-4, rtol=2e-4)
    assert jnp.allclose(feat_out, ref_feat, atol=2e-4, rtol=2e-4)

    print("KERNEL_OK")
</pallas_src>

<mosaic_0001>
module attributes {stable_mosaic.version = 11 : i64} {
  func.func @kernel(%arg0: i32, %arg1: i32, %arg2: memref<8x32x768xf32, #tpu.memory_space<vmem>>, %arg3: memref<768x1024xf32, #tpu.memory_space<vmem>>, %arg4: memref<1x1024xf32, #tpu.memory_space<vmem>>, %arg5: memref<1024x128xf32, #tpu.memory_space<vmem>>, %arg6: memref<1x128xf32, #tpu.memory_space<vmem>>, %arg7: memref<8x128xf32, #tpu.memory_space<vmem>>, %arg8: memref<8x768xf32, #tpu.memory_space<vmem>>) attributes {dimension_semantics = [#tpu.dimension_semantics<parallel>, #tpu.dimension_semantics<arbitrary>], iteration_bounds = array<i64: 1, 2>, scalar_prefetch = 0 : i64, scratch_operands = 1 : i64, tpu.core_type = #tpu.core_type<tc>, window_params = [{transform_indices = @transform_0, window_bounds = array<i64: 8, 32, 768>}, {pipeline_mode = #tpu.pipeline_mode<synchronous>, transform_indices = @transform_1, window_bounds = array<i64: 768, 1024>}, {pipeline_mode = #tpu.pipeline_mode<synchronous>, transform_indices = @transform_2, window_bounds = array<i64: 1, 1024>}, {pipeline_mode = #tpu.pipeline_mode<synchronous>, transform_indices = @transform_3, window_bounds = array<i64: 1024, 128>}, {pipeline_mode = #tpu.pipeline_mode<synchronous>, transform_indices = @transform_4, window_bounds = array<i64: 1, 128>}, {transform_indices = @transform_5, window_bounds = array<i64: 8, 128>}]} {
    %c0_i32 = arith.constant 0 : i32
    %0 = arith.cmpi eq, %arg1, %c0_i32 : i32
    %1 = arith.extui %0 : i1 to i32
    %c0_i32_0 = arith.constant 0 : i32
    %2 = arith.cmpi ne, %1, %c0_i32_0 : i32
    scf.if %2 {
      %cst_8 = arith.constant 0.000000e+00 : f32
      %11 = vector.broadcast %cst_8 : f32 to vector<8x768xf32>
      %c0_9 = arith.constant 0 : index
      %c0_10 = arith.constant 0 : index
      %12 = vector.load %arg8[%c0_9, %c0_10] : memref<8x768xf32, #tpu.memory_space<vmem>>, vector<8x768xf32>
      tpu.vector_store %arg8[%c0_9, %c0_10], %11 {strides = array<i32>} : memref<8x768xf32, #tpu.memory_space<vmem>>, vector<8x768xf32>,
    } else {
    }
    %c0 = arith.constant 0 : index
    %c0_1 = arith.constant 0 : index
    %c0_2 = arith.constant 0 : index
    %3 = vector.load %arg2[%c0, %c0_1, %c0_2] : memref<8x32x768xf32, #tpu.memory_space<vmem>>, vector<8x32x768xf32>
    %c0_3 = arith.constant 0 : index
    %c0_4 = arith.constant 0 : index
    %4 = vector.load %arg8[%c0_3, %c0_4] : memref<8x768xf32, #tpu.memory_space<vmem>>, vector<8x768xf32>
    %cst = arith.constant dense<0.000000e+00> : vector<8x768xf32>
    %5 = vector.multi_reduction <add>, %3, %cst [1] : vector<8x32x768xf32> to vector<8x768xf32>
    %6 = arith.addf %4, %5 : vector<8x768xf32>
    %c0_5 = arith.constant 0 : index
    %c0_6 = arith.constant 0 : index
    %7 = vector.load %arg8[%c0_5, %c0_6] : memref<8x768xf32, #tpu.memory_space<vmem>>, vector<8x768xf32>
    tpu.vector_store %arg8[%c0_5, %c0_6], %6 {strides = array<i32>} : memref<8x768xf32, #tpu.memory_space<vmem>>, vector<8x768xf32>,
    %c1_i32 = arith.constant 1 : i32
    %8 = arith.cmpi eq, %arg1, %c1_i32 : i32
    %9 = arith.extui %8 : i1 to i32
    %c0_i32_7 = arith.constant 0 : i32
    %10 = arith.cmpi ne, %9, %c0_i32_7 : i32
    scf.if %10 {
      %c0_8 = arith.constant 0 : index
      %c0_9 = arith.constant 0 : index
      %11 = vector.load %arg8[%c0_8, %c0_9] : memref<8x768xf32, #tpu.memory_space<vmem>>, vector<8x768xf32>
      %cst_10 = arith.constant 1.562500e-02 : f32
      %12 = vector.broadcast %cst_10 : f32 to vector<8x768xf32>
      %13 = arith.mulf %11, %12 : vector<8x768xf32>
      %c0_11 = arith.constant 0 : index
      %c0_12 = arith.constant 0 : index
      %14 = vector.load %arg3[%c0_11, %c0_12] : memref<768x1024xf32, #tpu.memory_space<vmem>>, vector<768x1024xf32>
      %cst_13 = arith.constant dense<0.000000e+00> : vector<8x1024xf32>
      %15 = tpu.matmul %13, %14, %cst_13 {dimension_numbers = #tpu.dot_dimension_numbers<[1], [0], [0], [1], [0, 0, 1, 1], [], []>} : vector<8x768xf32>, vector<768x1024xf32>, vector<8x1024xf32> -> vector<8x1024xf32>
      %c0_14 = arith.constant 0 : index
      %c0_15 = arith.constant 0 : index
      %16 = vector.load %arg4[%c0_14, %c0_15] : memref<1x1024xf32, #tpu.memory_space<vmem>>, vector<1x1024xf32>
      %17 = vector.broadcast %16 : vector<1x1024xf32> to vector<8x1024xf32>
      %18 = arith.addf %15, %17 : vector<8x1024xf32>
      %cst_16 = arith.constant 0.000000e+00 : f32
      %19 = vector.broadcast %cst_16 : f32 to vector<8x1024xf32>
      %20 = arith.maximumf %18, %19 : vector<8x1024xf32>
      %c0_17 = arith.constant 0 : index
      %c0_18 = arith.constant 0 : index
      %21 = vector.load %arg5[%c0_17, %c0_18] : memref<1024x128xf32, #tpu.memory_space<vmem>>, vector<1024x128xf32>
      %cst_19 = arith.constant dense<0.000000e+00> : vector<8x128xf32>
      %22 = tpu.matmul %20, %21, %cst_19 {dimension_numbers = #tpu.dot_dimension_numbers<[1], [0], [0], [1], [0, 0, 1, 1], [], []>} : vector<8x1024xf32>, vector<1024x128xf32>, vector<8x128xf32> -> vector<8x128xf32>
      %c0_20 = arith.constant 0 : index
      %c0_21 = arith.constant 0 : index
      %23 = vector.load %arg6[%c0_20, %c0_21] : memref<1x128xf32, #tpu.memory_space<vmem>>, vector<1x128xf32>
      %24 = vector.broadcast %23 : vector<1x128xf32> to vector<8x128xf32>
      %25 = arith.addf %22, %24 : vector<8x128xf32>
      %c0_22 = arith.constant 0 : index
      %c0_23 = arith.constant 0 : index
      %26 = vector.load %arg7[%c0_22, %c0_23] : memref<8x128xf32, #tpu.memory_space<vmem>>, vector<8x128xf32>
      tpu.vector_store %arg7[%c0_22, %c0_23], %25 {strides = array<i32>} : memref<8x128xf32, #tpu.memory_space<vmem>>, vector<8x128xf32>,
    } else {
    }
    return
  }
  func.func @transform_0(%arg0: i32, %arg1: i32) -> (i32, i32, i32) {
    %c0_i32 = arith.constant 0 : i32
    %c0_i32_0 = arith.constant 0 : i32
    return %arg0, %arg1, %c0_i32 : i32, i32, i32
  }
  func.func @transform_1(%arg0: i32, %arg1: i32) -> (i32, i32) {
    %c0_i32 = arith.constant 0 : i32
    %c0_i32_0 = arith.constant 0 : i32
    %c0_i32_1 = arith.constant 0 : i32
    return %c0_i32, %c0_i32_0 : i32, i32
  }
  func.func @transform_2(%arg0: i32, %arg1: i32) -> (i32, i32) {
    %c0_i32 = arith.constant 0 : i32
    %c0_i32_0 = arith.constant 0 : i32
    %c0_i32_1 = arith.constant 0 : i32
    return %c0_i32, %c0_i32_0 : i32, i32
  }
  func.func @transform_3(%arg0: i32, %arg1: i32) -> (i32, i32) {
    %c0_i32 = arith.constant 0 : i32
    %c0_i32_0 = arith.constant 0 : i32
    %c0_i32_1 = arith.constant 0 : i32
    return %c0_i32, %c0_i32_0 : i32, i32
  }
  func.func @transform_4(%arg0: i32, %arg1: i32) -> (i32, i32) {
    %c0_i32 = arith.constant 0 : i32
    %c0_i32_0 = arith.constant 0 : i32
    %c0_i32_1 = arith.constant 0 : i32
    return %c0_i32, %c0_i32_0 : i32, i32
  }
  func.func @transform_5(%arg0: i32, %arg1: i32) -> (i32, i32) {
    %c0_i32 = arith.constant 0 : i32
    %c0_i32_0 = arith.constant 0 : i32
    return %arg0, %c0_i32 : i32, i32
  }
}

</mosaic_0001>

<llo_original>
// kernel: vssm_two_heads_forward.1
$region0: #{vssm_two_heads_forward.1}
  #allocation0 [shape = 'u32[]', space=smem, size = 0x4, offset = 0x4, fixed_abs, tag = 'smem constant byte address 0x4 - core index']
  #allocation1 [shape = 'u32[72,128]{1,0:T(1,128)}', space=vmem, size = 0x9000, scoped, tag = 'internal scratch']
  #allocation2 [shape = 'f32[8,768]{1,0:T(8,128)}', space=vmem, size = 0x6000, scoped, tag = 'scratch operand']
  %s0 = inlined_call_operand.vmem [shape: f32[8,64,768], index: 0, kind: input, shape index: {}]
  %s1 = inlined_call_operand.vmem [shape: f32[768,1024], index: 1, kind: input, shape index: {}]
  %s2 = inlined_call_operand.vmem [shape: f32[1,1024], index: 2, kind: input, shape index: {}]
  %s3 = inlined_call_operand.vmem [shape: f32[1024,128], index: 3, kind: input, shape index: {}]
  %s4 = inlined_call_operand.vmem [shape: f32[1,128], index: 4, kind: input, shape index: {}]
  %s5 = inlined_call_operand.vmem [shape: f32[8,128], index: 5, kind: output, shape index: {}]
  %s6 = sld [smem:[#allocation0]]
  $region84: #{vssm_two_heads_forward.1} parent=0
    _
  %s8 = ssub.s32 1, %s6
  %s9 = scalar_select 0, %s8, %s6
  $region1: #{vssm_two_heads_forward.1} parent=0
    #allocation3 [shape = 'u8[1572864]{0}', space=vmem, size = 0x180000, scoped, tag = 'input window, operand 0']
    loop: start=0, step=1, limit=4
    $region2: #{vssm_two_heads_forward.1} parent=1 // loop_pre_header
      _
    $region3: #{vssm_two_heads_forward.1} parent=1 // loop_header
      %s11 = sphi 0, %s15
      %p12 = scmp.ge.s32.totalorder %s11, 4
      %s18 = sphi 0, %s30
      %s19 = sphi 0, %s26
      %s20 = sphi 0, %s18
      %s21 = sphi 0, %s19
      %s22 = sphi 0, %s20
      %s23 = sphi 0, %s21
      %s35 = sphi 0, %s37
      %s38 = sphi 0, %s35
      %s39 = sphi 0, %s38
      %s55 = sphi 0, %s39
      %s59 = sphi 0, %s59
      %s61 = sphi 0, %s59
      %s62 = sphi 0, %s61
      %s76 = sphi 0, %s62
      %s80 = sphi 0, %s80
      %s82 = sphi 0, %s80
      %s83 = sphi 0, %s82
      %s97 = sphi 0, %s83
      %s101 = sphi 0, %s101
      %s103 = sphi 0, %s101
      %s104 = sphi 0, %s103
      %s118 = sphi 0, %s104
      %s122 = sphi 0, %s122
      %s124 = sphi 0, %s122
      %s125 = sphi 0, %s124
      %s139 = sphi 0, %s125
      %s145 = sphi 0, %s147
      %s148 = sphi 0, %s145
      %s149 = sphi 0, %s148
      %s165 = sphi 0, %s149
    $region4: #{vssm_two_heads_forward.1} parent=1 // loop_header_branch
      %14 = sbr.rel (%p12) target = $region8
    $region5: #{vssm_two_heads_forward.1} parent=1 // loop_body
      %s16 = ssub.s32 %s11, 1
      %s17 = ssub.s32 %s11, 2
      %s24 = sadd.s32 1, %s19
      %p25 = scmp.ge.s32.totalorder %s24, 2
      %s26 = scalar_select %p25, 0, %s24
      %s27 = sadd.s32 1, %s18
      %s28 = scalar_select %p25, %s27, %s18
      %p29 = scmp.ge.s32.totalorder %s28, 1
      %s30 = scalar_select %p29, 0, %s28
      %s31 = ssub.s32 %s18, %s30
      %s32 = ssub.s32 %s19, %s26
      %s33 = sor.u32 %s31, %s32
      %p34 = scmp.eq.s32.totalorder %s33, 0
      %s36 = sadd.s32 %s35, 1
      %s37 = scalar_select %p34, %s35, %s36
      %p40 = pneg %p34
      %p41 = scmp.eq.s32.totalorder %s11, 1
      %p42 = por %p40, %p41
      %p43 = scmp.ne.s32.totalorder %s35, %s38
      %p44 = scmp.eq.s32.totalorder %s11, 0
      %p45 = por %p43, %p44
      %p46 = scmp.ne.s32.totalorder %s35, %s38
      %p47 = scmp.eq.s32.totalorder %s16, 1
      %p48 = por %p46, %p47
      %p49 = scmp.ne.s32.totalorder %s38, %s39
      %p50 = scmp.eq.s32.totalorder %s16, 0
      %p51 = por %p49, %p50
      %p52 = scmp.ne.s32.totalorder %s38, %s39
      %p53 = scmp.eq.s32.totalorder %s17, 1
      %p54 = por %p52, %p53
      %p56 = scmp.ne.s32.totalorder %s39, %s55
      %p57 = scmp.eq.s32.totalorder %s17, 0
      %p58 = por %p56, %p57
      %s60 = sadd.s32 %s59, 1
      %p63 = scmp.eq.s32.totalorder %s11, 1
      %p64 = scmp.ne.s32.totalorder %s59, %s61
      %p65 = scmp.eq.s32.totalorder %s11, 0
      %p66 = por %p64, %p65
      %p67 = scmp.ne.s32.totalorder %s59, %s61
      %p68 = scmp.eq.s32.totalorder %s16, 1
      %p69 = por %p67, %p68
      %p70 = scmp.ne.s32.totalorder %s61, %s62
      %p71 = scmp.eq.s32.totalorder %s16, 0
      %p72 = por %p70, %p71
      %p73 = scmp.ne.s32.totalorder %s61, %s62
      %p74 = scmp.eq.s32.totalorder %s17, 1
      %p75 = por %p73, %p74
      %p77 = scmp.ne.s32.totalorder %s62, %s76
      %p78 = scmp.eq.s32.totalorder %s17, 0
      %p79 = por %p77, %p78
      %s81 = sadd.s32 %s80, 1
      %p84 = scmp.eq.s32.totalorder %s11, 1
      %p85 = scmp.ne.s32.totalorder %s80, %s82
      %p86 = scmp.eq.s32.totalorder %s11, 0
      %p87 = por %p85, %p86
      %p88 = scmp.ne.s32.totalorder %s80, %s82
      %p89 = scmp.eq.s32.totalorder %s16, 1
      %p90 = por %p88, %p89
      %p91 = scmp.ne.s32.totalorder %s82, %s83
      %p92 = scmp.eq.s32.totalorder %s16, 0
      %p93 = por %p91, %p92
      %p94 = scmp.ne.s32.totalorder %s82, %s83
      %p95 = scmp.eq.s32.totalorder %s17, 1
      %p96 = por %p94, %p95
      %p98 = scmp.ne.s32.totalorder %s83, %s97
      %p99 = scmp.eq.s32.totalorder %s17, 0
      %p100 = por %p98, %p99
      %s102 = sadd.s32 %s101, 1
      %p105 = scmp.eq.s32.totalorder %s11, 1
      %p106 = scmp.ne.s32.totalorder %s101, %s103
      %p107 = scmp.eq.s32.totalorder %s11, 0
      %p108 = por %p106, %p107
      %p109 = scmp.ne.s32.totalorder %s101, %s103
      %p110 = scmp.eq.s32.totalorder %s16, 1
      %p111 = por %p109, %p110
      %p112 = scmp.ne.s32.totalorder %s103, %s104
      %p113 = scmp.eq.s32.totalorder %s16, 0
      %p114 = por %p112, %p113
      %p115 = scmp.ne.s32.totalorder %s103, %s104
      %p116 = scmp.eq.s32.totalorder %s17, 1
      %p117 = por %p115, %p116
      %p119 = scmp.ne.s32.totalorder %s104, %s118
      %p120 = scmp.eq.s32.totalorder %s17, 0
      %p121 = por %p119, %p120
      %s123 = sadd.s32 %s122, 1
      %p126 = scmp.eq.s32.totalorder %s11, 1
      %p127 = scmp.ne.s32.totalorder %s122, %s124
      %p128 = scmp.eq.s32.totalorder %s11, 0
      %p129 = por %p127, %p128
      %p130 = scmp.ne.s32.totalorder %s122, %s124
      %p131 = scmp.eq.s32.totalorder %s16, 1
      %p132 = por %p130, %p131
      %p133 = scmp.ne.s32.totalorder %s124, %s125
      %p134 = scmp.eq.s32.totalorder %s16, 0
      %p135 = por %p133, %p134
      %p136 = scmp.ne.s32.totalorder %s124, %s125
      %p137 = scmp.eq.s32.totalorder %s17, 1
      %p138 = por %p136, %p137
      %p140 = scmp.ne.s32.totalorder %s125, %s139
      %p141 = scmp.eq.s32.totalorder %s17, 0
      %p142 = por %p140, %p141
      %s143 = ssub.s32 %s18, %s30
      %p144 = scmp.eq.s32.totalorder %s143, 0
      %s146 = sadd.s32 %s145, 1
      %s147 = scalar_select %p144, %s145, %s146
      %p150 = pneg %p144
      %p151 = scmp.eq.s32.totalorder %s11, 1
      %p152 = por %p150, %p151
      %p153 = scmp.ne.s32.totalorder %s145, %s148
      %p154 = scmp.eq.s32.totalorder %s11, 0
      %p155 = por %p153, %p154
      %p156 = scmp.ne.s32.totalorder %s145, %s148
      %p157 = scmp.eq.s32.totalorder %s16, 1
      %p158 = por %p156, %p157
      %p159 = scmp.ne.s32.totalorder %s148, %s149
      %p160 = scmp.eq.s32.totalorder %s16, 0
      %p161 = por %p159, %p160
      %p162 = scmp.ne.s32.totalorder %s148, %s149
      %p163 = scmp.eq.s32.totalorder %s17, 1
      %p164 = por %p162, %p163
      %p166 = scmp.ne.s32.totalorder %s149, %s165
      %p167 = scmp.eq.s32.totalorder %s17, 0
      %p168 = por %p166, %p167
      %p169 = scmp.le.s32.totalorder 1, %s11
      %p170 = scmp.lt.s32.totalorder %s11, 3
      %p171 = pnand %p169, %p170
      %p172 = pneg %p171
      // Predicated region
      $region9: #{vssm_two_heads_forward.1} parent=5 // pred_check
        _
      $region10: #{vssm_two_heads_forward.1} parent=5 // pred_check_branch
        %174 = sbr.rel (%p171) target = $region12
      $region11: #{vssm_two_heads_forward.1} parent=5 // pred_region
        %s175 = ssub.s32 %s11, 1
        // Predicated region
        $region13: #{vssm_two_heads_forward.1} parent=11 // pred_check
          %p176 = pneg %p72
        $region14: #{vssm_two_heads_forward.1} parent=11 // pred_check_branch
          %178 = sbr.rel (%p176) target = $region16
        $region15: #{vssm_two_heads_forward.1} parent=11 // pred_region
          _
        $region16: #{vssm_two_heads_forward.1} parent=11 // pred_fallthru
          _
        // Predicated region
        $region17: #{vssm_two_heads_forward.1} parent=11 // pred_check
          %p179 = pneg %p93
        $region18: #{vssm_two_heads_forward.1} parent=11 // pred_check_branch
          %181 = sbr.rel (%p179) target = $region20
        $region19: #{vssm_two_heads_forward.1} parent=11 // pred_region
          _
        $region20: #{vssm_two_heads_forward.1} parent=11 // pred_fallthru
          _
        // Predicated region
        $region21: #{vssm_two_heads_forward.1} parent=11 // pred_check
          %p182 = pneg %p114
        $region22: #{vssm_two_heads_forward.1} parent=11 // pred_check_branch
          %184 = sbr.rel (%p182) target = $region24
        $region23: #{vssm_two_heads_forward.1} parent=11 // pred_region
          _
        $region24: #{vssm_two_heads_forward.1} parent=11 // pred_fallthru
          _
        // Predicated region
        $region25: #{vssm_two_heads_forward.1} parent=11 // pred_check
          %p185 = pneg %p135
        $region26: #{vssm_two_heads_forward.1} parent=11 // pred_check_branch
          %187 = sbr.rel (%p185) target = $region28
        $region27: #{vssm_two_heads_forward.1} parent=11 // pred_region
          _
        $region28: #{vssm_two_heads_forward.1} parent=11 // pred_fallthru
          _
      $region12: #{vssm_two_heads_forward.1} parent=5 // pred_fallthru
        _
      %p188 = scmp.lt.s32.totalorder %s11, 2
      // Predicated region
      $region29: #{vssm_two_heads_forward.1} parent=5 // pred_check
        %p189 = pneg %p188
      $region30: #{vssm_two_heads_forward.1} parent=5 // pred_check_branch
        %191 = sbr.rel (%p189) target = $region32
      $region31: #{vssm_two_heads_forward.1} parent=5 // pred_region
        // Predicated region
        $region33: #{vssm_two_heads_forward.1} parent=31 // pred_check
          %p192 = pneg %p45
        $region34: #{vssm_two_heads_forward.1} parent=31 // pred_check_branch
          %194 = sbr.rel (%p192) target = $region36
        $region35: #{vssm_two_heads_forward.1} parent=31 // pred_region
          %s195 = sand.u32 %s35, 1
          %s196 = sand.u32 %s35, 1
          %s197 = smul.addr %s196, 1536
          %s198 = scalar_lea.vmem [#allocation3], %s197
          %s199 = smul.u32 8, %s18
          %s200 = smul.u32 4, %s19
          %s201 = smul.addr %s200, 6
          %s202 = smul.addr %s199, 48
          %s203 = sadd.s32 %s201, %s202
          %s204 = smul.addr %s203, 8
          %s205 = scalar_lea.vmem %s0, %s204
          // Predicated region
          $region37: #{vssm_two_heads_forward.1} parent=35 // pred_check
            _
          $region38: #{vssm_two_heads_forward.1} parent=35 // pred_check_branch
            %207 = sbr.rel (0) target = $region40
          $region39: #{vssm_two_heads_forward.1} parent=35 // pred_region
            // Predicated region
            $region41: #{vssm_two_heads_forward.1} parent=39 // pred_check
              _
            $region42: #{vssm_two_heads_forward.1} parent=39 // pred_check_branch
              %209 = sbr.rel (0) target = $region44
            $region43: #{vssm_two_heads_forward.1} parent=39 // pred_region
              loop: start=0, step=1, limit=1
              $region45: #{vssm_two_heads_forward.1} parent=43 // loop_pre_header
                _
              $region46: #{vssm_two_heads_forward.1} parent=43 // loop_header
                %s211 = sphi 0, %s215
                %p212 = scmp.ge.s32.totalorder %s211, 1
                %s216 = sphi %s205, %s205
                %s217 = sphi %s198, %s198
              $region47: #{vssm_two_heads_forward.1} parent=43 // loop_header_branch
                %214 = sbr.rel (%p212) target = $region51
              $region48: #{vssm_two_heads_forward.1} parent=43 // loop_body
                %v218 = vld [vmem:[%s216] sm:$0xff]
                %219 = vst [vmem:[%s217] sm:$0xff] %v218
                %v220 = vld [vmem:[%s216 + $0x8] sm:$0xff]
                %221 = vst [vmem:[%s217 + $0x8] sm:$0xff] %v220
                %v222 = vld [vmem:[%s216 + $0x10] sm:$0xff]
                %223 = vst [vmem:[%s217 + $0x10] sm:$0xff] %v222
                %v224 = vld [vmem:[%s216 + $0x18] sm:$0xff]
                %225 = vst [vmem:[%s217 + $0x18] sm:$0xff] %v224
                %v226 = vld [vmem:[%s216 + $0x20] sm:$0xff]
                %227 = vst [vmem:[%s217 + $0x20] sm:$0xff] %v226
                %v228 = vld [vmem:[%s216 + $0x28] sm:$0xff]
                %229 = vst [vmem:[%s217 + $0x28] sm:$0xff] %v228
                %v230 = vld [vmem:[%s216 + $0x30] sm:$0xff]
                %231 = vst [vmem:[%s217 + $0x30] sm:$0xff] %v230
                %v232 = vld [vmem:[%s216 + $0x38] sm:$0xff]
                %233 = vst [vmem:[%s217 + $0x38] sm:$0xff] %v232
                %v234 = vld [vmem:[%s216 + $0x40] sm:$0xff]
                %235 = vst [vmem:[%s217 + $0x40] sm:$0xff] %v234
                %v236 = vld [vmem:[%s216 + $0x48] sm:$0xff]
                %237 = vst [vmem:[%s217 + $0x48] sm:$0xff] %v236
                %v238 = vld [vmem:[%s216 + $0x50] sm:$0xff]
                %239 = vst [vmem:[%s217 + $0x50] sm:$0xff] %v238
                %v240 = vld [vmem:[%s216 + $0x58] sm:$0xff]
                %241 = vst [vmem:[%s217 + $0x58] sm:$0xff] %v240
                %v242 = vld [vmem:[%s216 + $0x60] sm:$0xff]
                %243 = vst [vmem:[%s217 + $0x60] sm:$0xff] %v242
                %v244 = vld [vmem:[%s216 + $0x68] sm:$0xff]
                %245 = vst [vmem:[%s217 + $0x68] sm:$0xff] %v244
                %v246 = vld [vmem:[%s216 + $0x70] sm:$0xff]
                %247 = vst [vmem:[%s217 + $0x70] sm:$0xff] %v246
                %v248 = vld [vmem:[%s216 + $0x78] sm:$0xff]
                %249 = vst [vmem:[%s217 + $0x78] sm:$0xff] %v248
                %v250 = vld [vmem:[%s216 + $0x80] sm:$0xff]
                %251 = vst [vmem:[%s217 + $0x80] sm:$0xff] %v250
                %v252 = vld [vmem:[%s216 + $0x88] sm:$0xff]
                %253 = vst [vmem:[%s217 + $0x88] sm:$0xff] %v252
                %v254 = vld [vmem:[%s216 + $0x90] sm:$0xff]
                %255 = vst [vmem:[%s217 + $0x90] sm:$0xff] %v254
                %v256 = vld [vmem:[%s216 + $0x98] sm:$0xff]
                %257 = vst [vmem:[%s217 + $0x98] sm:$0xff] %v256
                %v258 = vld [vmem:[%s216 + $0xa0] sm:$0xff]
                %259 = vst [vmem:[%s217 + $0xa0] sm:$0xff] %v258
                %v260 = vld [vmem:[%s216 + $0xa8] sm:$0xff]
                %261 = vst [vmem:[%s217 + $0xa8] sm:$0xff] %v260
                %v262 = vld [vmem:[%s216 + $0xb0] sm:$0xff]
                %263 = vst [vmem:[%s217 + $0xb0] sm:$0xff] %v262
                %v264 = vld [vmem:[%s216 + $0xb8] sm:$0xff]
                %265 = vst [vmem:[%s217 + $0xb8] sm:$0xff] %v264
                %v266 = vld [vmem:[%s216 + $0x180] sm:$0xff]
                %267 = vst [vmem:[%s217 + $0xc0] sm:$0xff] %v266
                %v268 = vld [vmem:[%s216 + $0x188] sm:$0xff]
                %269 = vst [vmem:[%s217 + $0xc8] sm:$0xff] %v268
                %v270 = vld [vmem:[%s216 + $0x190] sm:$0xff]
                %271 = vst [vmem:[%s217 + $0xd0] sm:$0xff] %v270
                %v272 = vld [vmem:[%s216 + $0x198] sm:$0xff]
                %273 = vst [vmem:[%s217 + $0xd8] sm:$0xff] %v272
                %v274 = vld [vmem:[%s216 + $0x1a0] sm:$0xff]
                %275 = vst [vmem:[%s217 + $0xe0] sm:$0xff] %v274
                %v276 = vld [vmem:[%s216 + $0x1a8] sm:$0xff]
                %277 = vst [vmem:[%s217 + $0xe8] sm:$0xff] %v276
                %v278 = vld [vmem:[%s216 + $0x1b0] sm:$0xff]
                %279 = vst [vmem:[%s217 + $0xf0] sm:$0xff] %v278
                %v280 = vld [vmem:[%s216 + $0x1b8] sm:$0xff]
                %281 = vst [vmem:[%s217 + $0xf8] sm:$0xff] %v280
                %v282 = vld [vmem:[%s216 + $0x1c0] sm:$0xff]
                %283 = vst [vmem:[%s217 + $0x100] sm:$0xff] %v282
                %v284 = vld [vmem:[%s216 + $0x1c8] sm:$0xff]
                %285 = vst [vmem:[%s217 + $0x108] sm:$0xff] %v284
                %v286 = vld [vmem:[%s216 + $0x1d0] sm:$0xff]
                %287 = vst [vmem:[%s217 + $0x110] sm:$0xff] %v286
                %v288 = vld [vmem:[%s216 + $0x1d8] sm:$0xff]
                %289 = vst [vmem:[%s217 + $0x118] sm:$0xff] %v288
                %v290 = vld [vmem:[%s216 + $0x1e0] sm:$0xff]
                %291 = vst [vmem:[%s217 + $0x120] sm:$0xff] %v290
                %v292 = vld [vmem:[%s216 + $0x1e8] sm:$0xff]
                %293 = vst [vmem:[%s217 + $0x128] sm:$0xff] %v292
                %v294 = vld [vmem:[%s216 + $0x1f0] sm:$0xff]
                %295 = vst [vmem:[%s217 + $0x130] sm:$0xff] %v294
                %v296 = vld [vmem:[%s216 + $0x1f8] sm:$0xff]
                %297 = vst [vmem:[%s217 + $0x138] sm:$0xff] %v296
                %v298 = vld [vmem:[%s216 + $0x200] sm:$0xff]
                %299 = vst [vmem:[%s217 + $0x140] sm:$0xff] %v298
                %v300 = vld [vmem:[%s216 + $0x208] sm:$0xff]
                %301 = vst [vmem:[%s217 + $0x148] sm:$0xff] %v300
                %v302 = vld [vmem:[%s216 + $0x210] sm:$0xff]
                %303 = vst [vmem:[%s217 + $0x150] sm:$0xff] %v302
                %v304 = vld [vmem:[%s216 + $0x218] sm:$0xff]
                %305 = vst [vmem:[%s217 + $0x158] sm:$0xff] %v304
                %v306 = vld [vmem:[%s216 + $0x220] sm:$0xff]
                %307 = vst [vmem:[%s217 + $0x160] sm:$0xff] %v306
                %v308 = vld [vmem:[%s216 + $0x228] sm:$0xff]
                %309 = vst [vmem:[%s217 + $0x168] sm:$0xff] %v308
                %v310 = vld [vmem:[%s216 + $0x230] sm:$0xff]
                %311 = vst [vmem:[%s217 + $0x170] sm:$0xff] %v310
                %v312 = vld [vmem:[%s216 + $0x238] sm:$0xff]
                %313 = vst [vmem:[%s217 + $0x178] sm:$0xff] %v312
                %v314 = vld [vmem:[%s216 + $0x300] sm:$0xff]
                %315 = vst [vmem:[%s217 + $0x180] sm:$0xff] %v314
                %v316 = vld [vmem:[%s216 + $0x308] sm:$0xff]
                %317 = vst [vmem:[%s217 + $0x188] sm:$0xff] %v316
                %v318 = vld [vmem:[%s216 + $0x310] sm:$0xff]
                %319 = vst [vmem:[%s217 + $0x190] sm:$0xff] %v318
                %v320 = vld [vmem:[%s216 + $0x318] sm:$0xff]
                %321 = vst [vmem:[%s217 + $0x198] sm:$0xff] %v320
                %v322 = vld [vmem:[%s216 + $0x320] sm:$0xff]
                %323 = vst [vmem:[%s217 + $0x1a0] sm:$0xff] %v322
                %v324 = vld [vmem:[%s216 + $0x328] sm:$0xff]
                %325 = vst [vmem:[%s217 + $0x1a8] sm:$0xff] %v324
                %v326 = vld [vmem:[%s216 + $0x330] sm:$0xff]
                %327 = vst [vmem:[%s217 + $0x1b0] sm:$0xff] %v326
                %v328 = vld [vmem:[%s216 + $0x338] sm:$0xff]
                %329 = vst [vmem:[%s217 + $0x1b8] sm:$0xff] %v328
                %v330 = vld [vmem:[%s216 + $0x340] sm:$0xff]
                %331 = vst [vmem:[%s217 + $0x1c0] sm:$0xff] %v330
                %v332 = vld [vmem:[%s216 + $0x348] sm:$0xff]
                %333 = vst [vmem:[%s217 + $0x1c8] sm:$0xff] %v332
                %v334 = vld [vmem:[%s216 + $0x350] sm:$0xff]
                %335 = vst [vmem:[%s217 + $0x1d0] sm:$0xff] %v334
                %v336 = vld [vmem:[%s216 + $0x358] sm:$0xff]
                %337 = vst [vmem:[%s217 + $0x1d8] sm:$0xff] %v336
                %v338 = vld [vmem:[%s216 + $0x360] sm:$0xff]
                %339 = vst [vmem:[%s217 + $0x1e0] sm:$0xff] %v338
                %v340 = vld [vmem:[%s216 + $0x368] sm:$0xff]
                %341 = vst [vmem:[%s217 + $0x1e8] sm:$0xff] %v340
                %v342 = vld [vmem:[%s216 + $0x370] sm:$0xff]
                %343 = vst [vmem:[%s217 + $0x1f0] sm:$0xff] %v342
                %v344 = vld [vmem:[%s216 + $0x378] sm:$0xff]
                %345 = vst [vmem:[%s217 + $0x1f8] sm:$0xff] %v344
                %v346 = vld [vmem:[%s216 + $0x380] sm:$0xff]
                %347 = vst [vmem:[%s217 + $0x200] sm:$0xff] %v346
                %v348 = vld [vmem:[%s216 + $0x388] sm:$0xff]
                %349 = vst [vmem:[%s217 + $0x208] sm:$0xff] %v348
                %v350 = vld [vmem:[%s216 + $0x390] sm:$0xff]
                %351 = vst [vmem:[%s217 + $0x210] sm:$0xff] %v350
                %v352 = vld [vmem:[%s216 + $0x398] sm:$0xff]
                %353 = vst [vmem:[%s217 + $0x218] sm:$0xff] %v352
                %v354 = vld [vmem:[%s216 + $0x3a0] sm:$0xff]
                %355 = vst [vmem:[%s217 + $0x220] sm:$0xff] %v354
                %v356 = vld [vmem:[%s216 + $0x3a8] sm:$0xff]
                %357 = vst [vmem:[%s217 + $0x228] sm:$0xff] %v356
                %v358 = vld [vmem:[%s216 + $0x3b0] sm:$0xff]
                %359 = vst [vmem:[%s217 + $0x230] sm:$0xff] %v358
                %v360 = vld [vmem:[%s216 + $0x3b8] sm:$0xff]
                %361 = vst [vmem:[%s217 + $0x238] sm:$0xff] %v360
                %v362 = vld [vmem:[%s216 + $0x480] sm:$0xff]
                %363 = vst [vmem:[%s217 + $0x240] sm:$0xff] %v362
                %v364 = vld [vmem:[%s216 + $0x488] sm:$0xff]
                %365 = vst [vmem:[%s217 + $0x248] sm:$0xff] %v364
                %v366 = vld [vmem:[%s216 + $0x490] sm:$0xff]
                %367 = vst [vmem:[%s217 + $0x250] sm:$0xff] %v366
                %v368 = vld [vmem:[%s216 + $0x498] sm:$0xff]
                %369 = vst [vmem:[%s217 + $0x258] sm:$0xff] %v368
                %v370 = vld [vmem:[%s216 + $0x4a0] sm:$0xff]
                %371 = vst [vmem:[%s217 + $0x260] sm:$0xff] %v370
                %v372 = vld [vmem:[%s216 + $0x4a8] sm:$0xff]
                %373 = vst [vmem:[%s217 + $0x268] sm:$0xff] %v372
                %v374 = vld [vmem:[%s216 + $0x4b0] sm:$0xff]
                %375 = vst [vmem:[%s217 + $0x270] sm:$0xff] %v374
                %v376 = vld [vmem:[%s216 + $0x4b8] sm:$0xff]
                %377 = vst [vmem:[%s217 + $0x278] sm:$0xff] %v376
                %v378 = vld [vmem:[%s216 + $0x4c0] sm:$0xff]
                %379 = vst [vmem:[%s217 + $0x280] sm:$0xff] %v378
                %v380 = vld [vmem:[%s216 + $0x4c8] sm:$0xff]
                %381 = vst [vmem:[%s217 + $0x288] sm:$0xff] %v380
                %v382 = vld [vmem:[%s216 + $0x4d0] sm:$0xff]
                %383 = vst [vmem:[%s217 + $0x290] sm:$0xff] %v382
                %v384 = vld [vmem:[%s216 + $0x4d8] sm:$0xff]
                %385 = vst [vmem:[%s217 + $0x298] sm:$0xff] %v384
                %v386 = vld [vmem:[%s216 + $0x4e0] sm:$0xff]
                %387 = vst [vmem:[%s217 + $0x2a0] sm:$0xff] %v386
                %v388 = vld [vmem:[%s216 + $0x4e8] sm:$0xff]
                %389 = vst [vmem:[%s217 + $0x2a8] sm:$0xff] %v388
                %v390 = vld [vmem:[%s216 + $0x4f0] sm:$0xff]
                %391 = vst [vmem:[%s217 + $0x2b0] sm:$0xff] %v390
                %v392 = vld [vmem:[%s216 + $0x4f8] sm:$0xff]
                %393 = vst [vmem:[%s217 + $0x2b8] sm:$0xff] %v392
                %v394 = vld [vmem:[%s216 + $0x500] sm:$0xff]
                %395 = vst [vmem:[%s217 + $0x2c0] sm:$0xff] %v394
                %v396 = vld [vmem:[%s216 + $0x508] sm:$0xff]
                %397 = vst [vmem:[%s217 + $0x2c8] sm:$0xff] %v396
                %v398 = vld [vmem:[%s216 + $0x510] sm:$0xff]
                %399 = vst [vmem:[%s217 + $0x2d0] sm:$0xff] %v398
                %v400 = vld [vmem:[%s216 + $0x518] sm:$0xff]
                %401 = vst [vmem:[%s217 + $0x2d8] sm:$0xff] %v400
                %v402 = vld [vmem:[%s216 + $0x520] sm:$0xff]
                %403 = vst [vmem:[%s217 + $0x2e0] sm:$0xff] %v402
                %v404 = vld [vmem:[%s216 + $0x528] sm:$0xff]
                %405 = vst [vmem:[%s217 + $0x2e8] sm:$0xff] %v404
                %v406 = vld [vmem:[%s216 + $0x530] sm:$0xff]
                %407 = vst [vmem:[%s217 + $0x2f0] sm:$0xff] %v406
                %v408 = vld [vmem:[%s216 + $0x538] sm:$0xff]
                %409 = vst [vmem:[%s217 + $0x2f8] sm:$0xff] %v408
                %v410 = vld [vmem:[%s216 + $0x600] sm:$0xff]
                %411 = vst [vmem:[%s217 + $0x300] sm:$0xff] %v410
                %v412 = vld [vmem:[%s216 + $0x608] sm:$0xff]
                %413 = vst [vmem:[%s217 + $0x308] sm:$0xff] %v412
                %v414 = vld [vmem:[%s216 + $0x610] sm:$0xff]
                %415 = vst [vmem:[%s217 + $0x310] sm:$0xff] %v414
                %v416 = vld [vmem:[%s216 + $0x618] sm:$0xff]
                %417 = vst [vmem:[%s217 + $0x318] sm:$0xff] %v416
                %v418 = vld [vmem:[%s216 + $0x620] sm:$0xff]
                %419 = vst [vmem:[%s217 + $0x320] sm:$0xff] %v418
                %v420 = vld [vmem:[%s216 + $0x628] sm:$0xff]
                %421 = vst [vmem:[%s217 + $0x328] sm:$0xff] %v420
                %v422 = vld [vmem:[%s216 + $0x630] sm:$0xff]
                %423 = vst [vmem:[%s217 + $0x330] sm:$0xff] %v422
                %v424 = vld [vmem:[%s216 + $0x638] sm:$0xff]
                %425 = vst [vmem:[%s217 + $0x338] sm:$0xff] %v424
                %v426 = vld [vmem:[%s216 + $0x640] sm:$0xff]
                %427 = vst [vmem:[%s217 + $0x340] sm:$0xff] %v426
                %v428 = vld [vmem:[%s216 + $0x648] sm:$0xff]
                %429 = vst [vmem:[%s217 + $0x348] sm:$0xff] %v428
                %v430 = vld [vmem:[%s216 + $0x650] sm:$0xff]
                %431 = vst [vmem:[%s217 + $0x350] sm:$0xff] %v430
                %v432 = vld [vmem:[%s216 + $0x658] sm:$0xff]
                %433 = vst [vmem:[%s217 + $0x358] sm:$0xff] %v432
                %v434 = vld [vmem:[%s216 + $0x660] sm:$0xff]
                %435 = vst [vmem:[%s217 + $0x360] sm:$0xff] %v434
                %v436 = vld [vmem:[%s216 + $0x668] sm:$0xff]
                %437 = vst [vmem:[%s217 + $0x368] sm:$0xff] %v436
                %v438 = vld [vmem:[%s216 + $0x670] sm:$0xff]
                %439 = vst [vmem:[%s217 + $0x370] sm:$0xff] %v438
                %v440 = vld [vmem:[%s216 + $0x678] sm:$0xff]
                %441 = vst [vmem:[%s217 + $0x378] sm:$0xff] %v440
                %v442 = vld [vmem:[%s216 + $0x680] sm:$0xff]
                %443 = vst [vmem:[%s217 + $0x380] sm:$0xff] %v442
                %v444 = vld [vmem:[%s216 + $0x688] sm:$0xff]
                %445 = vst [vmem:[%s217 + $0x388] sm:$0xff] %v444
                %v446 = vld [vmem:[%s216 + $0x690] sm:$0xff]
                %447 = vst [vmem:[%s217 + $0x390] sm:$0xff] %v446
                %v448 = vld [vmem:[%s216 + $0x698] sm:$0xff]
                %449 = vst [vmem:[%s217 + $0x398] sm:$0xff] %v448
                %v450 = vld [vmem:[%s216 + $0x6a0] sm:$0xff]
                %451 = vst [vmem:[%s217 + $0x3a0] sm:$0xff] %v450
                %v452 = vld [vmem:[%s216 + $0x6a8] sm:$0xff]
                %453 = vst [vmem:[%s217 + $0x3a8] sm:$0xff] %v452
                %v454 = vld [vmem:[%s216 + $0x6b0] sm:$0xff]
                %455 = vst [vmem:[%s217 + $0x3b0] sm:$0xff] %v454
                %v456 = vld [vmem:[%s216 + $0x6b8] sm:$0xff]
                %457 = vst [vmem:[%s217 + $0x3b8] sm:$0xff] %v456
                %v458 = vld [vmem:[%s216 + $0x780] sm:$0xff]
                %459 = vst [vmem:[%s217 + $0x3c0] sm:$0xff] %v458
                %v460 = vld [vmem:[%s216 + $0x788] sm:$0xff]
                %461 = vst [vmem:[%s217 + $0x3c8] sm:$0xff] %v460
                %v462 = vld [vmem:[%s216 + $0x790] sm:$0xff]
                %463 = vst [vmem:[%s217 + $0x3d0] sm:$0xff] %v462
                %v464 = vld [vmem:[%s216 + $0x798] sm:$0xff]
                %465 = vst [vmem:[%s217 + $0x3d8] sm:$0xff] %v464
                %v466 = vld [vmem:[%s216 + $0x7a0] sm:$0xff]
                %467 = vst [vmem:[%s217 + $0x3e0] sm:$0xff] %v466
                %v468 = vld [vmem:[%s216 + $0x7a8] sm:$0xff]
                %469 = vst [vmem:[%s217 + $0x3e8] sm:$0xff] %v468
                %v470 = vld [vmem:[%s216 + $0x7b0] sm:$0xff]
                %471 = vst [vmem:[%s217 + $0x3f0] sm:$0xff] %v470
                %v472 = vld [vmem:[%s216 + $0x7b8] sm:$0xff]
                %473 = vst [vmem:[%s217 + $0x3f8] sm:$0xff] %v472
                %v474 = vld [vmem:[%s216 + $0x7c0] sm:$0xff]
                %475 = vst [vmem:[%s217 + $0x400] sm:$0xff] %v474
                %v476 = vld [vmem:[%s216 + $0x7c8] sm:$0xff]
                %477 = vst [vmem:[%s217 + $0x408] sm:$0xff] %v476
                %v478 = vld [vmem:[%s216 + $0x7d0] sm:$0xff]
                %479 = vst [vmem:[%s217 + $0x410] sm:$0xff] %v478
                %v480 = vld [vmem:[%s216 + $0x7d8] sm:$0xff]
                %481 = vst [vmem:[%s217 + $0x418] sm:$0xff] %v480
                %v482 = vld [vmem:[%s216 + $0x7e0] sm:$0xff]
                %483 = vst [vmem:[%s217 + $0x420] sm:$0xff] %v482
                %v484 = vld [vmem:[%s216 + $0x7e8] sm:$0xff]
                %485 = vst [vmem:[%s217 + $0x428] sm:$0xff] %v484
                %v486 = vld [vmem:[%s216 + $0x7f0] sm:$0xff]
                %487 = vst [vmem:[%s217 + $0x430] sm:$0xff] %v486
                %v488 = vld [vmem:[%s216 + $0x7f8] sm:$0xff]
                %489 = vst [vmem:[%s217 + $0x438] sm:$0xff] %v488
                %v490 = vld [vmem:[%s216 + $0x800] sm:$0xff]
                %491 = vst [vmem:[%s217 + $0x440] sm:$0xff] %v490
                %v492 = vld [vmem:[%s216 + $0x808] sm:$0xff]
                %493 = vst [vmem:[%s217 + $0x448] sm:$0xff] %v492
                %v494 = vld [vmem:[%s216 + $0x810] sm:$0xff]
                %495 = vst [vmem:[%s217 + $0x450] sm:$0xff] %v494
                %v496 = vld [vmem:[%s216 + $0x818] sm:$0xff]
                %497 = vst [vmem:[%s217 + $0x458] sm:$0xff] %v496
                %v498 = vld [vmem:[%s216 + $0x820] sm:$0xff]
                %499 = vst [vmem:[%s217 + $0x460] sm:$0xff] %v498
                %v500 = vld [vmem:[%s216 + $0x828] sm:$0xff]
                %501 = vst [vmem:[%s217 + $0x468] sm:$0xff] %v500
                %v502 = vld [vmem:[%s216 + $0x830] sm:$0xff]
                %503 = vst [vmem:[%s217 + $0x470] sm:$0xff] %v502
                %v504 = vld [vmem:[%s216 + $0x838] sm:$0xff]
                %505 = vst [vmem:[%s217 + $0x478] sm:$0xff] %v504
                %v506 = vld [vmem:[%s216 + $0x900] sm:$0xff]
                %507 = vst [vmem:[%s217 + $0x480] sm:$0xff] %v506
                %v508 = vld [vmem:[%s216 + $0x908] sm:$0xff]
                %509 = vst [vmem:[%s217 + $0x488] sm:$0xff] %v508
                %v510 = vld [vmem:[%s216 + $0x910] sm:$0xff]
                %511 = vst [vmem:[%s217 + $0x490] sm:$0xff] %v510
                %v512 = vld [vmem:[%s216 + $0x918] sm:$0xff]
                %513 = vst [vmem:[%s217 + $0x498] sm:$0xff] %v512
                %v514 = vld [vmem:[%s216 + $0x920] sm:$0xff]
                %515 = vst [vmem:[%s217 + $0x4a0] sm:$0xff] %v514
                %v516 = vld [vmem:[%s216 + $0x928] sm:$0xff]
                %517 = vst [vmem:[%s217 + $0x4a8] sm:$0xff] %v516
                %v518 = vld [vmem:[%s216 + $0x930] sm:$0xff]
                %519 = vst [vmem:[%s217 + $0x4b0] sm:$0xff] %v518
                %v520 = vld [vmem:[%s216 + $0x938] sm:$0xff]
                %521 = vst [vmem:[%s217 + $0x4b8] sm:$0xff] %v520
                %v522 = vld [vmem:[%s216 + $0x940] sm:$0xff]
                %523 = vst [vmem:[%s217 + $0x4c0] sm:$0xff] %v522
                %v524 = vld [vmem:[%s216 + $0x948] sm:$0xff]
                %525 = vst [vmem:[%s217 + $0x4c8] sm:$0xff] %v524
                %v526 = vld [vmem:[%s216 + $0x950] sm:$0xff]
                %527 = vst [vmem:[%s217 + $0x4d0] sm:$0xff] %v526
                %v528 = vld [vmem:[%s216 + $0x958] sm:$0xff]
                %529 = vst [vmem:[%s217 + $0x4d8] sm:$0xff] %v528
                %v530 = vld [vmem:[%s216 + $0x960] sm:$0xff]
                %531 = vst [vmem:[%s217 + $0x4e0] sm:$0xff] %v530
                %v532 = vld [vmem:[%s216 + $0x968] sm:$0xff]
                %533 = vst [vmem:[%s217 + $0x4e8] sm:$0xff] %v532
                %v534 = vld [vmem:[%s216 + $0x970] sm:$0xff]
                %535 = vst [vmem:[%s217 + $0x4f0] sm:$0xff] %v534
                %v536 = vld [vmem:[%s216 + $0x978] sm:$0xff]
                %537 = vst [vmem:[%s217 + $0x4f8] sm:$0xff] %v536
                %v538 = vld [vmem:[%s216 + $0x980] sm:$0xff]
                %539 = vst [vmem:[%s217 + $0x500] sm:$0xff] %v538
                %v540 = vld [vmem:[%s216 + $0x988] sm:$0xff]
                %541 = vst [vmem:[%s217 + $0x508] sm:$0xff] %v540
                %v542 = vld [vmem:[%s216 + $0x990] sm:$0xff]
                %543 = vst [vmem:[%s217 + $0x510] sm:$0xff] %v542
                %v544 = vld [vmem:[%s216 + $0x998] sm:$0xff]
                %545 = vst [vmem:[%s217 + $0x518] sm:$0xff] %v544
                %v546 = vld [vmem:[%s216 + $0x9a0] sm:$0xff]
                %547 = vst [vmem:[%s217 + $0x520] sm:$0xff] %v546
                %v548 = vld [vmem:[%s216 + $0x9a8] sm:$0xff]
                %549 = vst [vmem:[%s217 + $0x528] sm:$0xff] %v548
                %v550 = vld [vmem:[%s216 + $0x9b0] sm:$0xff]
                %551 = vst [vmem:[%s217 + $0x530] sm:$0xff] %v550
                %v552 = vld [vmem:[%s216 + $0x9b8] sm:$0xff]
                %553 = vst [vmem:[%s217 + $0x538] sm:$0xff] %v552
                %v554 = vld [vmem:[%s216 + $0xa80] sm:$0xff]
                %555 = vst [vmem:[%s217 + $0x540] sm:$0xff] %v554
                %v556 = vld [vmem:[%s216 + $0xa88] sm:$0xff]
                %557 = vst [vmem:[%s217 + $0x548] sm:$0xff] %v556
                %v558 = vld [vmem:[%s216 + $0xa90] sm:$0xff]
                %559 = vst [vmem:[%s217 + $0x550] sm:$0xff] %v558
                %v560 = vld [vmem:[%s216 + $0xa98] sm:$0xff]
                %561 = vst [vmem:[%s217 + $0x558] sm:$0xff] %v560
                %v562 = vld [vmem:[%s216 + $0xaa0] sm:$0xff]
                %563 = vst [vmem:[%s217 + $0x560] sm:$0xff] %v562
                %v564 = vld [vmem:[%s216 + $0xaa8] sm:$0xff]
                %565 = vst [vmem:[%s217 + $0x568] sm:$0xff] %v564
                %v566 = vld [vmem:[%s216 + $0xab0] sm:$0xff]
                %567 = vst [vmem:[%s217 + $0x570] sm:$0xff] %v566
                %v568 = vld [vmem:[%s216 + $0xab8] sm:$0xff]
                %569 = vst [vmem:[%s217 + $0x578] sm:$0xff] %v568
                %v570 = vld [vmem:[%s216 + $0xac0] sm:$0xff]
                %571 = vst [vmem:[%s217 + $0x580] sm:$0xff] %v570
                %v572 = vld [vmem:[%s216 + $0xac8] sm:$0xff]
                %573 = vst [vmem:[%s217 + $0x588] sm:$0xff] %v572
                %v574 = vld [vmem:[%s216 + $0xad0] sm:$0xff]
                %575 = vst [vmem:[%s217 + $0x590] sm:$0xff] %v574
                %v576 = vld [vmem:[%s216 + $0xad8] sm:$0xff]
                %577 = vst [vmem:[%s217 + $0x598] sm:$0xff] %v576
                %v578 = vld [vmem:[%s216 + $0xae0] sm:$0xff]
                %579 = vst [vmem:[%s217 + $0x5a0] sm:$0xff] %v578
                %v580 = vld [vmem:[%s216 + $0xae8] sm:$0xff]
                %581 = vst [vmem:[%s217 + $0x5a8] sm:$0xff] %v580
                %v582 = vld [vmem:[%s216 + $0xaf0] sm:$0xff]
                %583 = vst [vmem:[%s217 + $0x5b0] sm:$0xff] %v582
                %v584 = vld [vmem:[%s216 + $0xaf8] sm:$0xff]
                %585 = vst [vmem:[%s217 + $0x5b8] sm:$0xff] %v584
                %v586 = vld [vmem:[%s216 + $0xb00] sm:$0xff]
                %587 = vst [vmem:[%s217 + $0x5c0] sm:$0xff] %v586
                %v588 = vld [vmem:[%s216 + $0xb08] sm:$0xff]
                %589 = vst [vmem:[%s217 + $0x5c8] sm:$0xff] %v588
                %v590 = vld [vmem:[%s216 + $0xb10] sm:$0xff]
                %591 = vst [vmem:[%s217 + $0x5d0] sm:$0xff] %v590
                %v592 = vld [vmem:[%s216 + $0xb18] sm:$0xff]
                %593 = vst [vmem:[%s217 + $0x5d8] sm:$0xff] %v592
                %v594 = vld [vmem:[%s216 + $0xb20] sm:$0xff]
                %595 = vst [vmem:[%s217 + $0x5e0] sm:$0xff] %v594
                %v596 = vld [vmem:[%s216 + $0xb28] sm:$0xff]
                %597 = vst [vmem:[%s217 + $0x5e8] sm:$0xff] %v596
                %v598 = vld [vmem:[%s216 + $0xb30] sm:$0xff]
                %599 = vst [vmem:[%s217 + $0x5f0] sm:$0xff] %v598
                %v600 = vld [vmem:[%s216 + $0xb38] sm:$0xff]
                %601 = vst [vmem:[%s217 + $0x5f8] sm:$0xff] %v600
              $region49: #{vssm_two_heads_forward.1} parent=43 // loop_footer
                %s215 = sadd.s32 1, %s211
              $region50: #{vssm_two_heads_forward.1} parent=43 // loop_footer_branch
                %210 = sbr.rel target = $region46
              $region51: #{vssm_two_heads_forward.1} parent=43 // loop_exit
                _
            $region44: #{vssm_two_heads_forward.1} parent=39 // pred_fallthru
              _
            // Predicated region
            $region52: #{vssm_two_heads_forward.1} parent=39 // pred_check
              _
            $region53: #{vssm_two_heads_forward.1} parent=39 // pred_check_branch
              %603 = sbr.rel target = $region55
            $region54: #{vssm_two_heads_forward.1} parent=39 // pred_region
              _
            $region55: #{vssm_two_heads_forward.1} parent=39 // pred_fallthru
              _
          $region40: #{vssm_two_heads_forward.1} parent=35 // pred_fallthru
            _
          %604 = vnop
        $region36: #{vssm_two_heads_forward.1} parent=31 // pred_fallthru
          _
      $region32: #{vssm_two_heads_forward.1} parent=5 // pred_fallthru
        _
      %p605 = scmp.le.s32.totalorder 1, %s11
      %p606 = scmp.lt.s32.totalorder %s11, 3
      %p607 = pnand %p605, %p606
      %p608 = pneg %p607
      // Predicated region
      $region56: #{vssm_two_heads_forward.1} parent=5 // pred_check
        _
      $region57: #{vssm_two_heads_forward.1} parent=5 // pred_check_branch
        %610 = sbr.rel (%p607) target = $region59
      $region58: #{vssm_two_heads_forward.1} parent=5 // pred_region
        %s611 = ssub.s32 %s11, 1
        %s612 = sand.u32 %s38, 1
        %s613 = sand.u32 %s38, 1
        %s614 = smul.addr %s613, 1536
        %s615 = scalar_lea.vmem [#allocation3], %s614
        // Predicated region
        $region60: #{vssm_two_heads_forward.1} parent=58 // pred_check
          %p616 = pneg %p51
        $region61: #{vssm_two_heads_forward.1} parent=58 // pred_check_branch
          %618 = sbr.rel (%p616) target = $region63
        $region62: #{vssm_two_heads_forward.1} parent=58 // pred_region
          _
        $region63: #{vssm_two_heads_forward.1} parent=58 // pred_fallthru
          _
        %s619 = sand.u32 %s38, 1
        %s620 = sand.u32 %s38, 1
        %s621 = smul.addr %s620, 1536
        %s622 = scalar_lea.vmem [#allocation3], %s621
        %p623 = pneg %p51
        %p624 = pneg %p48
        %p625 = pneg %p72
        %p626 = pneg %p69
        %p627 = pneg %p93
        %p628 = pneg %p90
        %p629 = pneg %p114
        %p630 = pneg %p111
        %p631 = pneg %p135
        %p632 = pneg %p132
        %p633 = pneg %p161
        %p634 = pneg %p158
        %p635 = scmp.lt.s32.totalorder %s20, 0
        %s636 = scalar_select %p635, %s20, 0
        %s637 = smul.addr %s636, 8
        %s638 = scalar_lea.vmem %s5, %s637
        %s639 = smul.u32 8, %s20
        %s640 = smul.u32 4, %s21
        %p641 = scmp.lt.s32.totalorder %s20, 0
        %s642 = scalar_select %p641, %s20, 0
        %s643 = smul.addr %s642, 8
        %s644 = scalar_lea.vmem %s5, %s643
        %p645 = scmp.eq.s32.totalorder %s21, 0
        // Predicated region
        $region64: #{vssm_two_heads_forward.1} parent=58 // pred_check
          %p646 = pneg %p645
        $region65: #{vssm_two_heads_forward.1} parent=58 // pred_check_branch
          %648 = sbr.rel (%p646) target = $region67
        $region66: #{vssm_two_heads_forward.1} parent=58 // pred_region
          %649 = vst [vmem:[#allocation2] sm:$0xff] 0.0
          %650 = vst [vmem:[#allocation2 + $0x8] sm:$0xff] 0.0
          %651 = vst [vmem:[#allocation2 + $0x10] sm:$0xff] 0.0
          %652 = vst [vmem:[#allocation2 + $0x18] sm:$0xff] 0.0
          %653 = vst [vmem:[#allocation2 + $0x20] sm:$0xff] 0.0
          %654 = vst [vmem:[#allocation2 + $0x28] sm:$0xff] 0.0
        $region67: #{vssm_two_heads_forward.1} parent=58 // pred_fallthru
          _
        %v655 = vld [vmem:[%s615] sm:$0xff]
        %v656 = vld [vmem:[%s615 + $0x8] sm:$0xff]
        %v657 = vld [vmem:[%s615 + $0x10] sm:$0xff]
        %v658 = vld [vmem:[%s615 + $0x18] sm:$0xff]
        %v659 = vld [vmem:[%s615 + $0x20] sm:$0xff]
        %v660 = vld [vmem:[%s615 + $0x28] sm:$0xff]
        %v661 = vld [vmem:[%s615 + $0x30] sm:$0xff]
        %v662 = vld [vmem:[%s615 + $0x38] sm:$0xff]
        %v663 = vld [vmem:[%s615 + $0x40] sm:$0xff]
        %v664 = vld [vmem:[%s615 + $0x48] sm:$0xff]
        %v665 = vld [vmem:[%s615 + $0x50] sm:$0xff]
        %v666 = vld [vmem:[%s615 + $0x58] sm:$0xff]
        %v667 = vld [vmem:[%s615 + $0x60] sm:$0xff]
        %v668 = vld [vmem:[%s615 + $0x68] sm:$0xff]
        %v669 = vld [vmem:[%s615 + $0x70] sm:$0xff]
        %v670 = vld [vmem:[%s615 + $0x78] sm:$0xff]
        %v671 = vld [vmem:[%s615 + $0x80] sm:$0xff]
        %v672 = vld [vmem:[%s615 + $0x88] sm:$0xff]
        %v673 = vld [vmem:[%s615 + $0x90] sm:$0xff]
        %v674 = vld [vmem:[%s615 + $0x98] sm:$0xff]
        %v675 = vld [vmem:[%s615 + $0xa0] sm:$0xff]
        %v676 = vld [vmem:[%s615 + $0xa8] sm:$0xff]
        %v677 = vld [vmem:[%s615 + $0xb0] sm:$0xff]
        %v678 = vld [vmem:[%s615 + $0xb8] sm:$0xff]
        %v679 = vld [vmem:[%s615 + $0xc0] sm:$0xff]
        %v680 = vld [vmem:[%s615 + $0xc8] sm:$0xff]
        %v681 = vld [vmem:[%s615 + $0xd0] sm:$0xff]
        %v682 = vld [vmem:[%s615 + $0xd8] sm:$0xff]
        %v683 = vld [vmem:[%s615 + $0xe0] sm:$0xff]
        %v684 = vld [vmem:[%s615 + $0xe8] sm:$0xff]
        %v685 = vld [vmem:[%s615 + $0xf0] sm:$0xff]
        %v686 = vld [vmem:[%s615 + $0xf8] sm:$0xff]
        %v687 = vld [vmem:[%s615 + $0x100] sm:$0xff]
        %v688 = vld [vmem:[%s615 + $0x108] sm:$0xff]
        %v689 = vld [vmem:[%s615 + $0x110] sm:$0xff]
        %v690 = vld [vmem:[%s615 + $0x118] sm:$0xff]
        %v691 = vld [vmem:[%s615 + $0x120] sm:$0xff]
        %v692 = vld [vmem:[%s615 + $0x128] sm:$0xff]
        %v693 = vld [vmem:[%s615 + $0x130] sm:$0xff]
        %v694 = vld [vmem:[%s615 + $0x138] sm:$0xff]
        %v695 = vld [vmem:[%s615 + $0x140] sm:$0xff]
        %v696 = vld [vmem:[%s615 + $0x148] sm:$0xff]
        %v697 = vld [vmem:[%s615 + $0x150] sm:$0xff]
        %v698 = vld [vmem:[%s615 + $0x158] sm:$0xff]
        %v699 = vld [vmem:[%s615 + $0x160] sm:$0xff]
        %v700 = vld [vmem:[%s615 + $0x168] sm:$0xff]
        %v701 = vld [vmem:[%s615 + $0x170] sm:$0xff]
        %v702 = vld [vmem:[%s615 + $0x178] sm:$0xff]
        %v703 = vld [vmem:[%s615 + $0x180] sm:$0xff]
        %v704 = vld [vmem:[%s615 + $0x188] sm:$0xff]
        %v705 = vld [vmem:[%s615 + $0x190] sm:$0xff]
        %v706 = vld [vmem:[%s615 + $0x198] sm:$0xff]
        %v707 = vld [vmem:[%s615 + $0x1a0] sm:$0xff]
        %v708 = vld [vmem:[%s615 + $0x1a8] sm:$0xff]
        %v709 = vld [vmem:[%s615 + $0x1b0] sm:$0xff]
        %v710 = vld [vmem:[%s615 + $0x1b8] sm:$0xff]
        %v711 = vld [vmem:[%s615 + $0x1c0] sm:$0xff]
        %v712 = vld [vmem:[%s615 + $0x1c8] sm:$0xff]
        %v713 = vld [vmem:[%s615 + $0x1d0] sm:$0xff]
        %v714 = vld [vmem:[%s615 + $0x1d8] sm:$0xff]
        %v715 = vld [vmem:[%s615 + $0x1e0] sm:$0xff]
        %v716 = vld [vmem:[%s615 + $0x1e8] sm:$0xff]
        %v717 = vld [vmem:[%s615 + $0x1f0] sm:$0xff]
        %v718 = vld [vmem:[%s615 + $0x1f8] sm:$0xff]
        %v719 = vld [vmem:[%s615 + $0x200] sm:$0xff]
        %v720 = vld [vmem:[%s615 + $0x208] sm:$0xff]
        %v721 = vld [vmem:[%s615 + $0x210] sm:$0xff]
        %v722 = vld [vmem:[%s615 + $0x218] sm:$0xff]
        %v723 = vld [vmem:[%s615 + $0x220] sm:$0xff]
        %v724 = vld [vmem:[%s615 + $0x228] sm:$0xff]
        %v725 = vld [vmem:[%s615 + $0x230] sm:$0xff]
        %v726 = vld [vmem:[%s615 + $0x238] sm:$0xff]
        %v727 = vld [vmem:[%s615 + $0x240] sm:$0xff]
        %v728 = vld [vmem:[%s615 + $0x248] sm:$0xff]
        %v729 = vld [vmem:[%s615 + $0x250] sm:$0xff]
        %v730 = vld [vmem:[%s615 + $0x258] sm:$0xff]
        %v731 = vld [vmem:[%s615 + $0x260] sm:$0xff]
        %v732 = vld [vmem:[%s615 + $0x268] sm:$0xff]
        %v733 = vld [vmem:[%s615 + $0x270] sm:$0xff]
        %v734 = vld [vmem:[%s615 + $0x278] sm:$0xff]
        %v735 = vld [vmem:[%s615 + $0x280] sm:$0xff]
        %v736 = vld [vmem:[%s615 + $0x288] sm:$0xff]
        %v737 = vld [vmem:[%s615 + $0x290] sm:$0xff]
        %v738 = vld [vmem:[%s615 + $0x298] sm:$0xff]
        %v739 = vld [vmem:[%s615 + $0x2a0] sm:$0xff]
        %v740 = vld [vmem:[%s615 + $0x2a8] sm:$0xff]
        %v741 = vld [vmem:[%s615 + $0x2b0] sm:$0xff]
        %v742 = vld [vmem:[%s615 + $0x2b8] sm:$0xff]
        %v743 = vld [vmem:[%s615 + $0x2c0] sm:$0xff]
        %v744 = vld [vmem:[%s615 + $0x2c8] sm:$0xff]
        %v745 = vld [vmem:[%s615 + $0x2d0] sm:$0xff]
        %v746 = vld [vmem:[%s615 + $0x2d8] sm:$0xff]
        %v747 = vld [vmem:[%s615 + $0x2e0] sm:$0xff]
        %v748 = vld [vmem:[%s615 + $0x2e8] sm:$0xff]
        %v749 = vld [vmem:[%s615 + $0x2f0] sm:$0xff]
        %v750 = vld [vmem:[%s615 + $0x2f8] sm:$0xff]
        %v751 = vld [vmem:[%s615 + $0x300] sm:$0xff]
        %v752 = vld [vmem:[%s615 + $0x308] sm:$0xff]
        %v753 = vld [vmem:[%s615 + $0x310] sm:$0xff]
        %v754 = vld [vmem:[%s615 + $0x318] sm:$0xff]
        %v755 = vld [vmem:[%s615 + $0x320] sm:$0xff]
        %v756 = vld [vmem:[%s615 + $0x328] sm:$0xff]
        %v757 = vld [vmem:[%s615 + $0x330] sm:$0xff]
        %v758 = vld [vmem:[%s615 + $0x338] sm:$0xff]
        %v759 = vld [vmem:[%s615 + $0x340] sm:$0xff]
        %v760 = vld [vmem:[%s615 + $0x348] sm:$0xff]
        %v761 = vld [vmem:[%s615 + $0x350] sm:$0xff]
        %v762 = vld [vmem:[%s615 + $0x358] sm:$0xff]
        %v763 = vld [vmem:[%s615 + $0x360] sm:$0xff]
        %v764 = vld [vmem:[%s615 + $0x368] sm:$0xff]
        %v765 = vld [vmem:[%s615 + $0x370] sm:$0xff]
        %v766 = vld [vmem:[%s615 + $0x378] sm:$0xff]
        %v767 = vld [vmem:[%s615 + $0x380] sm:$0xff]
        %v768 = vld [vmem:[%s615 + $0x388] sm:$0xff]
        %v769 = vld [vmem:[%s615 + $0x390] sm:$0xff]
        %v770 = vld [vmem:[%s615 + $0x398] sm:$0xff]
        %v771 = vld [vmem:[%s615 + $0x3a0] sm:$0xff]
        %v772 = vld [vmem:[%s615 + $0x3a8] sm:$0xff]
        %v773 = vld [vmem:[%s615 + $0x3b0] sm:$0xff]
        %v774 = vld [vmem:[%s615 + $0x3b8] sm:$0xff]
        %v775 = vld [vmem:[%s615 + $0x3c0] sm:$0xff]
        %v776 = vld [vmem:[%s615 + $0x3c8] sm:$0xff]
        %v777 = vld [vmem:[%s615 + $0x3d0] sm:$0xff]
        %v778 = vld [vmem:[%s615 + $0x3d8] sm:$0xff]
        %v779 = vld [vmem:[%s615 + $0x3e0] sm:$0xff]
        %v780 = vld [vmem:[%s615 + $0x3e8] sm:$0xff]
        %v781 = vld [vmem:[%s615 + $0x3f0] sm:$0xff]
        %v782 = vld [vmem:[%s615 + $0x3f8] sm:$0xff]
        %v783 = vld [vmem:[%s615 + $0x400] sm:$0xff]
        %v784 = vld [vmem:[%s615 + $0x408] sm:$0xff]
        %v785 = vld [vmem:[%s615 + $0x410] sm:$0xff]
        %v786 = vld [vmem:[%s615 + $0x418] sm:$0xff]
        %v787 = vld [vmem:[%s615 + $0x420] sm:$0xff]
        %v788 = vld [vmem:[%s615 + $0x428] sm:$0xff]
        %v789 = vld [vmem:[%s615 + $0x430] sm:$0xff]
        %v790 = vld [vmem:[%s615 + $0x438] sm:$0xff]
        %v791 = vld [vmem:[%s615 + $0x440] sm:$0xff]
        %v792 = vld [vmem:[%s615 + $0x448] sm:$0xff]
        %v793 = vld [vmem:[%s615 + $0x450] sm:$0xff]
        %v794 = vld [vmem:[%s615 + $0x458] sm:$0xff]
        %v795 = vld [vmem:[%s615 + $0x460] sm:$0xff]
        %v796 = vld [vmem:[%s615 + $0x468] sm:$0xff]
        %v797 = vld [vmem:[%s615 + $0x470] sm:$0xff]
        %v798 = vld [vmem:[%s615 + $0x478] sm:$0xff]
        %v799 = vld [vmem:[%s615 + $0x480] sm:$0xff]
        %v800 = vld [vmem:[%s615 + $0x488] sm:$0xff]
        %v801 = vld [vmem:[%s615 + $0x490] sm:$0xff]
        %v802 = vld [vmem:[%s615 + $0x498] sm:$0xff]
        %v803 = vld [vmem:[%s615 + $0x4a0] sm:$0xff]
        %v804 = vld [vmem:[%s615 + $0x4a8] sm:$0xff]
        %v805 = vld [vmem:[%s615 + $0x4b0] sm:$0xff]
        %v806 = vld [vmem:[%s615 + $0x4b8] sm:$0xff]
        %v807 = vld [vmem:[%s615 + $0x4c0] sm:$0xff]
        %v808 = vld [vmem:[%s615 + $0x4c8] sm:$0xff]
        %v809 = vld [vmem:[%s615 + $0x4d0] sm:$0xff]
        %v810 = vld [vmem:[%s615 + $0x4d8] sm:$0xff]
        %v811 = vld [vmem:[%s615 + $0x4e0] sm:$0xff]
        %v812 = vld [vmem:[%s615 + $0x4e8] sm:$0xff]
        %v813 = vld [vmem:[%s615 + $0x4f0] sm:$0xff]
        %v814 = vld [vmem:[%s615 + $0x4f8] sm:$0xff]
        %v815 = vld [vmem:[%s615 + $0x500] sm:$0xff]
        %v816 = vld [vmem:[%s615 + $0x508] sm:$0xff]
        %v817 = vld [vmem:[%s615 + $0x510] sm:$0xff]
        %v818 = vld [vmem:[%s615 + $0x518] sm:$0xff]
        %v819 = vld [vmem:[%s615 + $0x520] sm:$0xff]
        %v820 = vld [vmem:[%s615 + $0x528] sm:$0xff]
        %v821 = vld [vmem:[%s615 + $0x530] sm:$0xff]
        %v822 = vld [vmem:[%s615 + $0x538] sm:$0xff]
        %v823 = vld [vmem:[%s615 + $0x540] sm:$0xff]
        %v824 = vld [vmem:[%s615 + $0x548] sm:$0xff]
        %v825 = vld [vmem:[%s615 + $0x550] sm:$0xff]
        %v826 = vld [vmem:[%s615 + $0x558] sm:$0xff]
        %v827 = vld [vmem:[%s615 + $0x560] sm:$0xff]
        %v828 = vld [vmem:[%s615 + $0x568] sm:$0xff]
        %v829 = vld [vmem:[%s615 + $0x570] sm:$0xff]
        %v830 = vld [vmem:[%s615 + $0x578] sm:$0xff]
        %v831 = vld [vmem:[%s615 + $0x580] sm:$0xff]
        %v832 = vld [vmem:[%s615 + $0x588] sm:$0xff]
        %v833 = vld [vmem:[%s615 + $0x590] sm:$0xff]
        %v834 = vld [vmem:[%s615 + $0x598] sm:$0xff]
        %v835 = vld [vmem:[%s615 + $0x5a0] sm:$0xff]
        %v836 = vld [vmem:[%s615 + $0x5a8] sm:$0xff]
        %v837 = vld [vmem:[%s615 + $0x5b0] sm:$0xff]
        %v838 = vld [vmem:[%s615 + $0x5b8] sm:$0xff]
        %v839 = vld [vmem:[%s615 + $0x5c0] sm:$0xff]
        %v840 = vld [vmem:[%s615 + $0x5c8] sm:$0xff]
        %v841 = vld [vmem:[%s615 + $0x5d0] sm:$0xff]
        %v842 = vld [vmem:[%s615 + $0x5d8] sm:$0xff]
        %v843 = vld [vmem:[%s615 + $0x5e0] sm:$0xff]
        %v844 = vld [vmem:[%s615 + $0x5e8] sm:$0xff]
        %v845 = vld [vmem:[%s615 + $0x5f0] sm:$0xff]
        %v846 = vld [vmem:[%s615 + $0x5f8] sm:$0xff]
        %v847 = vld [vmem:[#allocation2] sm:$0xff]
        %v848 = vld [vmem:[#allocation2 + $0x8] sm:$0xff]
        %v849 = vld [vmem:[#allocation2 + $0x10] sm:$0xff]
        %v850 = vld [vmem:[#allocation2 + $0x18] sm:$0xff]
        %v851 = vld [vmem:[#allocation2 + $0x20] sm:$0xff]
        %v852 = vld [vmem:[#allocation2 + $0x28] sm:$0xff]
        %v853 = vadd.f32 %v655, %v661
        %v854 = vadd.f32 %v853, %v667
        %v855 = vadd.f32 %v854, %v673
        %v856 = vrot.slane %v855, 4
        %v857 = vadd.f32 %v855, %v856
        %v858 = vrot.slane %v857, 2
        %v859 = vadd.f32 %v857, %v858
        %v860 = vrot.slane %v859, 1
        %v861 = vadd.f32 %v859, %v860
        %v862 = vadd.f32 %v656, %v662
        %v863 = vadd.f32 %v862, %v668
        %v864 = vadd.f32 %v863, %v674
        %v865 = vrot.slane %v864, 4
        %v866 = vadd.f32 %v864, %v865
        %v867 = vrot.slane %v866, 2
        %v868 = vadd.f32 %v866, %v867
        %v869 = vrot.slane %v868, 1
        %v870 = vadd.f32 %v868, %v869
        %v871 = vadd.f32 %v657, %v663
        %v872 = vadd.f32 %v871, %v669
        %v873 = vadd.f32 %v872, %v675
        %v874 = vrot.slane %v873, 4
        %v875 = vadd.f32 %v873, %v874
        %v876 = vrot.slane %v875, 2
        %v877 = vadd.f32 %v875, %v876
        %v878 = vrot.slane %v877, 1
        %v879 = vadd.f32 %v877, %v878
        %v880 = vadd.f32 %v658, %v664
        %v881 = vadd.f32 %v880, %v670
        %v882 = vadd.f32 %v881, %v676
        %v883 = vrot.slane %v882, 4
        %v884 = vadd.f32 %v882, %v883
        %v885 = vrot.slane %v884, 2
        %v886 = vadd.f32 %v884, %v885
        %v887 = vrot.slane %v886, 1
        %v888 = vadd.f32 %v886, %v887
        %v889 = vadd.f32 %v659, %v665
        %v890 = vadd.f32 %v889, %v671
        %v891 = vadd.f32 %v890, %v677
        %v892 = vrot.slane %v891, 4
        %v893 = vadd.f32 %v891, %v892
        %v894 = vrot.slane %v893, 2
        %v895 = vadd.f32 %v893, %v894
        %v896 = vrot.slane %v895, 1
        %v897 = vadd.f32 %v895, %v896
        %v898 = vadd.f32 %v660, %v666
        %v899 = vadd.f32 %v898, %v672
        %v900 = vadd.f32 %v899, %v678
        %v901 = vrot.slane %v900, 4
        %v902 = vadd.f32 %v900, %v901
        %v903 = vrot.slane %v902, 2
        %v904 = vadd.f32 %v902, %v903
        %v905 = vrot.slane %v904, 1
        %v906 = vadd.f32 %v904, %v905
        %v907 = vadd.f32 %v679, %v685
        %v908 = vadd.f32 %v907, %v691
        %v909 = vadd.f32 %v908, %v697
        %v910 = vrot.slane %v909, 4
        %v911 = vadd.f32 %v909, %v910
        %v912 = vrot.slane %v911, 2
        %v913 = vadd.f32 %v911, %v912
        %v914 = vrot.slane %v913, 1
        %v915 = vadd.f32 %v913, %v914
        %v916 = vadd.f32 %v680, %v686
        %v917 = vadd.f32 %v916, %v692
        %v918 = vadd.f32 %v917, %v698
        %v919 = vrot.slane %v918, 4
        %v920 = vadd.f32 %v918, %v919
        %v921 = vrot.slane %v920, 2
        %v922 = vadd.f32 %v920, %v921
        %v923 = vrot.slane %v922, 1
        %v924 = vadd.f32 %v922, %v923
        %v925 = vadd.f32 %v681, %v687
        %v926 = vadd.f32 %v925, %v693
        %v927 = vadd.f32 %v926, %v699
        %v928 = vrot.slane %v927, 4
        %v929 = vadd.f32 %v927, %v928
        %v930 = vrot.slane %v929, 2
        %v931 = vadd.f32 %v929, %v930
        %v932 = vrot.slane %v931, 1
        %v933 = vadd.f32 %v931, %v932
        %v934 = vadd.f32 %v682, %v688
        %v935 = vadd.f32 %v934, %v694
        %v936 = vadd.f32 %v935, %v700
        %v937 = vrot.slane %v936, 4
        %v938 = vadd.f32 %v936, %v937
        %v939 = vrot.slane %v938, 2
        %v940 = vadd.f32 %v938, %v939
        %v941 = vrot.slane %v940, 1
        %v942 = vadd.f32 %v940, %v941
        %v943 = vadd.f32 %v683, %v689
        %v944 = vadd.f32 %v943, %v695
        %v945 = vadd.f32 %v944, %v701
        %v946 = vrot.slane %v945, 4
        %v947 = vadd.f32 %v945, %v946
        %v948 = vrot.slane %v947, 2
        %v949 = vadd.f32 %v947, %v948
        %v950 = vrot.slane %v949, 1
        %v951 = vadd.f32 %v949, %v950
        %v952 = vadd.f32 %v684, %v690
        %v953 = vadd.f32 %v952, %v696
        %v954 = vadd.f32 %v953, %v702
        %v955 = vrot.slane %v954, 4
        %v956 = vadd.f32 %v954, %v955
        %v957 = vrot.slane %v956, 2
        %v958 = vadd.f32 %v956, %v957
        %v959 = vrot.slane %v958, 1
        %v960 = vadd.f32 %v958, %v959
        %v961 = vadd.f32 %v703, %v709
        %v962 = vadd.f32 %v961, %v715
        %v963 = vadd.f32 %v962, %v721
        %v964 = vrot.slane %v963, 4
        %v965 = vadd.f32 %v963, %v964
        %v966 = vrot.slane %v965, 2
        %v967 = vadd.f32 %v965, %v966
        %v968 = vrot.slane %v967, 1
        %v969 = vadd.f32 %v967, %v968
        %v970 = vadd.f32 %v704, %v710
        %v971 = vadd.f32 %v970, %v716
        %v972 = vadd.f32 %v971, %v722
        %v973 = vrot.slane %v972, 4
        %v974 = vadd.f32 %v972, %v973
        %v975 = vrot.slane %v974, 2
        %v976 = vadd.f32 %v974, %v975
        %v977 = vrot.slane %v976, 1
        %v978 = vadd.f32 %v976, %v977
        %v979 = vadd.f32 %v705, %v711
        %v980 = vadd.f32 %v979, %v717
        %v981 = vadd.f32 %v980, %v723
        %v982 = vrot.slane %v981, 4
        %v983 = vadd.f32 %v981, %v982
        %v984 = vrot.slane %v983, 2
        %v985 = vadd.f32 %v983, %v984
        %v986 = vrot.slane %v985, 1
        %v987 = vadd.f32 %v985, %v986
        %v988 = vadd.f32 %v706, %v712
        %v989 = vadd.f32 %v988, %v718
        %v990 = vadd.f32 %v989, %v724
        %v991 = vrot.slane %v990, 4
        %v992 = vadd.f32 %v990, %v991
        %v993 = vrot.slane %v992, 2
        %v994 = vadd.f32 %v992, %v993
        %v995 = vrot.slane %v994, 1
        %v996 = vadd.f32 %v994, %v995
        %v997 = vadd.f32 %v707, %v713
        %v998 = vadd.f32 %v997, %v719
        %v999 = vadd.f32 %v998, %v725
        %v1000 = vrot.slane %v999, 4
        %v1001 = vadd.f32 %v999, %v1000
        %v1002 = vrot.slane %v1001, 2
        %v1003 = vadd.f32 %v1001, %v1002
        %v1004 = vrot.slane %v1003, 1
        %v1005 = vadd.f32 %v1003, %v1004
        %v1006 = vadd.f32 %v708, %v714
        %v1007 = vadd.f32 %v1006, %v720
        %v1008 = vadd.f32 %v1007, %v726
        %v1009 = vrot.slane %v1008, 4
        %v1010 = vadd.f32 %v1008, %v1009
        %v1011 = vrot.slane %v1010, 2
        %v1012 = vadd.f32 %v1010, %v1011
        %v1013 = vrot.slane %v1012, 1
        %v1014 = vadd.f32 %v1012, %v1013
        %v1015 = vadd.f32 %v727, %v733
        %v1016 = vadd.f32 %v1015, %v739
        %v1017 = vadd.f32 %v1016, %v745
        %v1018 = vrot.slane %v1017, 4
        %v1019 = vadd.f32 %v1017, %v1018
        %v1020 = vrot.slane %v1019, 2
        %v1021 = vadd.f32 %v1019, %v1020
        %v1022 = vrot.slane %v1021, 1
        %v1023 = vadd.f32 %v1021, %v1022
        %v1024 = vadd.f32 %v728, %v734
        %v1025 = vadd.f32 %v1024, %v740
        %v1026 = vadd.f32 %v1025, %v746
        %v1027 = vrot.slane %v1026, 4
        %v1028 = vadd.f32 %v1026, %v1027
        %v1029 = vrot.slane %v1028, 2
        %v1030 = vadd.f32 %v1028, %v1029
        %v1031 = vrot.slane %v1030, 1
        %v1032 = vadd.f32 %v1030, %v1031
        %v1033 = vadd.f32 %v729, %v735
        %v1034 = vadd.f32 %v1033, %v741
        %v1035 = vadd.f32 %v1034, %v747
        %v1036 = vrot.slane %v1035, 4
        %v1037 = vadd.f32 %v1035, %v1036
        %v1038 = vrot.slane %v1037, 2
        %v1039 = vadd.f32 %v1037, %v1038
        %v1040 = vrot.slane %v1039, 1
        %v1041 = vadd.f32 %v1039, %v1040
        %v1042 = vadd.f32 %v730, %v736
        %v1043 = vadd.f32 %v1042, %v742
        %v1044 = vadd.f32 %v1043, %v748
        %v1045 = vrot.slane %v1044, 4
        %v1046 = vadd.f32 %v1044, %v1045
        %v1047 = vrot.slane %v1046, 2
        %v1048 = vadd.f32 %v1046, %v1047
        %v1049 = vrot.slane %v1048, 1
        %v1050 = vadd.f32 %v1048, %v1049
        %v1051 = vadd.f32 %v731, %v737
        %v1052 = vadd.f32 %v1051, %v743
        %v1053 = vadd.f32 %v1052, %v749
        %v1054 = vrot.slane %v1053, 4
        %v1055 = vadd.f32 %v1053, %v1054
        %v1056 = vrot.slane %v1055, 2
        %v1057 = vadd.f32 %v1055, %v1056
        %v1058 = vrot.slane %v1057, 1
        %v1059 = vadd.f32 %v1057, %v1058
        %v1060 = vadd.f32 %v732, %v738
        %v1061 = vadd.f32 %v1060, %v744
        %v1062 = vadd.f32 %v1061, %v750
        %v1063 = vrot.slane %v1062, 4
        %v1064 = vadd.f32 %v1062, %v1063
        %v1065 = vrot.slane %v1064, 2
        %v1066 = vadd.f32 %v1064, %v1065
        %v1067 = vrot.slane %v1066, 1
        %v1068 = vadd.f32 %v1066, %v1067
        %v1069 = vadd.f32 %v751, %v757
        %v1070 = vadd.f32 %v1069, %v763
        %v1071 = vadd.f32 %v1070, %v769
        %v1072 = vrot.slane %v1071, 4
        %v1073 = vadd.f32 %v1071, %v1072
        %v1074 = vrot.slane %v1073, 2
        %v1075 = vadd.f32 %v1073, %v1074
        %v1076 = vrot.slane %v1075, 1
        %v1077 = vadd.f32 %v1075, %v1076
        %v1078 = vadd.f32 %v752, %v758
        %v1079 = vadd.f32 %v1078, %v764
        %v1080 = vadd.f32 %v1079, %v770
        %v1081 = vrot.slane %v1080, 4
        %v1082 = vadd.f32 %v1080, %v1081
        %v1083 = vrot.slane %v1082, 2
        %v1084 = vadd.f32 %v1082, %v1083
        %v1085 = vrot.slane %v1084, 1
        %v1086 = vadd.f32 %v1084, %v1085
        %v1087 = vadd.f32 %v753, %v759
        %v1088 = vadd.f32 %v1087, %v765
        %v1089 = vadd.f32 %v1088, %v771
        %v1090 = vrot.slane %v1089, 4
        %v1091 = vadd.f32 %v1089, %v1090
        %v1092 = vrot.slane %v1091, 2
        %v1093 = vadd.f32 %v1091, %v1092
        %v1094 = vrot.slane %v1093, 1
        %v1095 = vadd.f32 %v1093, %v1094
        %v1096 = vadd.f32 %v754, %v760
        %v1097 = vadd.f32 %v1096, %v766
        %v1098 = vadd.f32 %v1097, %v772
        %v1099 = vrot.slane %v1098, 4
        %v1100 = vadd.f32 %v1098, %v1099
        %v1101 = vrot.slane %v1100, 2
        %v1102 = vadd.f32 %v1100, %v1101
        %v1103 = vrot.slane %v1102, 1
        %v1104 = vadd.f32 %v1102, %v1103
        %v1105 = vadd.f32 %v755, %v761
        %v1106 = vadd.f32 %v1105, %v767
        %v1107 = vadd.f32 %v1106, %v773
        %v1108 = vrot.slane %v1107, 4
        %v1109 = vadd.f32 %v1107, %v1108
        %v1110 = vrot.slane %v1109, 2
        %v1111 = vadd.f32 %v1109, %v1110
        %v1112 = vrot.slane %v1111, 1
        %v1113 = vadd.f32 %v1111, %v1112
        %v1114 = vadd.f32 %v756, %v762
        %v1115 = vadd.f32 %v1114, %v768
        %v1116 = vadd.f32 %v1115, %v774
        %v1117 = vrot.slane %v1116, 4
        %v1118 = vadd.f32 %v1116, %v1117
        %v1119 = vrot.slane %v1118, 2
        %v1120 = vadd.f32 %v1118, %v1119
        %v1121 = vrot.slane %v1120, 1
        %v1122 = vadd.f32 %v1120, %v1121
        %v1123 = vadd.f32 %v775, %v781
        %v1124 = vadd.f32 %v1123, %v787
        %v1125 = vadd.f32 %v1124, %v793
        %v1126 = vrot.slane %v1125, 4
        %v1127 = vadd.f32 %v1125, %v1126
        %v1128 = vrot.slane %v1127, 2
        %v1129 = vadd.f32 %v1127, %v1128
        %v1130 = vrot.slane %v1129, 1
        %v1131 = vadd.f32 %v1129, %v1130
        %v1132 = vadd.f32 %v776, %v782
        %v1133 = vadd.f32 %v1132, %v788
        %v1134 = vadd.f32 %v1133, %v794
        %v1135 = vrot.slane %v1134, 4
        %v1136 = vadd.f32 %v1134, %v1135
        %v1137 = vrot.slane %v1136, 2
        %v1138 = vadd.f32 %v1136, %v1137
        %v1139 = vrot.slane %v1138, 1
        %v1140 = vadd.f32 %v1138, %v1139
        %v1141 = vadd.f32 %v777, %v783
        %v1142 = vadd.f32 %v1141, %v789
        %v1143 = vadd.f32 %v1142, %v795
        %v1144 = vrot.slane %v1143, 4
        %v1145 = vadd.f32 %v1143, %v1144
        %v1146 = vrot.slane %v1145, 2
        %v1147 = vadd.f32 %v1145, %v1146
        %v1148 = vrot.slane %v1147, 1
        %v1149 = vadd.f32 %v1147, %v1148
        %v1150 = vadd.f32 %v778, %v784
        %v1151 = vadd.f32 %v1150, %v790
        %v1152 = vadd.f32 %v1151, %v796
        %v1153 = vrot.slane %v1152, 4
        %v1154 = vadd.f32 %v1152, %v1153
        %v1155 = vrot.slane %v1154, 2
        %v1156 = vadd.f32 %v1154, %v1155
        %v1157 = vrot.slane %v1156, 1
        %v1158 = vadd.f32 %v1156, %v1157
        %v1159 = vadd.f32 %v779, %v785
        %v1160 = vadd.f32 %v1159, %v791
        %v1161 = vadd.f32 %v1160, %v797
        %v1162 = vrot.slane %v1161, 4
        %v1163 = vadd.f32 %v1161, %v1162
        %v1164 = vrot.slane %v1163, 2
        %v1165 = vadd.f32 %v1163, %v1164
        %v1166 = vrot.slane %v1165, 1
        %v1167 = vadd.f32 %v1165, %v1166
        %v1168 = vadd.f32 %v780, %v786
        %v1169 = vadd.f32 %v1168, %v792
        %v1170 = vadd.f32 %v1169, %v798
        %v1171 = vrot.slane %v1170, 4
        %v1172 = vadd.f32 %v1170, %v1171
        %v1173 = vrot.slane %v1172, 2
        %v1174 = vadd.f32 %v1172, %v1173
        %v1175 = vrot.slane %v1174, 1
        %v1176 = vadd.f32 %v1174, %v1175
        %v1177 = vadd.f32 %v799, %v805
        %v1178 = vadd.f32 %v1177, %v811
        %v1179 = vadd.f32 %v1178, %v817
        %v1180 = vrot.slane %v1179, 4
        %v1181 = vadd.f32 %v1179, %v1180
        %v1182 = vrot.slane %v1181, 2
        %v1183 = vadd.f32 %v1181, %v1182
        %v1184 = vrot.slane %v1183, 1
        %v1185 = vadd.f32 %v1183, %v1184
        %v1186 = vadd.f32 %v800, %v806
        %v1187 = vadd.f32 %v1186, %v812
        %v1188 = vadd.f32 %v1187, %v818
        %v1189 = vrot.slane %v1188, 4
        %v1190 = vadd.f32 %v1188, %v1189
        %v1191 = vrot.slane %v1190, 2
        %v1192 = vadd.f32 %v1190, %v1191
        %v1193 = vrot.slane %v1192, 1
        %v1194 = vadd.f32 %v1192, %v1193
        %v1195 = vadd.f32 %v801, %v807
        %v1196 = vadd.f32 %v1195, %v813
        %v1197 = vadd.f32 %v1196, %v819
        %v1198 = vrot.slane %v1197, 4
        %v1199 = vadd.f32 %v1197, %v1198
        %v1200 = vrot.slane %v1199, 2
        %v1201 = vadd.f32 %v1199, %v1200
        %v1202 = vrot.slane %v1201, 1
        %v1203 = vadd.f32 %v1201, %v1202
        %v1204 = vadd.f32 %v802, %v808
        %v1205 = vadd.f32 %v1204, %v814
        %v1206 = vadd.f32 %v1205, %v820
        %v1207 = vrot.slane %v1206, 4
        %v1208 = vadd.f32 %v1206, %v1207
        %v1209 = vrot.slane %v1208, 2
        %v1210 = vadd.f32 %v1208, %v1209
        %v1211 = vrot.slane %v1210, 1
        %v1212 = vadd.f32 %v1210, %v1211
        %v1213 = vadd.f32 %v803, %v809
        %v1214 = vadd.f32 %v1213, %v815
        %v1215 = vadd.f32 %v1214, %v821
        %v1216 = vrot.slane %v1215, 4
        %v1217 = vadd.f32 %v1215, %v1216
        %v1218 = vrot.slane %v1217, 2
        %v1219 = vadd.f32 %v1217, %v1218
        %v1220 = vrot.slane %v1219, 1
        %v1221 = vadd.f32 %v1219, %v1220
        %v1222 = vadd.f32 %v804, %v810
        %v1223 = vadd.f32 %v1222, %v816
        %v1224 = vadd.f32 %v1223, %v822
        %v1225 = vrot.slane %v1224, 4
        %v1226 = vadd.f32 %v1224, %v1225
        %v1227 = vrot.slane %v1226, 2
        %v1228 = vadd.f32 %v1226, %v1227
        %v1229 = vrot.slane %v1228, 1
        %v1230 = vadd.f32 %v1228, %v1229
        %v1231 = vadd.f32 %v823, %v829
        %v1232 = vadd.f32 %v1231, %v835
        %v1233 = vadd.f32 %v1232, %v841
        %v1234 = vrot.slane %v1233, 4
        %v1235 = vadd.f32 %v1233, %v1234
        %v1236 = vrot.slane %v1235, 2
        %v1237 = vadd.f32 %v1235, %v1236
        %v1238 = vrot.slane %v1237, 1
        %v1239 = vadd.f32 %v1237, %v1238
        %v1240 = vadd.f32 %v824, %v830
        %v1241 = vadd.f32 %v1240, %v836
        %v1242 = vadd.f32 %v1241, %v842
        %v1243 = vrot.slane %v1242, 4
        %v1244 = vadd.f32 %v1242, %v1243
        %v1245 = vrot.slane %v1244, 2
        %v1246 = vadd.f32 %v1244, %v1245
        %v1247 = vrot.slane %v1246, 1
        %v1248 = vadd.f32 %v1246, %v1247
        %v1249 = vadd.f32 %v825, %v831
        %v1250 = vadd.f32 %v1249, %v837
        %v1251 = vadd.f32 %v1250, %v843
        %v1252 = vrot.slane %v1251, 4
        %v1253 = vadd.f32 %v1251, %v1252
        %v1254 = vrot.slane %v1253, 2
        %v1255 = vadd.f32 %v1253, %v1254
        %v1256 = vrot.slane %v1255, 1
        %v1257 = vadd.f32 %v1255, %v1256
        %v1258 = vadd.f32 %v826, %v832
        %v1259 = vadd.f32 %v1258, %v838
        %v1260 = vadd.f32 %v1259, %v844
        %v1261 = vrot.slane %v1260, 4
        %v1262 = vadd.f32 %v1260, %v1261
        %v1263 = vrot.slane %v1262, 2
        %v1264 = vadd.f32 %v1262, %v1263
        %v1265 = vrot.slane %v1264, 1
        %v1266 = vadd.f32 %v1264, %v1265
        %v1267 = vadd.f32 %v827, %v833
        %v1268 = vadd.f32 %v1267, %v839
        %v1269 = vadd.f32 %v1268, %v845
        %v1270 = vrot.slane %v1269, 4
        %v1271 = vadd.f32 %v1269, %v1270
        %v1272 = vrot.slane %v1271, 2
        %v1273 = vadd.f32 %v1271, %v1272
        %v1274 = vrot.slane %v1273, 1
        %v1275 = vadd.f32 %v1273, %v1274
        %v1276 = vadd.f32 %v828, %v834
        %v1277 = vadd.f32 %v1276, %v840
        %v1278 = vadd.f32 %v1277, %v846
        %v1279 = vrot.slane %v1278, 4
        %v1280 = vadd.f32 %v1278, %v1279
        %v1281 = vrot.slane %v1280, 2
        %v1282 = vadd.f32 %v1280, %v1281
        %v1283 = vrot.slane %v1282, 1
        %v1284 = vadd.f32 %v1282, %v1283
        %vm1333 = vcmask 1041409
        %v1334 = vsel %vm1333, %v915, %v861
        %vm1335 = vcmask 1042434
        %v1336 = vsel %vm1335, %v969, %v1334
        %vm1337 = vcmask 1043459
        %v1338 = vsel %vm1337, %v1023, %v1336
        %vm1339 = vcmask 1044484
        %v1340 = vsel %vm1339, %v1077, %v1338
        %vm1341 = vcmask 1045509
        %v1342 = vsel %vm1341, %v1131, %v1340
        %vm1343 = vcmask 1046534
        %v1344 = vsel %vm1343, %v1185, %v1342
        %vm1345 = vcmask 1047559
        %v1346 = vsel %vm1345, %v1239, %v1344
        %v1347 = vsel %vm1333, %v924, %v870
        %v1348 = vsel %vm1335, %v978, %v1347
        %v1349 = vsel %vm1337, %v1032, %v1348
        %v1350 = vsel %vm1339, %v1086, %v1349
        %v1351 = vsel %vm1341, %v1140, %v1350
        %v1352 = vsel %vm1343, %v1194, %v1351
        %v1353 = vsel %vm1345, %v1248, %v1352
        %v1354 = vsel %vm1333, %v933, %v879
        %v1355 = vsel %vm1335, %v987, %v1354
        %v1356 = vsel %vm1337, %v1041, %v1355
        %v1357 = vsel %vm1339, %v1095, %v1356
        %v1358 = vsel %vm1341, %v1149, %v1357
        %v1359 = vsel %vm1343, %v1203, %v1358
        %v1360 = vsel %vm1345, %v1257, %v1359
        %v1361 = vsel %vm1333, %v942, %v888
        %v1362 = vsel %vm1335, %v996, %v1361
        %v1363 = vsel %vm1337, %v1050, %v1362
        %v1364 = vsel %vm1339, %v1104, %v1363
        %v1365 = vsel %vm1341, %v1158, %v1364
        %v1366 = vsel %vm1343, %v1212, %v1365
        %v1367 = vsel %vm1345, %v1266, %v1366
        %v1368 = vsel %vm1333, %v951, %v897
        %v1369 = vsel %vm1335, %v1005, %v1368
        %v1370 = vsel %vm1337, %v1059, %v1369
        %v1371 = vsel %vm1339, %v1113, %v1370
        %v1372 = vsel %vm1341, %v1167, %v1371
        %v1373 = vsel %vm1343, %v1221, %v1372
        %v1374 = vsel %vm1345, %v1275, %v1373
        %v1375 = vsel %vm1333, %v960, %v906
        %v1376 = vsel %vm1335, %v1014, %v1375
        %v1377 = vsel %vm1337, %v1068, %v1376
        %v1378 = vsel %vm1339, %v1122, %v1377
        %v1379 = vsel %vm1341, %v1176, %v1378
        %v1380 = vsel %vm1343, %v1230, %v1379
        %v1381 = vsel %vm1345, %v1284, %v1380
        %v1388 = vadd.f32 %v847, %v1346
        %v1389 = vadd.f32 %v848, %v1353
        %v1390 = vadd.f32 %v849, %v1360
        %v1391 = vadd.f32 %v850, %v1367
        %v1392 = vadd.f32 %v851, %v1374
        %v1393 = vadd.f32 %v852, %v1381
        %1394 = vst [vmem:[#allocation2] sm:$0xff] %v1388
        %1395 = vst [vmem:[#allocation2 + $0x8] sm:$0xff] %v1389
        %1396 = vst [vmem:[#allocation2 + $0x10] sm:$0xff] %v1390
        %1397 = vst [vmem:[#allocation2 + $0x18] sm:$0xff] %v1391
        %1398 = vst [vmem:[#allocation2 + $0x20] sm:$0xff] %v1392
        %1399 = vst [vmem:[#allocation2 + $0x28] sm:$0xff] %v1393
        %p1400 = scmp.eq.s32.totalorder %s21, 1
        // Predicated region
        $region68: #{vssm_two_heads_forward.1} parent=58 // pred_check
          %p1401 = pneg %p1400
        $region69: #{vssm_two_heads_forward.1} parent=58 // pred_check_branch
          %1403 = sbr.rel (%p1401) target = $region71
        $region70: #{vssm_two_heads_forward.1} parent=58 // pred_region
          %v1404 = vld [vmem:[#allocation2] sm:$0xff]
          %v1405 = vld [vmem:[#allocation2 + $0x8] sm:$0xff]
          %v1406 = vld [vmem:[#allocation2 + $0x10] sm:$0xff]
          %v1407 = vld [vmem:[#allocation2 + $0x18] sm:$0xff]
          %v1408 = vld [vmem:[#allocation2 + $0x20] sm:$0xff]
          %v1409 = vld [vmem:[#allocation2 + $0x28] sm:$0xff]
          %v1410 = vmul.f32 %v1404, 0.015625
          %v1411 = vmul.f32 %v1405, 0.015625
          %v1412 = vmul.f32 %v1406, 0.015625
          %v1413 = vmul.f32 %v1407, 0.015625
          %v1414 = vmul.f32 %v1408, 0.015625
          %v1415 = vmul.f32 %v1409, 0.015625
          %v1416 = vld [vmem:[%s1] sm:$0xff]
          %v1417 = vld [vmem:[%s1 + $0x8] sm:$0xff]
          %v1418 = vld [vmem:[%s1 + $0x10] sm:$0xff]
          %v1419 = vld [vmem:[%s1 + $0x18] sm:$0xff]
          %v1420 = vld [vmem:[%s1 + $0x20] sm:$0xff]
          %v1421 = vld [vmem:[%s1 + $0x28] sm:$0xff]
          %v1422 = vld [vmem:[%s1 + $0x30] sm:$0xff]
          %v1423 = vld [vmem:[%s1 + $0x38] sm:$0xff]
          %v1424 = vld [vmem:[%s1 + $0x40] sm:$0xff]
          %v1425 = vld [vmem:[%s1 + $0x48] sm:$0xff]
          %v1426 = vld [vmem:[%s1 + $0x50] sm:$0xff]
          %v1427 = vld [vmem:[%s1 + $0x58] sm:$0xff]
          %v1428 = vld [vmem:[%s1 + $0x60] sm:$0xff]
          %v1429 = vld [vmem:[%s1 + $0x68] sm:$0xff]
          %v1430 = vld [vmem:[%s1 + $0x70] sm:$0xff]
          %v1431 = vld [vmem:[%s1 + $0x78] sm:$0xff]
          %v1432 = vld [vmem:[%s1 + $0x80] sm:$0xff]
          %v1433 = vld [vmem:[%s1 + $0x88] sm:$0xff]
          %v1434 = vld [vmem:[%s1 + $0x90] sm:$0xff]
          %v1435 = vld [vmem:[%s1 + $0x98] sm:$0xff]
          %v1436 = vld [vmem:[%s1 + $0xa0] sm:$0xff]
          %v1437 = vld [vmem:[%s1 + $0xa8] sm:$0xff]
          %v1438 = vld [vmem:[%s1 + $0xb0] sm:$0xff]
          %v1439 = vld [vmem:[%s1 + $0xb8] sm:$0xff]
          %v1440 = vld [vmem:[%s1 + $0xc0] sm:$0xff]
          %v1441 = vld [vmem:[%s1 + $0xc8] sm:$0xff]
          %v1442 = vld [vmem:[%s1 + $0xd0] sm:$0xff]
          %v1443 = vld [vmem:[%s1 + $0xd8] sm:$0xff]
          %v1444 = vld [vmem:[%s1 + $0xe0] sm:$0xff]
          %v1445 = vld [vmem:[%s1 + $0xe8] sm:$0xff]
          %v1446 = vld [vmem:[%s1 + $0xf0] sm:$0xff]
          %v1447 = vld [vmem:[%s1 + $0xf8] sm:$0xff]
          %v1448 = vld [vmem:[%s1 + $0x100] sm:$0xff]
          %v1449 = vld [vmem:[%s1 + $0x108] sm:$0xff]
          %v1450 = vld [vmem:[%s1 + $0x110] sm:$0xff]
          %v1451 = vld [vmem:[%s1 + $0x118] sm:$0xff]
          %v1452 = vld [vmem:[%s1 + $0x120] sm:$0xff]
          %v1453 = vld [vmem:[%s1 + $0x128] sm:$0xff]
          %v1454 = vld [vmem:[%s1 + $0x130] sm:$0xff]
          %v1455 = vld [vmem:[%s1 + $0x138] sm:$0xff]
          %v1456 = vld [vmem:[%s1 + $0x140] sm:$0xff]
          %v1457 = vld [vmem:[%s1 + $0x148] sm:$0xff]
          %v1458 = vld [vmem:[%s1 + $0x150] sm:$0xff]
          %v1459 = vld [vmem:[%s1 + $0x158] sm:$0xff]
          %v1460 = vld [vmem:[%s1 + $0x160] sm:$0xff]
          %v1461 = vld [vmem:[%s1 + $0x168] sm:$0xff]
          %v1462 = vld [vmem:[%s1 + $0x170] sm:$0xff]
          %v1463 = vld [vmem:[%s1 + $0x178] sm:$0xff]
          %v1464 = vld [vmem:[%s1 + $0x180] sm:$0xff]
          %v1465 = vld [vmem:[%s1 + $0x188] sm:$0xff]
          %v1466 = vld [vmem:[%s1 + $0x190] sm:$0xff]
          %v1467 = vld [vmem:[%s1 + $0x198] sm:$0xff]
          %v1468 = vld [vmem:[%s1 + $0x1a0] sm:$0xff]
          %v1469 = vld [vmem:[%s1 + $0x1a8] sm:$0xff]
          %v1470 = vld [vmem:[%s1 + $0x1b0] sm:$0xff]
          %v1471 = vld [vmem:[%s1 + $0x1b8] sm:$0xff]
          %v1472 = vld [vmem:[%s1 + $0x1c0] sm:$0xff]
          %v1473 = vld [vmem:[%s1 + $0x1c8] sm:$0xff]
          %v1474 = vld [vmem:[%s1 + $0x1d0] sm:$0xff]
          %v1475 = vld [vmem:[%s1 + $0x1d8] sm:$0xff]
          %v1476 = vld [vmem:[%s1 + $0x1e0] sm:$0xff]
          %v1477 = vld [vmem:[%s1 + $0x1e8] sm:$0xff]
          %v1478 = vld [vmem:[%s1 + $0x1f0] sm:$0xff]
          %v1479 = vld [vmem:[%s1 + $0x1f8] sm:$0xff]
          %v1480 = vld [vmem:[%s1 + $0x200] sm:$0xff]
          %v1481 = vld [vmem:[%s1 + $0x208] sm:$0xff]
          %v1482 = vld [vmem:[%s1 + $0x210] sm:$0xff]
          %v1483 = vld [vmem:[%s1 + $0x218] sm:$0xff]
          %v1484 = vld [vmem:[%s1 + $0x220] sm:$0xff]
          %v1485 = vld [vmem:[%s1 + $0x228] sm:$0xff]
          %v1486 = vld [vmem:[%s1 + $0x230] sm:$0xff]
          %v1487 = vld [vmem:[%s1 + $0x238] sm:$0xff]
          %v1488 = vld [vmem:[%s1 + $0x240] sm:$0xff]
          %v1489 = vld [vmem:[%s1 + $0x248] sm:$0xff]
          %v1490 = vld [vmem:[%s1 + $0x250] sm:$0xff]
          %v1491 = vld [vmem:[%s1 + $0x258] sm:$0xff]
          %v1492 = vld [vmem:[%s1 + $0x260] sm:$0xff]
          %v1493 = vld [vmem:[%s1 + $0x268] sm:$0xff]
          %v1494 = vld [vmem:[%s1 + $0x270] sm:$0xff]
          %v1495 = vld [vmem:[%s1 + $0x278] sm:$0xff]
          %v1496 = vld [vmem:[%s1 + $0x280] sm:$0xff]
          %v1497 = vld [vmem:[%s1 + $0x288] sm:$0xff]
          %v1498 = vld [vmem:[%s1 + $0x290] sm:$0xff]
          %v1499 = vld [vmem:[%s1 + $0x298] sm:$0xff]
          %v1500 = vld [vmem:[%s1 + $0x2a0] sm:$0xff]
          %v1501 = vld [vmem:[%s1 + $0x2a8] sm:$0xff]
          %v1502 = vld [vmem:[%s1 + $0x2b0] sm:$0xff]
          %v1503 = vld [vmem:[%s1 + $0x2b8] sm:$0xff]
          %v1504 = vld [vmem:[%s1 + $0x2c0] sm:$0xff]
          %v1505 = vld [vmem:[%s1 + $0x2c8] sm:$0xff]
          %v1506 = vld [vmem:[%s1 + $0x2d0] sm:$0xff]
          %v1507 = vld [vmem:[%s1 + $0x2d8] sm:$0xff]
          %v1508 = vld [vmem:[%s1 + $0x2e0] sm:$0xff]
          %v1509 = vld [vmem:[%s1 + $0x2e8] sm:$0xff]
          %v1510 = vld [vmem:[%s1 + $0x2f0] sm:$0xff]
          %v1511 = vld [vmem:[%s1 + $0x2f8] sm:$0xff]
          %v1512 = vld [vmem:[%s1 + $0x300] sm:$0xff]
          %v1513 = vld [vmem:[%s1 + $0x308] sm:$0xff]
          %v1514 = vld [vmem:[%s1 + $0x310] sm:$0xff]
          %v1515 = vld [vmem:[%s1 + $0x318] sm:$0xff]
          %v1516 = vld [vmem:[%s1 + $0x320] sm:$0xff]
          %v1517 = vld [vmem:[%s1 + $0x328] sm:$0xff]
          %v1518 = vld [vmem:[%s1 + $0x330] sm:$0xff]
          %v1519 = vld [vmem:[%s1 + $0x338] sm:$0xff]
          %v1520 = vld [vmem:[%s1 + $0x340] sm:$0xff]
          %v1521 = vld [vmem:[%s1 + $0x348] sm:$0xff]
          %v1522 = vld [vmem:[%s1 + $0x350] sm:$0xff]
          %v1523 = vld [vmem:[%s1 + $0x358] sm:$0xff]
          %v1524 = vld [vmem:[%s1 + $0x360] sm:$0xff]
          %v1525 = vld [vmem:[%s1 + $0x368] sm:$0xff]
          %v1526 = vld [vmem:[%s1 + $0x370] sm:$0xff]
          %v1527 = vld [vmem:[%s1 + $0x378] sm:$0xff]
          %v1528 = vld [vmem:[%s1 + $0x380] sm:$0xff]
          %v1529 = vld [vmem:[%s1 + $0x388] sm:$0xff]
          %v1530 = vld [vmem:[%s1 + $0x390] sm:$0xff]
          %v1531 = vld [vmem:[%s1 + $0x398] sm:$0xff]
          %v1532 = vld [vmem:[%s1 + $0x3a0] sm:$0xff]
          %v1533 = vld [vmem:[%s1 + $0x3a8] sm:$0xff]
          %v1534 = vld [vmem:[%s1 + $0x3b0] sm:$0xff]
          %v1535 = vld [vmem:[%s1 + $0x3b8] sm:$0xff]
          %v1536 = vld [vmem:[%s1 + $0x3c0] sm:$0xff]
          %v1537 = vld [vmem:[%s1 + $0x3c8] sm:$0xff]
          %v1538 = vld [vmem:[%s1 + $0x3d0] sm:$0xff]
          %v1539 = vld [vmem:[%s1 + $0x3d8] sm:$0xff]
          %v1540 = vld [vmem:[%s1 + $0x3e0] sm:$0xff]
          %v1541 = vld [vmem:[%s1 + $0x3e8] sm:$0xff]
          %v1542 = vld [vmem:[%s1 + $0x3f0] sm:$0xff]
          %v1543 = vld [vmem:[%s1 + $0x3f8] sm:$0xff]
          %v1544 = vld [vmem:[%s1 + $0x400] sm:$0xff]
          %v1545 = vld [vmem:[%s1 + $0x408] sm:$0xff]
          %v1546 = vld [vmem:[%s1 + $0x410] sm:$0xff]
          %v1547 = vld [vmem:[%s1 + $0x418] sm:$0xff]
          %v1548 = vld [vmem:[%s1 + $0x420] sm:$0xff]
          %v1549 = vld [vmem:[%s1 + $0x428] sm:$0xff]
          %v1550 = vld [vmem:[%s1 + $0x430] sm:$0xff]
          %v1551 = vld [vmem:[%s1 + $0x438] sm:$0xff]
          %v1552 = vld [vmem:[%s1 + $0x440] sm:$0xff]
          %v1553 = vld [vmem:[%s1 + $0x448] sm:$0xff]
          %v1554 = vld [vmem:[%s1 + $0x450] sm:$0xff]
          %v1555 = vld [vmem:[%s1 + $0x458] sm:$0xff]
          %v1556 = vld [vmem:[%s1 + $0x460] sm:$0xff]
          %v1557 = vld [vmem:[%s1 + $0x468] sm:$0xff]
          %v1558 = vld [vmem:[%s1 + $0x470] sm:$0xff]
          %v1559 = vld [vmem:[%s1 + $0x478] sm:$0xff]
          %v1560 = vld [vmem:[%s1 + $0x480] sm:$0xff]
          %v1561 = vld [vmem:[%s1 + $0x488] sm:$0xff]
          %v1562 = vld [vmem:[%s1 + $0x490] sm:$0xff]
          %v1563 = vld [vmem:[%s1 + $0x498] sm:$0xff]
          %v1564 = vld [vmem:[%s1 + $0x4a0] sm:$0xff]
          %v1565 = vld [vmem:[%s1 + $0x4a8] sm:$0xff]
          %v1566 = vld [vmem:[%s1 + $0x4b0] sm:$0xff]
          %v1567 = vld [vmem:[%s1 + $0x4b8] sm:$0xff]
          %v1568 = vld [vmem:[%s1 + $0x4c0] sm:$0xff]
          %v1569 = vld [vmem:[%s1 + $0x4c8] sm:$0xff]
          %v1570 = vld [vmem:[%s1 + $0x4d0] sm:$0xff]
          %v1571 = vld [vmem:[%s1 + $0x4d8] sm:$0xff]
          %v1572 = vld [vmem:[%s1 + $0x4e0] sm:$0xff]
          %v1573 = vld [vmem:[%s1 + $0x4e8] sm:$0xff]
          %v1574 = vld [vmem:[%s1 + $0x4f0] sm:$0xff]
          %v1575 = vld [vmem:[%s1 + $0x4f8] sm:$0xff]
          %v1576 = vld [vmem:[%s1 + $0x500] sm:$0xff]
          %v1577 = vld [vmem:[%s1 + $0x508] sm:$0xff]
          %v1578 = vld [vmem:[%s1 + $0x510] sm:$0xff]
          %v1579 = vld [vmem:[%s1 + $0x518] sm:$0xff]
          %v1580 = vld [vmem:[%s1 + $0x520] sm:$0xff]
          %v1581 = vld [vmem:[%s1 + $0x528] sm:$0xff]
          %v1582 = vld [vmem:[%s1 + $0x530] sm:$0xff]
          %v1583 = vld [vmem:[%s1 + $0x538] sm:$0xff]
          %v1584 = vld [vmem:[%s1 + $0x540] sm:$0xff]
          %v1585 = vld [vmem:[%s1 + $0x548] sm:$0xff]
          %v1586 = vld [vmem:[%s1 + $0x550] sm:$0xff]
          %v1587 = vld [vmem:[%s1 + $0x558] sm:$0xff]
          %v1588 = vld [vmem:[%s1 + $0x560] sm:$0xff]
          %v1589 = vld [vmem:[%s1 + $0x568] sm:$0xff]
          %v1590 = vld [vmem:[%s1 + $0x570] sm:$0xff]
          %v1591 = vld [vmem:[%s1 + $0x578] sm:$0xff]
          %v1592 = vld [vmem:[%s1 + $0x580] sm:$0xff]
          %v1593 = vld [vmem:[%s1 + $0x588] sm:$0xff]
          %v1594 = vld [vmem:[%s1 + $0x590] sm:$0xff]
          %v1595 = vld [vmem:[%s1 + $0x598] sm:$0xff]
          %v1596 = vld [vmem:[%s1 + $0x5a0] sm:$0xff]
          %v1597 = vld [vmem:[%s1 + $0x5a8] sm:$0xff]
          %v1598 = vld [vmem:[%s1 + $0x5b0] sm:$0xff]
          %v1599 = vld [vmem:[%s1 + $0x5b8] sm:$0xff]
          %v1600 = vld [vmem:[%s1 + $0x5c0] sm:$0xff]
          %v1601 = vld [vmem:[%s1 + $0x5c8] sm:$0xff]
          %v1602 = vld [vmem:[%s1 + $0x5d0] sm:$0xff]
          %v1603 = vld [vmem:[%s1 + $0x5d8] sm:$0xff]
          %v1604 = vld [vmem:[%s1 + $0x5e0] sm:$0xff]
          %v1605 = vld [vmem:[%s1 + $0x5e8] sm:$0xff]
          %v1606 = vld [vmem:[%s1 + $0x5f0] sm:$0xff]
          %v1607 = vld [vmem:[%s1 + $0x5f8] sm:$0xff]
          %v1608 = vld [vmem:[%s1 + $0x600] sm:$0xff]
          %v1609 = vld [vmem:[%s1 + $0x608] sm:$0xff]
          %v1610 = vld [vmem:[%s1 + $0x610] sm:$0xff]
          %v1611 = vld [vmem:[%s1 + $0x618] sm:$0xff]
          %v1612 = vld [vmem:[%s1 + $0x620] sm:$0xff]
          %v1613 = vld [vmem:[%s1 + $0x628] sm:$0xff]
          %v1614 = vld [vmem:[%s1 + $0x630] sm:$0xff]
          %v1615 = vld [vmem:[%s1 + $0x638] sm:$0xff]
          %v1616 = vld [vmem:[%s1 + $0x640] sm:$0xff]
          %v1617 = vld [vmem:[%s1 + $0x648] sm:$0xff]
          %v1618 = vld [vmem:[%s1 + $0x650] sm:$0xff]
          %v1619 = vld [vmem:[%s1 + $0x658] sm:$0xff]
          %v1620 = vld [vmem:[%s1 + $0x660] sm:$0xff]
          %v1621 = vld [vmem:[%s1 + $0x668] sm:$0xff]
          %v1622 = vld [vmem:[%s1 + $0x670] sm:$0xff]
          %v1623 = vld [vmem:[%s1 + $0x678] sm:$0xff]
          %v1624 = vld [vmem:[%s1 + $0x680] sm:$0xff]
          %v1625 = vld [vmem:[%s1 + $0x688] sm:$0xff]
          %v1626 = vld [vmem:[%s1 + $0x690] sm:$0xff]
          %v1627 = vld [vmem:[%s1 + $0x698] sm:$0xff]
          %v1628 = vld [vmem:[%s1 + $0x6a0] sm:$0xff]
          %v1629 = vld [vmem:[%s1 + $0x6a8] sm:$0xff]
          %v1630 = vld [vmem:[%s1 + $0x6b0] sm:$0xff]
          %v1631 = vld [vmem:[%s1 + $0x6b8] sm:$0xff]
          %v1632 = vld [vmem:[%s1 + $0x6c0] sm:$0xff]
          %v1633 = vld [vmem:[%s1 + $0x6c8] sm:$0xff]
          %v1634 = vld [vmem:[%s1 + $0x6d0] sm:$0xff]
          %v1635 = vld [vmem:[%s1 + $0x6d8] sm:$0xff]
          %v1636 = vld [vmem:[%s1 + $0x6e0] sm:$0xff]
          %v1637 = vld [vmem:[%s1 + $0x6e8] sm:$0xff]
          %v1638 = vld [vmem:[%s1 + $0x6f0] sm:$0xff]
          %v1639 = vld [vmem:[%s1 + $0x6f8] sm:$0xff]
          %v1640 = vld [vmem:[%s1 + $0x700] sm:$0xff]
          %v1641 = vld [vmem:[%s1 + $0x708] sm:$0xff]
          %v1642 = vld [vmem:[%s1 + $0x710] sm:$0xff]
          %v1643 = vld [vmem:[%s1 + $0x718] sm:$0xff]
          %v1644 = vld [vmem:[%s1 + $0x720] sm:$0xff]
          %v1645 = vld [vmem:[%s1 + $0x728] sm:$0xff]
          %v1646 = vld [vmem:[%s1 + $0x730] sm:$0xff]
          %v1647 = vld [vmem:[%s1 + $0x738] sm:$0xff]
          %v1648 = vld [vmem:[%s1 + $0x740] sm:$0xff]
          %v1649 = vld [vmem:[%s1 + $0x748] sm:$0xff]
          %v1650 = vld [vmem:[%s1 + $0x750] sm:$0xff]
          %v1651 = vld [vmem:[%s1 + $0x758] sm:$0xff]
          %v1652 = vld [vmem:[%s1 + $0x760] sm:$0xff]
          %v1653 = vld [vmem:[%s1 + $0x768] sm:$0xff]
          %v1654 = vld [vmem:[%s1 + $0x770] sm:$0xff]
          %v1655 = vld [vmem:[%s1 + $0x778] sm:$0xff]
          %v1656 = vld [vmem:[%s1 + $0x780] sm:$0xff]
          %v1657 = vld [vmem:[%s1 + $0x788] sm:$0xff]
          %v1658 = vld [vmem:[%s1 + $0x790] sm:$0xff]
          %v1659 = vld [vmem:[%s1 + $0x798] sm:$0xff]
          %v1660 = vld [vmem:[%s1 + $0x7a0] sm:$0xff]
          %v1661 = vld [vmem:[%s1 + $0x7a8] sm:$0xff]
          %v1662 = vld [vmem:[%s1 + $0x7b0] sm:$0xff]
          %v1663 = vld [vmem:[%s1 + $0x7b8] sm:$0xff]
          %v1664 = vld [vmem:[%s1 + $0x7c0] sm:$0xff]
          %v1665 = vld [vmem:[%s1 + $0x7c8] sm:$0xff]
          %v1666 = vld [vmem:[%s1 + $0x7d0] sm:$0xff]
          %v1667 = vld [vmem:[%s1 + $0x7d8] sm:$0xff]
          %v1668 = vld [vmem:[%s1 + $0x7e0] sm:$0xff]
          %v1669 = vld [vmem:[%s1 + $0x7e8] sm:$0xff]
          %v1670 = vld [vmem:[%s1 + $0x7f0] sm:$0xff]
          %v1671 = vld [vmem:[%s1 + $0x7f8] sm:$0xff]
          %v1672 = vld [vmem:[%s1 + $0x800] sm:$0xff]
          %v1673 = vld [vmem:[%s1 + $0x808] sm:$0xff]
          %v1674 = vld [vmem:[%s1 + $0x810] sm:$0xff]
          %v1675 = vld [vmem:[%s1 + $0x818] sm:$0xff]
          %v1676 = vld [vmem:[%s1 + $0x820] sm:$0xff]
          %v1677 = vld [vmem:[%s1 + $0x828] sm:$0xff]
          %v1678 = vld [vmem:[%s1 + $0x830] sm:$0xff]
          %v1679 = vld [vmem:[%s1 + $0x838] sm:$0xff]
          %v1680 = vld [vmem:[%s1 + $0x840] sm:$0xff]
          %v1681 = vld [vmem:[%s1 + $0x848] sm:$0xff]
          %v1682 = vld [vmem:[%s1 + $0x850] sm:$0xff]
          %v1683 = vld [vmem:[%s1 + $0x858] sm:$0xff]
          %v1684 = vld [vmem:[%s1 + $0x860] sm:$0xff]
          %v1685 = vld [vmem:[%s1 + $0x868] sm:$0xff]
          %v1686 = vld [vmem:[%s1 + $0x870] sm:$0xff]
          %v1687 = vld [vmem:[%s1 + $0x878] sm:$0xff]
          %v1688 = vld [vmem:[%s1 + $0x880] sm:$0xff]
          %v1689 = vld [vmem:[%s1 + $0x888] sm:$0xff]
          %v1690 = vld [vmem:[%s1 + $0x890] sm:$0xff]
          %v1691 = vld [vmem:[%s1 + $0x898] sm:$0xff]
          %v1692 = vld [vmem:[%s1 + $0x8a0] sm:$0xff]
          %v1693 = vld [vmem:[%s1 + $0x8a8] sm:$0xff]
          %v1694 = vld [vmem:[%s1 + $0x8b0] sm:$0xff]
          %v1695 = vld [vmem:[%s1 + $0x8b8] sm:$0xff]
          %v1696 = vld [vmem:[%s1 + $0x8c0] sm:$0xff]
          %v1697 = vld [vmem:[%s1 + $0x8c8] sm:$0xff]
          %v1698 = vld [vmem:[%s1 + $0x8d0] sm:$0xff]
          %v1699 = vld [vmem:[%s1 + $0x8d8] sm:$0xff]
          %v1700 = vld [vmem:[%s1 + $0x8e0] sm:$0xff]
          %v1701 = vld [vmem:[%s1 + $0x8e8] sm:$0xff]
          %v1702 = vld [vmem:[%s1 + $0x8f0] sm:$0xff]
          %v1703 = vld [vmem:[%s1 + $0x8f8] sm:$0xff]
          %v1704 = vld [vmem:[%s1 + $0x900] sm:$0xff]
          %v1705 = vld [vmem:[%s1 + $0x908] sm:$0xff]
          %v1706 = vld [vmem:[%s1 + $0x910] sm:$0xff]
          %v1707 = vld [vmem:[%s1 + $0x918] sm:$0xff]
          %v1708 = vld [vmem:[%s1 + $0x920] sm:$0xff]
          %v1709 = vld [vmem:[%s1 + $0x928] sm:$0xff]
          %v1710 = vld [vmem:[%s1 + $0x930] sm:$0xff]
          %v1711 = vld [vmem:[%s1 + $0x938] sm:$0xff]
          %v1712 = vld [vmem:[%s1 + $0x940] sm:$0xff]
          %v1713 = vld [vmem:[%s1 + $0x948] sm:$0xff]
          %v1714 = vld [vmem:[%s1 + $0x950] sm:$0xff]
          %v1715 = vld [vmem:[%s1 + $0x958] sm:$0xff]
          %v1716 = vld [vmem:[%s1 + $0x960] sm:$0xff]
          %v1717 = vld [vmem:[%s1 + $0x968] sm:$0xff]
          %v1718 = vld [vmem:[%s1 + $0x970] sm:$0xff]
          %v1719 = vld [vmem:[%s1 + $0x978] sm:$0xff]
          %v1720 = vld [vmem:[%s1 + $0x980] sm:$0xff]
          %v1721 = vld [vmem:[%s1 + $0x988] sm:$0xff]
          %v1722 = vld [vmem:[%s1 + $0x990] sm:$0xff]
          %v1723 = vld [vmem:[%s1 + $0x998] sm:$0xff]
          %v1724 = vld [vmem:[%s1 + $0x9a0] sm:$0xff]
          %v1725 = vld [vmem:[%s1 + $0x9a8] sm:$0xff]
          %v1726 = vld [vmem:[%s1 + $0x9b0] sm:$0xff]
          %v1727 = vld [vmem:[%s1 + $0x9b8] sm:$0xff]
          %v1728 = vld [vmem:[%s1 + $0x9c0] sm:$0xff]
          %v1729 = vld [vmem:[%s1 + $0x9c8] sm:$0xff]
          %v1730 = vld [vmem:[%s1 + $0x9d0] sm:$0xff]
          %v1731 = vld [vmem:[%s1 + $0x9d8] sm:$0xff]
          %v1732 = vld [vmem:[%s1 + $0x9e0] sm:$0xff]
          %v1733 = vld [vmem:[%s1 + $0x9e8] sm:$0xff]
          %v1734 = vld [vmem:[%s1 + $0x9f0] sm:$0xff]
          %v1735 = vld [vmem:[%s1 + $0x9f8] sm:$0xff]
          %v1736 = vld [vmem:[%s1 + $0xa00] sm:$0xff]
          %v1737 = vld [vmem:[%s1 + $0xa08] sm:$0xff]
          %v1738 = vld [vmem:[%s1 + $0xa10] sm:$0xff]
          %v1739 = vld [vmem:[%s1 + $0xa18] sm:$0xff]
          %v1740 = vld [vmem:[%s1 + $0xa20] sm:$0xff]
          %v1741 = vld [vmem:[%s1 + $0xa28] sm:$0xff]
          %v1742 = vld [vmem:[%s1 + $0xa30] sm:$0xff]
          %v1743 = vld [vmem:[%s1 + $0xa38] sm:$0xff]
          %v1744 = vld [vmem:[%s1 + $0xa40] sm:$0xff]
          %v1745 = vld [vmem:[%s1 + $0xa48] sm:$0xff]
          %v1746 = vld [vmem:[%s1 + $0xa50] sm:$0xff]
          %v1747 = vld [vmem:[%s1 + $0xa58] sm:$0xff]
          %v1748 = vld [vmem:[%s1 + $0xa60] sm:$0xff]
          %v1749 = vld [vmem:[%s1 + $0xa68] sm:$0xff]
          %v1750 = vld [vmem:[%s1 + $0xa70] sm:$0xff]
          %v1751 = vld [vmem:[%s1 + $0xa78] sm:$0xff]
          %v1752 = vld [vmem:[%s1 + $0xa80] sm:$0xff]
          %v1753 = vld [vmem:[%s1 + $0xa88] sm:$0xff]
          %v1754 = vld [vmem:[%s1 + $0xa90] sm:$0xff]
          %v1755 = vld [vmem:[%s1 + $0xa98] sm:$0xff]
          %v1756 = vld [vmem:[%s1 + $0xaa0] sm:$0xff]
          %v1757 = vld [vmem:[%s1 + $0xaa8] sm:$0xff]
          %v1758 = vld [vmem:[%s1 + $0xab0] sm:$0xff]
          %v1759 = vld [vmem:[%s1 + $0xab8] sm:$0xff]
          %v1760 = vld [vmem:[%s1 + $0xac0] sm:$0xff]
          %v1761 = vld [vmem:[%s1 + $0xac8] sm:$0xff]
          %v1762 = vld [vmem:[%s1 + $0xad0] sm:$0xff]
          %v1763 = vld [vmem:[%s1 + $0xad8] sm:$0xff]
          %v1764 = vld [vmem:[%s1 + $0xae0] sm:$0xff]
          %v1765 = vld [vmem:[%s1 + $0xae8] sm:$0xff]
          %v1766 = vld [vmem:[%s1 + $0xaf0] sm:$0xff]
          %v1767 = vld [vmem:[%s1 + $0xaf8] sm:$0xff]
          %v1768 = vld [vmem:[%s1 + $0xb00] sm:$0xff]
          %v1769 = vld [vmem:[%s1 + $0xb08] sm:$0xff]
          %v1770 = vld [vmem:[%s1 + $0xb10] sm:$0xff]
          %v1771 = vld [vmem:[%s1 + $0xb18] sm:$0xff]
          %v1772 = vld [vmem:[%s1 + $0xb20] sm:$0xff]
          %v1773 = vld [vmem:[%s1 + $0xb28] sm:$0xff]
          %v1774 = vld [vmem:[%s1 + $0xb30] sm:$0xff]
          %v1775 = vld [vmem:[%s1 + $0xb38] sm:$0xff]
          %v1776 = vld [vmem:[%s1 + $0xb40] sm:$0xff]
          %v1777 = vld [vmem:[%s1 + $0xb48] sm:$0xff]
          %v1778 = vld [vmem:[%s1 + $0xb50] sm:$0xff]
          %v1779 = vld [vmem:[%s1 + $0xb58] sm:$0xff]
          %v1780 = vld [vmem:[%s1 + $0xb60] sm:$0xff]
          %v1781 = vld [vmem:[%s1 + $0xb68] sm:$0xff]
          %v1782 = vld [vmem:[%s1 + $0xb70] sm:$0xff]
          %v1783 = vld [vmem:[%s1 + $0xb78] sm:$0xff]
          %v1784 = vld [vmem:[%s1 + $0xb80] sm:$0xff]
          %v1785 = vld [vmem:[%s1 + $0xb88] sm:$0xff]
          %v1786 = vld [vmem:[%s1 + $0xb90] sm:$0xff]
          %v1787 = vld [vmem:[%s1 + $0xb98] sm:$0xff]
          %v1788 = vld [vmem:[%s1 + $0xba0] sm:$0xff]
          %v1789 = vld [vmem:[%s1 + $0xba8] sm:$0xff]
          %v1790 = vld [vmem:[%s1 + $0xbb0] sm:$0xff]
          %v1791 = vld [vmem:[%s1 + $0xbb8] sm:$0xff]
          %v1792 = vld [vmem:[%s1 + $0xbc0] sm:$0xff]
          %v1793 = vld [vmem:[%s1 + $0xbc8] sm:$0xff]
          %v1794 = vld [vmem:[%s1 + $0xbd0] sm:$0xff]
          %v1795 = vld [vmem:[%s1 + $0xbd8] sm:$0xff]
          %v1796 = vld [vmem:[%s1 + $0xbe0] sm:$0xff]
          %v1797 = vld [vmem:[%s1 + $0xbe8] sm:$0xff]
          %v1798 = vld [vmem:[%s1 + $0xbf0] sm:$0xff]
          %v1799 = vld [vmem:[%s1 + $0xbf8] sm:$0xff]
          %v1800 = vld [vmem:[%s1 + $0xc00] sm:$0xff]
          %v1801 = vld [vmem:[%s1 + $0xc08] sm:$0xff]
          %v1802 = vld [vmem:[%s1 + $0xc10] sm:$0xff]
          %v1803 = vld [vmem:[%s1 + $0xc18] sm:$0xff]
          %v1804 = vld [vmem:[%s1 + $0xc20] sm:$0xff]
          %v1805 = vld [vmem:[%s1 + $0xc28] sm:$0xff]
          %v1806 = vld [vmem:[%s1 + $0xc30] sm:$0xff]
          %v1807 = vld [vmem:[%s1 + $0xc38] sm:$0xff]
          %v1808 = vld [vmem:[%s1 + $0xc40] sm:$0xff]
          %v1809 = vld [vmem:[%s1 + $0xc48] sm:$0xff]
          %v1810 = vld [vmem:[%s1 + $0xc50] sm:$0xff]
          %v1811 = vld [vmem:[%s1 + $0xc58] sm:$0xff]
          %v1812 = vld [vmem:[%s1 + $0xc60] sm:$0xff]
          %v1813 = vld [vmem:[%s1 + $0xc68] sm:$0xff]
          %v1814 = vld [vmem:[%s1 + $0xc70] sm:$0xff]
          %v1815 = vld [vmem:[%s1 + $0xc78] sm:$0xff]
          %v1816 = vld [vmem:[%s1 + $0xc80] sm:$0xff]
          %v1817 = vld [vmem:[%s1 + $0xc88] sm:$0xff]
          %v1818 = vld [vmem:[%s1 + $0xc90] sm:$0xff]
          %v1819 = vld [vmem:[%s1 + $0xc98] sm:$0xff]
          %v1820 = vld [vmem:[%s1 + $0xca0] sm:$0xff]
          %v1821 = vld [vmem:[%s1 + $0xca8] sm:$0xff]
          %v1822 = vld [vmem:[%s1 + $0xcb0] sm:$0xff]
          %v1823 = vld [vmem:[%s1 + $0xcb8] sm:$0xff]
          %v1824 = vld [vmem:[%s1 + $0xcc0] sm:$0xff]
          %v1825 = vld [vmem:[%s1 + $0xcc8] sm:$0xff]
          %v1826 = vld [vmem:[%s1 + $0xcd0] sm:$0xff]
          %v1827 = vld [vmem:[%s1 + $0xcd8] sm:$0xff]
          %v1828 = vld [vmem:[%s1 + $0xce0] sm:$0xff]
          %v1829 = vld [vmem:[%s1 + $0xce8] sm:$0xff]
          %v1830 = vld [vmem:[%s1 + $0xcf0] sm:$0xff]
          %v1831 = vld [vmem:[%s1 + $0xcf8] sm:$0xff]
          %v1832 = vld [vmem:[%s1 + $0xd00] sm:$0xff]
          %v1833 = vld [vmem:[%s1 + $0xd08] sm:$0xff]
          %v1834 = vld [vmem:[%s1 + $0xd10] sm:$0xff]
          %v1835 = vld [vmem:[%s1 + $0xd18] sm:$0xff]
          %v1836 = vld [vmem:[%s1 + $0xd20] sm:$0xff]
          %v1837 = vld [vmem:[%s1 + $0xd28] sm:$0xff]
          %v1838 = vld [vmem:[%s1 + $0xd30] sm:$0xff]
          %v1839 = vld [vmem:[%s1 + $0xd38] sm:$0xff]
          %v1840 = vld [vmem:[%s1 + $0xd40] sm:$0xff]
          %v1841 = vld [vmem:[%s1 + $0xd48] sm:$0xff]
          %v1842 = vld [vmem:[%s1 + $0xd50] sm:$0xff]
          %v1843 = vld [vmem:[%s1 + $0xd58] sm:$0xff]
          %v1844 = vld [vmem:[%s1 + $0xd60] sm:$0xff]
          %v1845 = vld [vmem:[%s1 + $0xd68] sm:$0xff]
          %v1846 = vld [vmem:[%s1 + $0xd70] sm:$0xff]
          %v1847 = vld [vmem:[%s1 + $0xd78] sm:$0xff]
          %v1848 = vld [vmem:[%s1 + $0xd80] sm:$0xff]
          %v1849 = vld [vmem:[%s1 + $0xd88] sm:$0xff]
          %v1850 = vld [vmem:[%s1 + $0xd90] sm:$0xff]
          %v1851 = vld [vmem:[%s1 + $0xd98] sm:$0xff]
          %v1852 = vld [vmem:[%s1 + $0xda0] sm:$0xff]
          %v1853 = vld [vmem:[%s1 + $0xda8] sm:$0xff]
          %v1854 = vld [vmem:[%s1 + $0xdb0] sm:$0xff]
          %v1855 = vld [vmem:[%s1 + $0xdb8] sm:$0xff]
          %v1856 = vld [vmem:[%s1 + $0xdc0] sm:$0xff]
          %v1857 = vld [vmem:[%s1 + $0xdc8] sm:$0xff]
          %v1858 = vld [vmem:[%s1 + $0xdd0] sm:$0xff]
          %v1859 = vld [vmem:[%s1 + $0xdd8] sm:$0xff]
          %v1860 = vld [vmem:[%s1 + $0xde0] sm:$0xff]
          %v1861 = vld [vmem:[%s1 + $0xde8] sm:$0xff]
          %v1862 = vld [vmem:[%s1 + $0xdf0] sm:$0xff]
          %v1863 = vld [vmem:[%s1 + $0xdf8] sm:$0xff]
          %v1864 = vld [vmem:[%s1 + $0xe00] sm:$0xff]
          %v1865 = vld [vmem:[%s1 + $0xe08] sm:$0xff]
          %v1866 = vld [vmem:[%s1 + $0xe10] sm:$0xff]
          %v1867 = vld [vmem:[%s1 + $0xe18] sm:$0xff]
          %v1868 = vld [vmem:[%s1 + $0xe20] sm:$0xff]
          %v1869 = vld [vmem:[%s1 + $0xe28] sm:$0xff]
          %v1870 = vld [vmem:[%s1 + $0xe30] sm:$0xff]
          %v1871 = vld [vmem:[%s1 + $0xe38] sm:$0xff]
          %v1872 = vld [vmem:[%s1 + $0xe40] sm:$0xff]
          %v1873 = vld [vmem:[%s1 + $0xe48] sm:$0xff]
          %v1874 = vld [vmem:[%s1 + $0xe50] sm:$0xff]
          %v1875 = vld [vmem:[%s1 + $0xe58] sm:$0xff]
          %v1876 = vld [vmem:[%s1 + $0xe60] sm:$0xff]
          %v1877 = vld [vmem:[%s1 + $0xe68] sm:$0xff]
          %v1878 = vld [vmem:[%s1 + $0xe70] sm:$0xff]
          %v1879 = vld [vmem:[%s1 + $0xe78] sm:$0xff]
          %v1880 = vld [vmem:[%s1 + $0xe80] sm:$0xff]
          %v1881 = vld [vmem:[%s1 + $0xe88] sm:$0xff]
          %v1882 = vld [vmem:[%s1 + $0xe90] sm:$0xff]
          %v1883 = vld [vmem:[%s1 + $0xe98] sm:$0xff]
          %v1884 = vld [vmem:[%s1 + $0xea0] sm:$0xff]
          %v1885 = vld [vmem:[%s1 + $0xea8] sm:$0xff]
          %v1886 = vld [vmem:[%s1 + $0xeb0] sm:$0xff]
          %v1887 = vld [vmem:[%s1 + $0xeb8] sm:$0xff]
          %v1888 = vld [vmem:[%s1 + $0xec0] sm:$0xff]
          %v1889 = vld [vmem:[%s1 + $0xec8] sm:$0xff]
          %v1890 = vld [vmem:[%s1 + $0xed0] sm:$0xff]
          %v1891 = vld [vmem:[%s1 + $0xed8] sm:$0xff]
          %v1892 = vld [vmem:[%s1 + $0xee0] sm:$0xff]
          %v1893 = vld [vmem:[%s1 + $0xee8] sm:$0xff]
          %v1894 = vld [vmem:[%s1 + $0xef0] sm:$0xff]
          %v1895 = vld [vmem:[%s1 + $0xef8] sm:$0xff]
          %v1896 = vld [vmem:[%s1 + $0xf00] sm:$0xff]
          %v1897 = vld [vmem:[%s1 + $0xf08] sm:$0xff]
          %v1898 = vld [vmem:[%s1 + $0xf10] sm:$0xff]
          %v1899 = vld [vmem:[%s1 + $0xf18] sm:$0xff]
          %v1900 = vld [vmem:[%s1 + $0xf20] sm:$0xff]
          %v1901 = vld [vmem:[%s1 + $0xf28] sm:$0xff]
          %v1902 = vld [vmem:[%s1 + $0xf30] sm:$0xff]
          %v1903 = vld [vmem:[%s1 + $0xf38] sm:$0xff]
          %v1904 = vld [vmem:[%s1 + $0xf40] sm:$0xff]
          %v1905 = vld [vmem:[%s1 + $0xf48] sm:$0xff]
          %v1906 = vld [vmem:[%s1 + $0xf50] sm:$0xff]
          %v1907 = vld [vmem:[%s1 + $0xf58] sm:$0xff]
          %v1908 = vld [vmem:[%s1 + $0xf60] sm:$0xff]
          %v1909 = vld [vmem:[%s1 + $0xf68] sm:$0xff]
          %v1910 = vld [vmem:[%s1 + $0xf70] sm:$0xff]
          %v1911 = vld [vmem:[%s1 + $0xf78] sm:$0xff]
          %v1912 = vld [vmem:[%s1 + $0xf80] sm:$0xff]
          %v1913 = vld [vmem:[%s1 + $0xf88] sm:$0xff]
          %v1914 = vld [vmem:[%s1 + $0xf90] sm:$0xff]
          %v1915 = vld [vmem:[%s1 + $0xf98] sm:$0xff]
          %v1916 = vld [vmem:[%s1 + $0xfa0] sm:$0xff]
          %v1917 = vld [vmem:[%s1 + $0xfa8] sm:$0xff]
          %v1918 = vld [vmem:[%s1 + $0xfb0] sm:$0xff]
          %v1919 = vld [vmem:[%s1 + $0xfb8] sm:$0xff]
          %v1920 = vld [vmem:[%s1 + $0xfc0] sm:$0xff]
          %v1921 = vld [vmem:[%s1 + $0xfc8] sm:$0xff]
          %v1922 = vld [vmem:[%s1 + $0xfd0] sm:$0xff]
          %v1923 = vld [vmem:[%s1 + $0xfd8] sm:$0xff]
          %v1924 = vld [vmem:[%s1 + $0xfe0] sm:$0xff]
          %v1925 = vld [vmem:[%s1 + $0xfe8] sm:$0xff]
          %v1926 = vld [vmem:[%s1 + $0xff0] sm:$0xff]
          %v1927 = vld [vmem:[%s1 + $0xff8] sm:$0xff]
          %v1928 = vld [vmem:[%s1 + $0x1000] sm:$0xff]
          %v1929 = vld [vmem:[%s1 + $0x1008] sm:$0xff]
          %v1930 = vld [vmem:[%s1 + $0x1010] sm:$0xff]
          %v1931 = vld [vmem:[%s1 + $0x1018] sm:$0xff]
          %v1932 = vld [vmem:[%s1 + $0x1020] sm:$0xff]
          %v1933 = vld [vmem:[%s1 + $0x1028] sm:$0xff]
          %v1934 = vld [vmem:[%s1 + $0x1030] sm:$0xff]
          %v1935 = vld [vmem:[%s1 + $0x1038] sm:$0xff]
          %v1936 = vld [vmem:[%s1 + $0x1040] sm:$0xff]
          %v1937 = vld [vmem:[%s1 + $0x1048] sm:$0xff]
          %v1938 = vld [vmem:[%s1 + $0x1050] sm:$0xff]
          %v1939 = vld [vmem:[%s1 + $0x1058] sm:$0xff]
          %v1940 = vld [vmem:[%s1 + $0x1060] sm:$0xff]
          %v1941 = vld [vmem:[%s1 + $0x1068] sm:$0xff]
          %v1942 = vld [vmem:[%s1 + $0x1070] sm:$0xff]
          %v1943 = vld [vmem:[%s1 + $0x1078] sm:$0xff]
          %v1944 = vld [vmem:[%s1 + $0x1080] sm:$0xff]
          %v1945 = vld [vmem:[%s1 + $0x1088] sm:$0xff]
          %v1946 = vld [vmem:[%s1 + $0x1090] sm:$0xff]
          %v1947 = vld [vmem:[%s1 + $0x1098] sm:$0xff]
          %v1948 = vld [vmem:[%s1 + $0x10a0] sm:$0xff]
          %v1949 = vld [vmem:[%s1 + $0x10a8] sm:$0xff]
          %v1950 = vld [vmem:[%s1 + $0x10b0] sm:$0xff]
          %v1951 = vld [vmem:[%s1 + $0x10b8] sm:$0xff]
          %v1952 = vld [vmem:[%s1 + $0x10c0] sm:$0xff]
          %v1953 = vld [vmem:[%s1 + $0x10c8] sm:$0xff]
          %v1954 = vld [vmem:[%s1 + $0x10d0] sm:$0xff]
          %v1955 = vld [vmem:[%s1 + $0x10d8] sm:$0xff]
          %v1956 = vld [vmem:[%s1 + $0x10e0] sm:$0xff]
          %v1957 = vld [vmem:[%s1 + $0x10e8] sm:$0xff]
          %v1958 = vld [vmem:[%s1 + $0x10f0] sm:$0xff]
          %v1959 = vld [vmem:[%s1 + $0x10f8] sm:$0xff]
          %v1960 = vld [vmem:[%s1 + $0x1100] sm:$0xff]
          %v1961 = vld [vmem:[%s1 + $0x1108] sm:$0xff]
          %v1962 = vld [vmem:[%s1 + $0x1110] sm:$0xff]
          %v1963 = vld [vmem:[%s1 + $0x1118] sm:$0xff]
          %v1964 = vld [vmem:[%s1 + $0x1120] sm:$0xff]
          %v1965 = vld [vmem:[%s1 + $0x1128] sm:$0xff]
          %v1966 = vld [vmem:[%s1 + $0x1130] sm:$0xff]
          %v1967 = vld [vmem:[%s1 + $0x1138] sm:$0xff]
          %v1968 = vld [vmem:[%s1 + $0x1140] sm:$0xff]
          %v1969 = vld [vmem:[%s1 + $0x1148] sm:$0xff]
          %v1970 = vld [vmem:[%s1 + $0x1150] sm:$0xff]
          %v1971 = vld [vmem:[%s1 + $0x1158] sm:$0xff]
          %v1972 = vld [vmem:[%s1 + $0x1160] sm:$0xff]
          %v1973 = vld [vmem:[%s1 + $0x1168] sm:$0xff]
          %v1974 = vld [vmem:[%s1 + $0x1170] sm:$0xff]
          %v1975 = vld [vmem:[%s1 + $0x1178] sm:$0xff]
          %v1976 = vld [vmem:[%s1 + $0x1180] sm:$0xff]
          %v1977 = vld [vmem:[%s1 + $0x1188] sm:$0xff]
          %v1978 = vld [vmem:[%s1 + $0x1190] sm:$0xff]
          %v1979 = vld [vmem:[%s1 + $0x1198] sm:$0xff]
          %v1980 = vld [vmem:[%s1 + $0x11a0] sm:$0xff]
          %v1981 = vld [vmem:[%s1 + $0x11a8] sm:$0xff]
          %v1982 = vld [vmem:[%s1 + $0x11b0] sm:$0xff]
          %v1983 = vld [vmem:[%s1 + $0x11b8] sm:$0xff]
          %v1984 = vld [vmem:[%s1 + $0x11c0] sm:$0xff]
          %v1985 = vld [vmem:[%s1 + $0x11c8] sm:$0xff]
          %v1986 = vld [vmem:[%s1 + $0x11d0] sm:$0xff]
          %v1987 = vld [vmem:[%s1 + $0x11d8] sm:$0xff]
          %v1988 = vld [vmem:[%s1 + $0x11e0] sm:$0xff]
          %v1989 = vld [vmem:[%s1 + $0x11e8] sm:$0xff]
          %v1990 = vld [vmem:[%s1 + $0x11f0] sm:$0xff]
          %v1991 = vld [vmem:[%s1 + $0x11f8] sm:$0xff]
          %v1992 = vld [vmem:[%s1 + $0x1200] sm:$0xff]
          %v1993 = vld [vmem:[%s1 + $0x1208] sm:$0xff]
          %v1994 = vld [vmem:[%s1 + $0x1210] sm:$0xff]
          %v1995 = vld [vmem:[%s1 + $0x1218] sm:$0xff]
          %v1996 = vld [vmem:[%s1 + $0x1220] sm:$0xff]
          %v1997 = vld [vmem:[%s1 + $0x1228] sm:$0xff]
          %v1998 = vld [vmem:[%s1 + $0x1230] sm:$0xff]
          %v1999 = vld [vmem:[%s1 + $0x1238] sm:$0xff]
          %v2000 = vld [vmem:[%s1 + $0x1240] sm:$0xff]
          %v2001 = vld [vmem:[%s1 + $0x1248] sm:$0xff]
          %v2002 = vld [vmem:[%s1 + $0x1250] sm:$0xff]
          %v2003 = vld [vmem:[%s1 + $0x1258] sm:$0xff]
          %v2004 = vld [vmem:[%s1 + $0x1260] sm:$0xff]
          %v2005 = vld [vmem:[%s1 + $0x1268] sm:$0xff]
          %v2006 = vld [vmem:[%s1 + $0x1270] sm:$0xff]
          %v2007 = vld [vmem:[%s1 + $0x1278] sm:$0xff]
          %v2008 = vld [vmem:[%s1 + $0x1280] sm:$0xff]
          %v2009 = vld [vmem:[%s1 + $0x1288] sm:$0xff]
          %v2010 = vld [vmem:[%s1 + $0x1290] sm:$0xff]
          %v2011 = vld [vmem:[%s1 + $0x1298] sm:$0xff]
          %v2012 = vld [vmem:[%s1 + $0x12a0] sm:$0xff]
          %v2013 = vld [vmem:[%s1 + $0x12a8] sm:$0xff]
          %v2014 = vld [vmem:[%s1 + $0x12b0] sm:$0xff]
          %v2015 = vld [vmem:[%s1 + $0x12b8] sm:$0xff]
          %v2016 = vld [vmem:[%s1 + $0x12c0] sm:$0xff]
          %v2017 = vld [vmem:[%s1 + $0x12c8] sm:$0xff]
          %v2018 = vld [vmem:[%s1 + $0x12d0] sm:$0xff]
          %v2019 = vld [vmem:[%s1 + $0x12d8] sm:$0xff]
          %v2020 = vld [vmem:[%s1 + $0x12e0] sm:$0xff]
          %v2021 = vld [vmem:[%s1 + $0x12e8] sm:$0xff]
          %v2022 = vld [vmem:[%s1 + $0x12f0] sm:$0xff]
          %v2023 = vld [vmem:[%s1 + $0x12f8] sm:$0xff]
          %v2024 = vld [vmem:[%s1 + $0x1300] sm:$0xff]
          %v2025 = vld [vmem:[%s1 + $0x1308] sm:$0xff]
          %v2026 = vld [vmem:[%s1 + $0x1310] sm:$0xff]
          %v2027 = vld [vmem:[%s1 + $0x1318] sm:$0xff]
          %v2028 = vld [vmem:[%s1 + $0x1320] sm:$0xff]
          %v2029 = vld [vmem:[%s1 + $0x1328] sm:$0xff]
          %v2030 = vld [vmem:[%s1 + $0x1330] sm:$0xff]
          %v2031 = vld [vmem:[%s1 + $0x1338] sm:$0xff]
          %v2032 = vld [vmem:[%s1 + $0x1340] sm:$0xff]
          %v2033 = vld [vmem:[%s1 + $0x1348] sm:$0xff]
          %v2034 = vld [vmem:[%s1 + $0x1350] sm:$0xff]
          %v2035 = vld [vmem:[%s1 + $0x1358] sm:$0xff]
          %v2036 = vld [vmem:[%s1 + $0x1360] sm:$0xff]
          %v2037 = vld [vmem:[%s1 + $0x1368] sm:$0xff]
          %v2038 = vld [vmem:[%s1 + $0x1370] sm:$0xff]
          %v2039 = vld [vmem:[%s1 + $0x1378] sm:$0xff]
          %v2040 = vld [vmem:[%s1 + $0x1380] sm:$0xff]
          %v2041 = vld [vmem:[%s1 + $0x1388] sm:$0xff]
          %v2042 = vld [vmem:[%s1 + $0x1390] sm:$0xff]
          %v2043 = vld [vmem:[%s1 + $0x1398] sm:$0xff]
          %v2044 = vld [vmem:[%s1 + $0x13a0] sm:$0xff]
          %v2045 = vld [vmem:[%s1 + $0x13a8] sm:$0xff]
          %v2046 = vld [vmem:[%s1 + $0x13b0] sm:$0xff]
          %v2047 = vld [vmem:[%s1 + $0x13b8] sm:$0xff]
          %v2048 = vld [vmem:[%s1 + $0x13c0] sm:$0xff]
          %v2049 = vld [vmem:[%s1 + $0x13c8] sm:$0xff]
          %v2050 = vld [vmem:[%s1 + $0x13d0] sm:$0xff]
          %v2051 = vld [vmem:[%s1 + $0x13d8] sm:$0xff]
          %v2052 = vld [vmem:[%s1 + $0x13e0] sm:$0xff]
          %v2053 = vld [vmem:[%s1 + $0x13e8] sm:$0xff]
          %v2054 = vld [vmem:[%s1 + $0x13f0] sm:$0xff]
          %v2055 = vld [vmem:[%s1 + $0x13f8] sm:$0xff]
          %v2056 = vld [vmem:[%s1 + $0x1400] sm:$0xff]
          %v2057 = vld [vmem:[%s1 + $0x1408] sm:$0xff]
          %v2058 = vld [vmem:[%s1 + $0x1410] sm:$0xff]
          %v2059 = vld [vmem:[%s1 + $0x1418] sm:$0xff]
          %v2060 = vld [vmem:[%s1 + $0x1420] sm:$0xff]
          %v2061 = vld [vmem:[%s1 + $0x1428] sm:$0xff]
          %v2062 = vld [vmem:[%s1 + $0x1430] sm:$0xff]
          %v2063 = vld [vmem:[%s1 + $0x1438] sm:$0xff]
          %v2064 = vld [vmem:[%s1 + $0x1440] sm:$0xff]
          %v2065 = vld [vmem:[%s1 + $0x1448] sm:$0xff]
          %v2066 = vld [vmem:[%s1 + $0x1450] sm:$0xff]
          %v2067 = vld [vmem:[%s1 + $0x1458] sm:$0xff]
          %v2068 = vld [vmem:[%s1 + $0x1460] sm:$0xff]
          %v2069 = vld [vmem:[%s1 + $0x1468] sm:$0xff]
          %v2070 = vld [vmem:[%s1 + $0x1470] sm:$0xff]
          %v2071 = vld [vmem:[%s1 + $0x1478] sm:$0xff]
          %v2072 = vld [vmem:[%s1 + $0x1480] sm:$0xff]
          %v2073 = vld [vmem:[%s1 + $0x1488] sm:$0xff]
          %v2074 = vld [vmem:[%s1 + $0x1490] sm:$0xff]
          %v2075 = vld [vmem:[%s1 + $0x1498] sm:$0xff]
          %v2076 = vld [vmem:[%s1 + $0x14a0] sm:$0xff]
          %v2077 = vld [vmem:[%s1 + $0x14a8] sm:$0xff]
          %v2078 = vld [vmem:[%s1 + $0x14b0] sm:$0xff]
          %v2079 = vld [vmem:[%s1 + $0x14b8] sm:$0xff]
          %v2080 = vld [vmem:[%s1 + $0x14c0] sm:$0xff]
          %v2081 = vld [vmem:[%s1 + $0x14c8] sm:$0xff]
          %v2082 = vld [vmem:[%s1 + $0x14d0] sm:$0xff]
          %v2083 = vld [vmem:[%s1 + $0x14d8] sm:$0xff]
          %v2084 = vld [vmem:[%s1 + $0x14e0] sm:$0xff]
          %v2085 = vld [vmem:[%s1 + $0x14e8] sm:$0xff]
          %v2086 = vld [vmem:[%s1 + $0x14f0] sm:$0xff]
          %v2087 = vld [vmem:[%s1 + $0x14f8] sm:$0xff]
          %v2088 = vld [vmem:[%s1 + $0x1500] sm:$0xff]
          %v2089 = vld [vmem:[%s1 + $0x1508] sm:$0xff]
          %v2090 = vld [vmem:[%s1 + $0x1510] sm:$0xff]
          %v2091 = vld [vmem:[%s1 + $0x1518] sm:$0xff]
          %v2092 = vld [vmem:[%s1 + $0x1520] sm:$0xff]
          %v2093 = vld [vmem:[%s1 + $0x1528] sm:$0xff]
          %v2094 = vld [vmem:[%s1 + $0x1530] sm:$0xff]
          %v2095 = vld [vmem:[%s1 + $0x1538] sm:$0xff]
          %v2096 = vld [vmem:[%s1 + $0x1540] sm:$0xff]
          %v2097 = vld [vmem:[%s1 + $0x1548] sm:$0xff]
          %v2098 = vld [vmem:[%s1 + $0x1550] sm:$0xff]
          %v2099 = vld [vmem:[%s1 + $0x1558] sm:$0xff]
          %v2100 = vld [vmem:[%s1 + $0x1560] sm:$0xff]
          %v2101 = vld [vmem:[%s1 + $0x1568] sm:$0xff]
          %v2102 = vld [vmem:[%s1 + $0x1570] sm:$0xff]
          %v2103 = vld [vmem:[%s1 + $0x1578] sm:$0xff]
          %v2104 = vld [vmem:[%s1 + $0x1580] sm:$0xff]
          %v2105 = vld [vmem:[%s1 + $0x1588] sm:$0xff]
          %v2106 = vld [vmem:[%s1 + $0x1590] sm:$0xff]
          %v2107 = vld [vmem:[%s1 + $0x1598] sm:$0xff]
          %v2108 = vld [vmem:[%s1 + $0x15a0] sm:$0xff]
          %v2109 = vld [vmem:[%s1 + $0x15a8] sm:$0xff]
          %v2110 = vld [vmem:[%s1 + $0x15b0] sm:$0xff]
          %v2111 = vld [vmem:[%s1 + $0x15b8] sm:$0xff]
          %v2112 = vld [vmem:[%s1 + $0x15c0] sm:$0xff]
          %v2113 = vld [vmem:[%s1 + $0x15c8] sm:$0xff]
          %v2114 = vld [vmem:[%s1 + $0x15d0] sm:$0xff]
          %v2115 = vld [vmem:[%s1 + $0x15d8] sm:$0xff]
          %v2116 = vld [vmem:[%s1 + $0x15e0] sm:$0xff]
          %v2117 = vld [vmem:[%s1 + $0x15e8] sm:$0xff]
          %v2118 = vld [vmem:[%s1 + $0x15f0] sm:$0xff]
          %v2119 = vld [vmem:[%s1 + $0x15f8] sm:$0xff]
          %v2120 = vld [vmem:[%s1 + $0x1600] sm:$0xff]
          %v2121 = vld [vmem:[%s1 + $0x1608] sm:$0xff]
          %v2122 = vld [vmem:[%s1 + $0x1610] sm:$0xff]
          %v2123 = vld [vmem:[%s1 + $0x1618] sm:$0xff]
          %v2124 = vld [vmem:[%s1 + $0x1620] sm:$0xff]
          %v2125 = vld [vmem:[%s1 + $0x1628] sm:$0xff]
          %v2126 = vld [vmem:[%s1 + $0x1630] sm:$0xff]
          %v2127 = vld [vmem:[%s1 + $0x1638] sm:$0xff]
          %v2128 = vld [vmem:[%s1 + $0x1640] sm:$0xff]
          %v2129 = vld [vmem:[%s1 + $0x1648] sm:$0xff]
          %v2130 = vld [vmem:[%s1 + $0x1650] sm:$0xff]
          %v2131 = vld [vmem:[%s1 + $0x1658] sm:$0xff]
          %v2132 = vld [vmem:[%s1 + $0x1660] sm:$0xff]
          %v2133 = vld [vmem:[%s1 + $0x1668] sm:$0xff]
          %v2134 = vld [vmem:[%s1 + $0x1670] sm:$0xff]
          %v2135 = vld [vmem:[%s1 + $0x1678] sm:$0xff]
          %v2136 = vld [vmem:[%s1 + $0x1680] sm:$0xff]
          %v2137 = vld [vmem:[%s1 + $0x1688] sm:$0xff]
          %v2138 = vld [vmem:[%s1 + $0x1690] sm:$0xff]
          %v2139 = vld [vmem:[%s1 + $0x1698] sm:$0xff]
          %v2140 = vld [vmem:[%s1 + $0x16a0] sm:$0xff]
          %v2141 = vld [vmem:[%s1 + $0x16a8] sm:$0xff]
          %v2142 = vld [vmem:[%s1 + $0x16b0] sm:$0xff]
          %v2143 = vld [vmem:[%s1 + $0x16b8] sm:$0xff]
          %v2144 = vld [vmem:[%s1 + $0x16c0] sm:$0xff]
          %v2145 = vld [vmem:[%s1 + $0x16c8] sm:$0xff]
          %v2146 = vld [vmem:[%s1 + $0x16d0] sm:$0xff]
          %v2147 = vld [vmem:[%s1 + $0x16d8] sm:$0xff]
          %v2148 = vld [vmem:[%s1 + $0x16e0] sm:$0xff]
          %v2149 = vld [vmem:[%s1 + $0x16e8] sm:$0xff]
          %v2150 = vld [vmem:[%s1 + $0x16f0] sm:$0xff]
          %v2151 = vld [vmem:[%s1 + $0x16f8] sm:$0xff]
          %v2152 = vld [vmem:[%s1 + $0x1700] sm:$0xff]
          %v2153 = vld [vmem:[%s1 + $0x1708] sm:$0xff]
          %v2154 = vld [vmem:[%s1 + $0x1710] sm:$0xff]
          %v2155 = vld [vmem:[%s1 + $0x1718] sm:$0xff]
          %v2156 = vld [vmem:[%s1 + $0x1720] sm:$0xff]
          %v2157 = vld [vmem:[%s1 + $0x1728] sm:$0xff]
          %v2158 = vld [vmem:[%s1 + $0x1730] sm:$0xff]
          %v2159 = vld [vmem:[%s1 + $0x1738] sm:$0xff]
          %v2160 = vld [vmem:[%s1 + $0x1740] sm:$0xff]
          %v2161 = vld [vmem:[%s1 + $0x1748] sm:$0xff]
          %v2162 = vld [vmem:[%s1 + $0x1750] sm:$0xff]
          %v2163 = vld [vmem:[%s1 + $0x1758] sm:$0xff]
          %v2164 = vld [vmem:[%s1 + $0x1760] sm:$0xff]
          %v2165 = vld [vmem:[%s1 + $0x1768] sm:$0xff]
          %v2166 = vld [vmem:[%s1 + $0x1770] sm:$0xff]
          %v2167 = vld [vmem:[%s1 + $0x1778] sm:$0xff]
          %v2168 = vld [vmem:[%s1 + $0x1780] sm:$0xff]
          %v2169 = vld [vmem:[%s1 + $0x1788] sm:$0xff]
          %v2170 = vld [vmem:[%s1 + $0x1790] sm:$0xff]
          %v2171 = vld [vmem:[%s1 + $0x1798] sm:$0xff]
          %v2172 = vld [vmem:[%s1 + $0x17a0] sm:$0xff]
          %v2173 = vld [vmem:[%s1 + $0x17a8] sm:$0xff]
          %v2174 = vld [vmem:[%s1 + $0x17b0] sm:$0xff]
          %v2175 = vld [vmem:[%s1 + $0x17b8] sm:$0xff]
          %v2176 = vld [vmem:[%s1 + $0x17c0] sm:$0xff]
          %v2177 = vld [vmem:[%s1 + $0x17c8] sm:$0xff]
          %v2178 = vld [vmem:[%s1 + $0x17d0] sm:$0xff]
          %v2179 = vld [vmem:[%s1 + $0x17d8] sm:$0xff]
          %v2180 = vld [vmem:[%s1 + $0x17e0] sm:$0xff]
          %v2181 = vld [vmem:[%s1 + $0x17e8] sm:$0xff]
          %v2182 = vld [vmem:[%s1 + $0x17f0] sm:$0xff]
          %v2183 = vld [vmem:[%s1 + $0x17f8] sm:$0xff]
          %v2184 = vld [vmem:[%s2] sm:$0xff]
          %v2186 = vperm.slane %v2184, 0
          %v2187 = vperm.slane %v2184, 1
          %v2188 = vperm.slane %v2184, 2
          %v2189 = vperm.slane %v2184, 3
          %v2190 = vperm.slane %v2184, 4
          %v2191 = vperm.slane %v2184, 5
          %v2192 = vperm.slane %v2184, 6
          %v2193 = vperm.slane %v2184, 7
          %2202 = vmatpush.msra.mxu0 %v1536
          %2203 = vmatpush.msra.mxu0 %v1528
          %2204 = vmatpush.msra.mxu0 %v1520
          %2205 = vmatpush.msra.mxu0 %v1512
          %2206 = vmatpush.msra.mxu0 %v1504
          %2207 = vmatpush.msra.mxu0 %v1496
          %2208 = vmatpush.msra.mxu0 %v1488
          %2209 = vmatpush.msra.mxu0 %v1480
          %2210 = vmatpush.msra.mxu0 %v1472
          %2211 = vmatpush.msra.mxu0 %v1464
          %2212 = vmatpush.msra.mxu0 %v1456
          %2213 = vmatpush.msra.mxu0 %v1448
          %2214 = vmatpush.msra.mxu0 %v1440
          %2215 = vmatpush.msra.mxu0 %v1432
          %2216 = vmatpush.msra.mxu0 %v1424
          %2217 = vmatpush.msra.mxu0 %v1416
          %2218 = vmatmul.f32.gmra.mxu0 %v1410
          %v2219 = vpop.f32.mrf.mxu0
          %v2220 = vadd.f32 %v2186, %v2219
          %2221 = vdwg.mxu0
          %2222 = vmatpush.msra.mxu0 %v1664
          %2223 = vmatpush.msra.mxu0 %v1656
          %2224 = vmatpush.msra.mxu0 %v1648
          %2225 = vmatpush.msra.mxu0 %v1640
          %2226 = vmatpush.msra.mxu0 %v1632
          %2227 = vmatpush.msra.mxu0 %v1624
          %2228 = vmatpush.msra.mxu0 %v1616
          %2229 = vmatpush.msra.mxu0 %v1608
          %2230 = vmatpush.msra.mxu0 %v1600
          %2231 = vmatpush.msra.mxu0 %v1592
          %2232 = vmatpush.msra.mxu0 %v1584
          %2233 = vmatpush.msra.mxu0 %v1576
          %2234 = vmatpush.msra.mxu0 %v1568
          %2235 = vmatpush.msra.mxu0 %v1560
          %2236 = vmatpush.msra.mxu0 %v1552
          %2237 = vmatpush.msra.mxu0 %v1544
          %2238 = vmatmul.f32.gmra.mxu0 %v1411
          %v2239 = vpop.f32.mrf.mxu0
          %v2240 = vadd.f32 %v2220, %v2239
          %2241 = vdwg.mxu0
          %2242 = vmatpush.msra.mxu0 %v1792
          %2243 = vmatpush.msra.mxu0 %v1784
          %2244 = vmatpush.msra.mxu0 %v1776
          %2245 = vmatpush.msra.mxu0 %v1768
          %2246 = vmatpush.msra.mxu0 %v1760
          %2247 = vmatpush.msra.mxu0 %v1752
          %2248 = vmatpush.msra.mxu0 %v1744
          %2249 = vmatpush.msra.mxu0 %v1736
          %2250 = vmatpush.msra.mxu0 %v1728
          %2251 = vmatpush.msra.mxu0 %v1720
          %2252 = vmatpush.msra.mxu0 %v1712
          %2253 = vmatpush.msra.mxu0 %v1704
          %2254 = vmatpush.msra.mxu0 %v1696
          %2255 = vmatpush.msra.mxu0 %v1688
          %2256 = vmatpush.msra.mxu0 %v1680
          %2257 = vmatpush.msra.mxu0 %v1672
          %2258 = vmatmul.f32.gmra.mxu0 %v1412
          %v2259 = vpop.f32.mrf.mxu0
          %v2260 = vadd.f32 %v2240, %v2259
          %2261 = vdwg.mxu0
          %2262 = vmatpush.msra.mxu0 %v1920
          %2263 = vmatpush.msra.mxu0 %v1912
          %2264 = vmatpush.msra.mxu0 %v1904
          %2265 = vmatpush.msra.mxu0 %v1896
          %2266 = vmatpush.msra.mxu0 %v1888
          %2267 = vmatpush.msra.mxu0 %v1880
          %2268 = vmatpush.msra.mxu0 %v1872
          %2269 = vmatpush.msra.mxu0 %v1864
          %2270 = vmatpush.msra.mxu0 %v1856
          %2271 = vmatpush.msra.mxu0 %v1848
          %2272 = vmatpush.msra.mxu0 %v1840
          %2273 = vmatpush.msra.mxu0 %v1832
          %2274 = vmatpush.msra.mxu0 %v1824
          %2275 = vmatpush.msra.mxu0 %v1816
          %2276 = vmatpush.msra.mxu0 %v1808
          %2277 = vmatpush.msra.mxu0 %v1800
          %2278 = vmatmul.f32.gmra.mxu0 %v1413
          %v2279 = vpop.f32.mrf.mxu0
          %v2280 = vadd.f32 %v2260, %v2279
          %2281 = vdwg.mxu0
          %2282 = vmatpush.msra.mxu0 %v2048
          %2283 = vmatpush.msra.mxu0 %v2040
          %2284 = vmatpush.msra.mxu0 %v2032
          %2285 = vmatpush.msra.mxu0 %v2024
          %2286 = vmatpush.msra.mxu0 %v2016
          %2287 = vmatpush.msra.mxu0 %v2008
          %2288 = vmatpush.msra.mxu0 %v2000
          %2289 = vmatpush.msra.mxu0 %v1992
          %2290 = vmatpush.msra.mxu0 %v1984
          %2291 = vmatpush.msra.mxu0 %v1976
          %2292 = vmatpush.msra.mxu0 %v1968
          %2293 = vmatpush.msra.mxu0 %v1960
          %2294 = vmatpush.msra.mxu0 %v1952
          %2295 = vmatpush.msra.mxu0 %v1944
          %2296 = vmatpush.msra.mxu0 %v1936
          %2297 = vmatpush.msra.mxu0 %v1928
          %2298 = vmatmul.f32.gmra.mxu0 %v1414
          %v2299 = vpop.f32.mrf.mxu0
          %v2300 = vadd.f32 %v2280, %v2299
          %2301 = vdwg.mxu0
          %2302 = vmatpush.msra.mxu0 %v2176
          %2303 = vmatpush.msra.mxu0 %v2168
          %2304 = vmatpush.msra.mxu0 %v2160
          %2305 = vmatpush.msra.mxu0 %v2152
          %2306 = vmatpush.msra.mxu0 %v2144
          %2307 = vmatpush.msra.mxu0 %v2136
          %2308 = vmatpush.msra.mxu0 %v2128
          %2309 = vmatpush.msra.mxu0 %v2120
          %2310 = vmatpush.msra.mxu0 %v2112
          %2311 = vmatpush.msra.mxu0 %v2104
          %2312 = vmatpush.msra.mxu0 %v2096
          %2313 = vmatpush.msra.mxu0 %v2088
          %2314 = vmatpush.msra.mxu0 %v2080
          %2315 = vmatpush.msra.mxu0 %v2072
          %2316 = vmatpush.msra.mxu0 %v2064
          %2317 = vmatpush.msra.mxu0 %v2056
          %2318 = vmatmul.f32.gmra.mxu0 %v1415
          %v2319 = vpop.f32.mrf.mxu0
          %v2320 = vadd.f32 %v2300, %v2319
          %2321 = vdwg.mxu0
          %2322 = vmatpush.msra.mxu0 %v1537
          %2323 = vmatpush.msra.mxu0 %v1529
          %2324 = vmatpush.msra.mxu0 %v1521
          %2325 = vmatpush.msra.mxu0 %v1513
          %2326 = vmatpush.msra.mxu0 %v1505
          %2327 = vmatpush.msra.mxu0 %v1497
          %2328 = vmatpush.msra.mxu0 %v1489
          %2329 = vmatpush.msra.mxu0 %v1481
          %2330 = vmatpush.msra.mxu0 %v1473
          %2331 = vmatpush.msra.mxu0 %v1465
          %2332 = vmatpush.msra.mxu0 %v1457
          %2333 = vmatpush.msra.mxu0 %v1449
          %2334 = vmatpush.msra.mxu0 %v1441
          %2335 = vmatpush.msra.mxu0 %v1433
          %2336 = vmatpush.msra.mxu0 %v1425
          %2337 = vmatpush.msra.mxu0 %v1417
          %2338 = vmatmul.f32.gmra.mxu0 %v1410
          %v2339 = vpop.f32.mrf.mxu0
          %v2340 = vadd.f32 %v2187, %v2339
          %2341 = vdwg.mxu0
          %2342 = vmatpush.msra.mxu0 %v1665
          %2343 = vmatpush.msra.mxu0 %v1657
          %2344 = vmatpush.msra.mxu0 %v1649
          %2345 = vmatpush.msra.mxu0 %v1641
          %2346 = vmatpush.msra.mxu0 %v1633
          %2347 = vmatpush.msra.mxu0 %v1625
          %2348 = vmatpush.msra.mxu0 %v1617
          %2349 = vmatpush.msra.mxu0 %v1609
          %2350 = vmatpush.msra.mxu0 %v1601
          %2351 = vmatpush.msra.mxu0 %v1593
          %2352 = vmatpush.msra.mxu0 %v1585
          %2353 = vmatpush.msra.mxu0 %v1577
          %2354 = vmatpush.msra.mxu0 %v1569
          %2355 = vmatpush.msra.mxu0 %v1561
          %2356 = vmatpush.msra.mxu0 %v1553
          %2357 = vmatpush.msra.mxu0 %v1545
          %2358 = vmatmul.f32.gmra.mxu0 %v1411
          %v2359 = vpop.f32.mrf.mxu0
          %v2360 = vadd.f32 %v2340, %v2359
          %2361 = vdwg.mxu0
          %2362 = vmatpush.msra.mxu0 %v1793
          %2363 = vmatpush.msra.mxu0 %v1785
          %2364 = vmatpush.msra.mxu0 %v1777
          %2365 = vmatpush.msra.mxu0 %v1769
          %2366 = vmatpush.msra.mxu0 %v1761
          %2367 = vmatpush.msra.mxu0 %v1753
          %2368 = vmatpush.msra.mxu0 %v1745
          %2369 = vmatpush.msra.mxu0 %v1737
          %2370 = vmatpush.msra.mxu0 %v1729
          %2371 = vmatpush.msra.mxu0 %v1721
          %2372 = vmatpush.msra.mxu0 %v1713
          %2373 = vmatpush.msra.mxu0 %v1705
          %2374 = vmatpush.msra.mxu0 %v1697
          %2375 = vmatpush.msra.mxu0 %v1689
          %2376 = vmatpush.msra.mxu0 %v1681
          %2377 = vmatpush.msra.mxu0 %v1673
          %2378 = vmatmul.f32.gmra.mxu0 %v1412
          %v2379 = vpop.f32.mrf.mxu0
          %v2380 = vadd.f32 %v2360, %v2379
          %2381 = vdwg.mxu0
          %2382 = vmatpush.msra.mxu0 %v1921
          %2383 = vmatpush.msra.mxu0 %v1913
          %2384 = vmatpush.msra.mxu0 %v1905
          %2385 = vmatpush.msra.mxu0 %v1897
          %2386 = vmatpush.msra.mxu0 %v1889
          %2387 = vmatpush.msra.mxu0 %v1881
          %2388 = vmatpush.msra.mxu0 %v1873
          %2389 = vmatpush.msra.mxu0 %v1865
          %2390 = vmatpush.msra.mxu0 %v1857
          %2391 = vmatpush.msra.mxu0 %v1849
          %2392 = vmatpush.msra.mxu0 %v1841
          %2393 = vmatpush.msra.mxu0 %v1833
          %2394 = vmatpush.msra.mxu0 %v1825
          %2395 = vmatpush.msra.mxu0 %v1817
          %2396 = vmatpush.msra.mxu0 %v1809
          %2397 = vmatpush.msra.mxu0 %v1801
          %2398 = vmatmul.f32.gmra.mxu0 %v1413
          %v2399 = vpop.f32.mrf.mxu0
          %v2400 = vadd.f32 %v2380, %v2399
          %2401 = vdwg.mxu0
          %2402 = vmatpush.msra.mxu0 %v2049
          %2403 = vmatpush.msra.mxu0 %v2041
          %2404 = vmatpush.msra.mxu0 %v2033
          %2405 = vmatpush.msra.mxu0 %v2025
          %2406 = vmatpush.msra.mxu0 %v2017
          %2407 = vmatpush.msra.mxu0 %v2009
          %2408 = vmatpush.msra.mxu0 %v2001
          %2409 = vmatpush.msra.mxu0 %v1993
          %2410 = vmatpush.msra.mxu0 %v1985
          %2411 = vmatpush.msra.mxu0 %v1977
          %2412 = vmatpush.msra.mxu0 %v1969
          %2413 = vmatpush.msra.mxu0 %v1961
          %2414 = vmatpush.msra.mxu0 %v1953
          %2415 = vmatpush.msra.mxu0 %v1945
          %2416 = vmatpush.msra.mxu0 %v1937
          %2417 = vmatpush.msra.mxu0 %v1929
          %2418 = vmatmul.f32.gmra.mxu0 %v1414
          %v2419 = vpop.f32.mrf.mxu0
          %v2420 = vadd.f32 %v2400, %v2419
          %2421 = vdwg.mxu0
          %2422 = vmatpush.msra.mxu0 %v2177
          %2423 = vmatpush.msra.mxu0 %v2169
          %2424 = vmatpush.msra.mxu0 %v2161
          %2425 = vmatpush.msra.mxu0 %v2153
          %2426 = vmatpush.msra.mxu0 %v2145
          %2427 = vmatpush.msra.mxu0 %v2137
          %2428 = vmatpush.msra.mxu0 %v2129
          %2429 = vmatpush.msra.mxu0 %v2121
          %2430 = vmatpush.msra.mxu0 %v2113
          %2431 = vmatpush.msra.mxu0 %v2105
          %2432 = vmatpush.msra.mxu0 %v2097
          %2433 = vmatpush.msra.mxu0 %v2089
          %2434 = vmatpush.msra.mxu0 %v2081
          %2435 = vmatpush.msra.mxu0 %v2073
          %2436 = vmatpush.msra.mxu0 %v2065
          %2437 = vmatpush.msra.mxu0 %v2057
          %2438 = vmatmul.f32.gmra.mxu0 %v1415
          %v2439 = vpop.f32.mrf.mxu0
          %v2440 = vadd.f32 %v2420, %v2439
          %2441 = vdwg.mxu0
          %2442 = vmatpush.msra.mxu0 %v1538
          %2443 = vmatpush.msra.mxu0 %v1530
          %2444 = vmatpush.msra.mxu0 %v1522
          %2445 = vmatpush.msra.mxu0 %v1514
          %2446 = vmatpush.msra.mxu0 %v1506
          %2447 = vmatpush.msra.mxu0 %v1498
          %2448 = vmatpush.msra.mxu0 %v1490
          %2449 = vmatpush.msra.mxu0 %v1482
          %2450 = vmatpush.msra.mxu0 %v1474
          %2451 = vmatpush.msra.mxu0 %v1466
          %2452 = vmatpush.msra.mxu0 %v1458
          %2453 = vmatpush.msra.mxu0 %v1450
          %2454 = vmatpush.msra.mxu0 %v1442
          %2455 = vmatpush.msra.mxu0 %v1434
          %2456 = vmatpush.msra.mxu0 %v1426
          %2457 = vmatpush.msra.mxu0 %v1418
          %2458 = vmatmul.f32.gmra.mxu0 %v1410
          %v2459 = vpop.f32.mrf.mxu0
          %v2460 = vadd.f32 %v2188, %v2459
          %2461 = vdwg.mxu0
          %2462 = vmatpush.msra.mxu0 %v1666
          %2463 = vmatpush.msra.mxu0 %v1658
          %2464 = vmatpush.msra.mxu0 %v1650
          %2465 = vmatpush.msra.mxu0 %v1642
          %2466 = vmatpush.msra.mxu0 %v1634
          %2467 = vmatpush.msra.mxu0 %v1626
          %2468 = vmatpush.msra.mxu0 %v1618
          %2469 = vmatpush.msra.mxu0 %v1610
          %2470 = vmatpush.msra.mxu0 %v1602
          %2471 = vmatpush.msra.mxu0 %v1594
          %2472 = vmatpush.msra.mxu0 %v1586
          %2473 = vmatpush.msra.mxu0 %v1578
          %2474 = vmatpush.msra.mxu0 %v1570
          %2475 = vmatpush.msra.mxu0 %v1562
          %2476 = vmatpush.msra.mxu0 %v1554
          %2477 = vmatpush.msra.mxu0 %v1546
          %2478 = vmatmul.f32.gmra.mxu0 %v1411
          %v2479 = vpop.f32.mrf.mxu0
          %v2480 = vadd.f32 %v2460, %v2479
          %2481 = vdwg.mxu0
          %2482 = vmatpush.msra.mxu0 %v1794
          %2483 = vmatpush.msra.mxu0 %v1786
          %2484 = vmatpush.msra.mxu0 %v1778
          %2485 = vmatpush.msra.mxu0 %v1770
          %2486 = vmatpush.msra.mxu0 %v1762
          %2487 = vmatpush.msra.mxu0 %v1754
          %2488 = vmatpush.msra.mxu0 %v1746
          %2489 = vmatpush.msra.mxu0 %v1738
          %2490 = vmatpush.msra.mxu0 %v1730
          %2491 = vmatpush.msra.mxu0 %v1722
          %2492 = vmatpush.msra.mxu0 %v1714
          %2493 = vmatpush.msra.mxu0 %v1706
          %2494 = vmatpush.msra.mxu0 %v1698
          %2495 = vmatpush.msra.mxu0 %v1690
          %2496 = vmatpush.msra.mxu0 %v1682
          %2497 = vmatpush.msra.mxu0 %v1674
          %2498 = vmatmul.f32.gmra.mxu0 %v1412
          %v2499 = vpop.f32.mrf.mxu0
          %v2500 = vadd.f32 %v2480, %v2499
          %2501 = vdwg.mxu0
          %2502 = vmatpush.msra.mxu0 %v1922
          %2503 = vmatpush.msra.mxu0 %v1914
          %2504 = vmatpush.msra.mxu0 %v1906
          %2505 = vmatpush.msra.mxu0 %v1898
          %2506 = vmatpush.msra.mxu0 %v1890
          %2507 = vmatpush.msra.mxu0 %v1882
          %2508 = vmatpush.msra.mxu0 %v1874
          %2509 = vmatpush.msra.mxu0 %v1866
          %2510 = vmatpush.msra.mxu0 %v1858
          %2511 = vmatpush.msra.mxu0 %v1850
          %2512 = vmatpush.msra.mxu0 %v1842
          %2513 = vmatpush.msra.mxu0 %v1834
          %2514 = vmatpush.msra.mxu0 %v1826
          %2515 = vmatpush.msra.mxu0 %v1818
          %2516 = vmatpush.msra.mxu0 %v1810
          %2517 = vmatpush.msra.mxu0 %v1802
          %2518 = vmatmul.f32.gmra.mxu0 %v1413
          %v2519 = vpop.f32.mrf.mxu0
          %v2520 = vadd.f32 %v2500, %v2519
          %2521 = vdwg.mxu0
          %2522 = vmatpush.msra.mxu0 %v2050
          %2523 = vmatpush.msra.mxu0 %v2042
          %2524 = vmatpush.msra.mxu0 %v2034
          %2525 = vmatpush.msra.mxu0 %v2026
          %2526 = vmatpush.msra.mxu0 %v2018
          %2527 = vmatpush.msra.mxu0 %v2010
          %2528 = vmatpush.msra.mxu0 %v2002
          %2529 = vmatpush.msra.mxu0 %v1994
          %2530 = vmatpush.msra.mxu0 %v1986
          %2531 = vmatpush.msra.mxu0 %v1978
          %2532 = vmatpush.msra.mxu0 %v1970
          %2533 = vmatpush.msra.mxu0 %v1962
          %2534 = vmatpush.msra.mxu0 %v1954
          %2535 = vmatpush.msra.mxu0 %v1946
          %2536 = vmatpush.msra.mxu0 %v1938
          %2537 = vmatpush.msra.mxu0 %v1930
          %2538 = vmatmul.f32.gmra.mxu0 %v1414
          %v2539 = vpop.f32.mrf.mxu0
          %v2540 = vadd.f32 %v2520, %v2539
          %2541 = vdwg.mxu0
          %2542 = vmatpush.msra.mxu0 %v2178
          %2543 = vmatpush.msra.mxu0 %v2170
          %2544 = vmatpush.msra.mxu0 %v2162
          %2545 = vmatpush.msra.mxu0 %v2154
          %2546 = vmatpush.msra.mxu0 %v2146
          %2547 = vmatpush.msra.mxu0 %v2138
          %2548 = vmatpush.msra.mxu0 %v2130
          %2549 = vmatpush.msra.mxu0 %v2122
          %2550 = vmatpush.msra.mxu0 %v2114
          %2551 = vmatpush.msra.mxu0 %v2106
          %2552 = vmatpush.msra.mxu0 %v2098
          %2553 = vmatpush.msra.mxu0 %v2090
          %2554 = vmatpush.msra.mxu0 %v2082
          %2555 = vmatpush.msra.mxu0 %v2074
          %2556 = vmatpush.msra.mxu0 %v2066
          %2557 = vmatpush.msra.mxu0 %v2058
          %2558 = vmatmul.f32.gmra.mxu0 %v1415
          %v2559 = vpop.f32.mrf.mxu0
          %v2560 = vadd.f32 %v2540, %v2559
          %2561 = vdwg.mxu0
          %2562 = vmatpush.msra.mxu0 %v1539
          %2563 = vmatpush.msra.mxu0 %v1531
          %2564 = vmatpush.msra.mxu0 %v1523
          %2565 = vmatpush.msra.mxu0 %v1515
          %2566 = vmatpush.msra.mxu0 %v1507
          %2567 = vmatpush.msra.mxu0 %v1499
          %2568 = vmatpush.msra.mxu0 %v1491
          %2569 = vmatpush.msra.mxu0 %v1483
          %2570 = vmatpush.msra.mxu0 %v1475
          %2571 = vmatpush.msra.mxu0 %v1467
          %2572 = vmatpush.msra.mxu0 %v1459
          %2573 = vmatpush.msra.mxu0 %v1451
          %2574 = vmatpush.msra.mxu0 %v1443
          %2575 = vmatpush.msra.mxu0 %v1435
          %2576 = vmatpush.msra.mxu0 %v1427
          %2577 = vmatpush.msra.mxu0 %v1419
          %2578 = vmatmul.f32.gmra.mxu0 %v1410
          %v2579 = vpop.f32.mrf.mxu0
          %v2580 = vadd.f32 %v2189, %v2579
          %2581 = vdwg.mxu0
          %2582 = vmatpush.msra.mxu0 %v1667
          %2583 = vmatpush.msra.mxu0 %v1659
          %2584 = vmatpush.msra.mxu0 %v1651
          %2585 = vmatpush.msra.mxu0 %v1643
          %2586 = vmatpush.msra.mxu0 %v1635
          %2587 = vmatpush.msra.mxu0 %v1627
          %2588 = vmatpush.msra.mxu0 %v1619
          %2589 = vmatpush.msra.mxu0 %v1611
          %2590 = vmatpush.msra.mxu0 %v1603
          %2591 = vmatpush.msra.mxu0 %v1595
          %2592 = vmatpush.msra.mxu0 %v1587
          %2593 = vmatpush.msra.mxu0 %v1579
          %2594 = vmatpush.msra.mxu0 %v1571
          %2595 = vmatpush.msra.mxu0 %v1563
          %2596 = vmatpush.msra.mxu0 %v1555
          %2597 = vmatpush.msra.mxu0 %v1547
          %2598 = vmatmul.f32.gmra.mxu0 %v1411
          %v2599 = vpop.f32.mrf.mxu0
          %v2600 = vadd.f32 %v2580, %v2599
          %2601 = vdwg.mxu0
          %2602 = vmatpush.msra.mxu0 %v1795
          %2603 = vmatpush.msra.mxu0 %v1787
          %2604 = vmatpush.msra.mxu0 %v1779
          %2605 = vmatpush.msra.mxu0 %v1771
          %2606 = vmatpush.msra.mxu0 %v1763
          %2607 = vmatpush.msra.mxu0 %v1755
          %2608 = vmatpush.msra.mxu0 %v1747
          %2609 = vmatpush.msra.mxu0 %v1739
          %2610 = vmatpush.msra.mxu0 %v1731
          %2611 = vmatpush.msra.mxu0 %v1723
          %2612 = vmatpush.msra.mxu0 %v1715
          %2613 = vmatpush.msra.mxu0 %v1707
          %2614 = vmatpush.msra.mxu0 %v1699
          %2615 = vmatpush.msra.mxu0 %v1691
          %2616 = vmatpush.msra.mxu0 %v1683
          %2617 = vmatpush.msra.mxu0 %v1675
          %2618 = vmatmul.f32.gmra.mxu0 %v1412
          %v2619 = vpop.f32.mrf.mxu0
          %v2620 = vadd.f32 %v2600, %v2619
          %2621 = vdwg.mxu0
          %2622 = vmatpush.msra.mxu0 %v1923
          %2623 = vmatpush.msra.mxu0 %v1915
          %2624 = vmatpush.msra.mxu0 %v1907
          %2625 = vmatpush.msra.mxu0 %v1899
          %2626 = vmatpush.msra.mxu0 %v1891
          %2627 = vmatpush.msra.mxu0 %v1883
          %2628 = vmatpush.msra.mxu0 %v1875
          %2629 = vmatpush.msra.mxu0 %v1867
          %2630 = vmatpush.msra.mxu0 %v1859
          %2631 = vmatpush.msra.mxu0 %v1851
          %2632 = vmatpush.msra.mxu0 %v1843
          %2633 = vmatpush.msra.mxu0 %v1835
          %2634 = vmatpush.msra.mxu0 %v1827
          %2635 = vmatpush.msra.mxu0 %v1819
          %2636 = vmatpush.msra.mxu0 %v1811
          %2637 = vmatpush.msra.mxu0 %v1803
          %2638 = vmatmul.f32.gmra.mxu0 %v1413
          %v2639 = vpop.f32.mrf.mxu0
          %v2640 = vadd.f32 %v2620, %v2639
          %2641 = vdwg.mxu0
          %2642 = vmatpush.msra.mxu0 %v2051
          %2643 = vmatpush.msra.mxu0 %v2043
          %2644 = vmatpush.msra.mxu0 %v2035
          %2645 = vmatpush.msra.mxu0 %v2027
          %2646 = vmatpush.msra.mxu0 %v2019
          %2647 = vmatpush.msra.mxu0 %v2011
          %2648 = vmatpush.msra.mxu0 %v2003
          %2649 = vmatpush.msra.mxu0 %v1995
          %2650 = vmatpush.msra.mxu0 %v1987
          %2651 = vmatpush.msra.mxu0 %v1979
          %2652 = vmatpush.msra.mxu0 %v1971
          %2653 = vmatpush.msra.mxu0 %v1963
          %2654 = vmatpush.msra.mxu0 %v1955
          %2655 = vmatpush.msra.mxu0 %v1947
          %2656 = vmatpush.msra.mxu0 %v1939
          %2657 = vmatpush.msra.mxu0 %v1931
          %2658 = vmatmul.f32.gmra.mxu0 %v1414
          %v2659 = vpop.f32.mrf.mxu0
          %v2660 = vadd.f32 %v2640, %v2659
          %2661 = vdwg.mxu0
          %2662 = vmatpush.msra.mxu0 %v2179
          %2663 = vmatpush.msra.mxu0 %v2171
          %2664 = vmatpush.msra.mxu0 %v2163
          %2665 = vmatpush.msra.mxu0 %v2155
          %2666 = vmatpush.msra.mxu0 %v2147
          %2667 = vmatpush.msra.mxu0 %v2139
          %2668 = vmatpush.msra.mxu0 %v2131
          %2669 = vmatpush.msra.mxu0 %v2123
          %2670 = vmatpush.msra.mxu0 %v2115
          %2671 = vmatpush.msra.mxu0 %v2107
          %2672 = vmatpush.msra.mxu0 %v2099
          %2673 = vmatpush.msra.mxu0 %v2091
          %2674 = vmatpush.msra.mxu0 %v2083
          %2675 = vmatpush.msra.mxu0 %v2075
          %2676 = vmatpush.msra.mxu0 %v2067
          %2677 = vmatpush.msra.mxu0 %v2059
          %2678 = vmatmul.f32.gmra.mxu0 %v1415
          %v2679 = vpop.f32.mrf.mxu0
          %v2680 = vadd.f32 %v2660, %v2679
          %2681 = vdwg.mxu0
          %2682 = vmatpush.msra.mxu0 %v1540
          %2683 = vmatpush.msra.mxu0 %v1532
          %2684 = vmatpush.msra.mxu0 %v1524
          %2685 = vmatpush.msra.mxu0 %v1516
          %2686 = vmatpush.msra.mxu0 %v1508
          %2687 = vmatpush.msra.mxu0 %v1500
          %2688 = vmatpush.msra.mxu0 %v1492
          %2689 = vmatpush.msra.mxu0 %v1484
          %2690 = vmatpush.msra.mxu0 %v1476
          %2691 = vmatpush.msra.mxu0 %v1468
          %2692 = vmatpush.msra.mxu0 %v1460
          %2693 = vmatpush.msra.mxu0 %v1452
          %2694 = vmatpush.msra.mxu0 %v1444
          %2695 = vmatpush.msra.mxu0 %v1436
          %2696 = vmatpush.msra.mxu0 %v1428
          %2697 = vmatpush.msra.mxu0 %v1420
          %2698 = vmatmul.f32.gmra.mxu0 %v1410
          %v2699 = vpop.f32.mrf.mxu0
          %v2700 = vadd.f32 %v2190, %v2699
          %2701 = vdwg.mxu0
          %2702 = vmatpush.msra.mxu0 %v1668
          %2703 = vmatpush.msra.mxu0 %v1660
          %2704 = vmatpush.msra.mxu0 %v1652
          %2705 = vmatpush.msra.mxu0 %v1644
          %2706 = vmatpush.msra.mxu0 %v1636
          %2707 = vmatpush.msra.mxu0 %v1628
          %2708 = vmatpush.msra.mxu0 %v1620
          %2709 = vmatpush.msra.mxu0 %v1612
          %2710 = vmatpush.msra.mxu0 %v1604
          %2711 = vmatpush.msra.mxu0 %v1596
          %2712 = vmatpush.msra.mxu0 %v1588
          %2713 = vmatpush.msra.mxu0 %v1580
          %2714 = vmatpush.msra.mxu0 %v1572
          %2715 = vmatpush.msra.mxu0 %v1564
          %2716 = vmatpush.msra.mxu0 %v1556
          %2717 = vmatpush.msra.mxu0 %v1548
          %2718 = vmatmul.f32.gmra.mxu0 %v1411
          %v2719 = vpop.f32.mrf.mxu0
          %v2720 = vadd.f32 %v2700, %v2719
          %2721 = vdwg.mxu0
          %2722 = vmatpush.msra.mxu0 %v1796
          %2723 = vmatpush.msra.mxu0 %v1788
          %2724 = vmatpush.msra.mxu0 %v1780
          %2725 = vmatpush.msra.mxu0 %v1772
          %2726 = vmatpush.msra.mxu0 %v1764
          %2727 = vmatpush.msra.mxu0 %v1756
          %2728 = vmatpush.msra.mxu0 %v1748
          %2729 = vmatpush.msra.mxu0 %v1740
          %2730 = vmatpush.msra.mxu0 %v1732
          %2731 = vmatpush.msra.mxu0 %v1724
          %2732 = vmatpush.msra.mxu0 %v1716
          %2733 = vmatpush.msra.mxu0 %v1708
          %2734 = vmatpush.msra.mxu0 %v1700
          %2735 = vmatpush.msra.mxu0 %v1692
          %2736 = vmatpush.msra.mxu0 %v1684
          %2737 = vmatpush.msra.mxu0 %v1676
          %2738 = vmatmul.f32.gmra.mxu0 %v1412
          %v2739 = vpop.f32.mrf.mxu0
          %v2740 = vadd.f32 %v2720, %v2739
          %2741 = vdwg.mxu0
          %2742 = vmatpush.msra.mxu0 %v1924
          %2743 = vmatpush.msra.mxu0 %v1916
          %2744 = vmatpush.msra.mxu0 %v1908
          %2745 = vmatpush.msra.mxu0 %v1900
          %2746 = vmatpush.msra.mxu0 %v1892
          %2747 = vmatpush.msra.mxu0 %v1884
          %2748 = vmatpush.msra.mxu0 %v1876
          %2749 = vmatpush.msra.mxu0 %v1868
          %2750 = vmatpush.msra.mxu0 %v1860
          %2751 = vmatpush.msra.mxu0 %v1852
          %2752 = vmatpush.msra.mxu0 %v1844
          %2753 = vmatpush.msra.mxu0 %v1836
          %2754 = vmatpush.msra.mxu0 %v1828
          %2755 = vmatpush.msra.mxu0 %v1820
          %2756 = vmatpush.msra.mxu0 %v1812
          %2757 = vmatpush.msra.mxu0 %v1804
          %2758 = vmatmul.f32.gmra.mxu0 %v1413
          %v2759 = vpop.f32.mrf.mxu0
          %v2760 = vadd.f32 %v2740, %v2759
          %2761 = vdwg.mxu0
          %2762 = vmatpush.msra.mxu0 %v2052
          %2763 = vmatpush.msra.mxu0 %v2044
          %2764 = vmatpush.msra.mxu0 %v2036
          %2765 = vmatpush.msra.mxu0 %v2028
          %2766 = vmatpush.msra.mxu0 %v2020
          %2767 = vmatpush.msra.mxu0 %v2012
          %2768 = vmatpush.msra.mxu0 %v2004
          %2769 = vmatpush.msra.mxu0 %v1996
          %2770 = vmatpush.msra.mxu0 %v1988
          %2771 = vmatpush.msra.mxu0 %v1980
          %2772 = vmatpush.msra.mxu0 %v1972
          %2773 = vmatpush.msra.mxu0 %v1964
          %2774 = vmatpush.msra.mxu0 %v1956
          %2775 = vmatpush.msra.mxu0 %v1948
          %2776 = vmatpush.msra.mxu0 %v1940
          %2777 = vmatpush.msra.mxu0 %v1932
          %2778 = vmatmul.f32.gmra.mxu0 %v1414
          %v2779 = vpop.f32.mrf.mxu0
          %v2780 = vadd.f32 %v2760, %v2779
          %2781 = vdwg.mxu0
          %2782 = vmatpush.msra.mxu0 %v2180
          %2783 = vmatpush.msra.mxu0 %v2172
          %2784 = vmatpush.msra.mxu0 %v2164
          %2785 = vmatpush.msra.mxu0 %v2156
          %2786 = vmatpush.msra.mxu0 %v2148
          %2787 = vmatpush.msra.mxu0 %v2140
          %2788 = vmatpush.msra.mxu0 %v2132
          %2789 = vmatpush.msra.mxu0 %v2124
          %2790 = vmatpush.msra.mxu0 %v2116
          %2791 = vmatpush.msra.mxu0 %v2108
          %2792 = vmatpush.msra.mxu0 %v2100
          %2793 = vmatpush.msra.mxu0 %v2092
          %2794 = vmatpush.msra.mxu0 %v2084
          %2795 = vmatpush.msra.mxu0 %v2076
          %2796 = vmatpush.msra.mxu0 %v2068
          %2797 = vmatpush.msra.mxu0 %v2060
          %2798 = vmatmul.f32.gmra.mxu0 %v1415
          %v2799 = vpop.f32.mrf.mxu0
          %v2800 = vadd.f32 %v2780, %v2799
          %2801 = vdwg.mxu0
          %2802 = vmatpush.msra.mxu0 %v1541
          %2803 = vmatpush.msra.mxu0 %v1533
          %2804 = vmatpush.msra.mxu0 %v1525
          %2805 = vmatpush.msra.mxu0 %v1517
          %2806 = vmatpush.msra.mxu0 %v1509
          %2807 = vmatpush.msra.mxu0 %v1501
          %2808 = vmatpush.msra.mxu0 %v1493
          %2809 = vmatpush.msra.mxu0 %v1485
          %2810 = vmatpush.msra.mxu0 %v1477
          %2811 = vmatpush.msra.mxu0 %v1469
          %2812 = vmatpush.msra.mxu0 %v1461
          %2813 = vmatpush.msra.mxu0 %v1453
          %2814 = vmatpush.msra.mxu0 %v1445
          %2815 = vmatpush.msra.mxu0 %v1437
          %2816 = vmatpush.msra.mxu0 %v1429
          %2817 = vmatpush.msra.mxu0 %v1421
          %2818 = vmatmul.f32.gmra.mxu0 %v1410
          %v2819 = vpop.f32.mrf.mxu0
          %v2820 = vadd.f32 %v2191, %v2819
          %2821 = vdwg.mxu0
          %2822 = vmatpush.msra.mxu0 %v1669
          %2823 = vmatpush.msra.mxu0 %v1661
          %2824 = vmatpush.msra.mxu0 %v1653
          %2825 = vmatpush.msra.mxu0 %v1645
          %2826 = vmatpush.msra.mxu0 %v1637
          %2827 = vmatpush.msra.mxu0 %v1629
          %2828 = vmatpush.msra.mxu0 %v1621
          %2829 = vmatpush.msra.mxu0 %v1613
          %2830 = vmatpush.msra.mxu0 %v1605
          %2831 = vmatpush.msra.mxu0 %v1597
          %2832 = vmatpush.msra.mxu0 %v1589
          %2833 = vmatpush.msra.mxu0 %v1581
          %2834 = vmatpush.msra.mxu0 %v1573
          %2835 = vmatpush.msra.mxu0 %v1565
          %2836 = vmatpush.msra.mxu0 %v1557
          %2837 = vmatpush.msra.mxu0 %v1549
          %2838 = vmatmul.f32.gmra.mxu0 %v1411
          %v2839 = vpop.f32.mrf.mxu0
          %v2840 = vadd.f32 %v2820, %v2839
          %2841 = vdwg.mxu0
          %2842 = vmatpush.msra.mxu0 %v1797
          %2843 = vmatpush.msra.mxu0 %v1789
          %2844 = vmatpush.msra.mxu0 %v1781
          %2845 = vmatpush.msra.mxu0 %v1773
          %2846 = vmatpush.msra.mxu0 %v1765
          %2847 = vmatpush.msra.mxu0 %v1757
          %2848 = vmatpush.msra.mxu0 %v1749
          %2849 = vmatpush.msra.mxu0 %v1741
          %2850 = vmatpush.msra.mxu0 %v1733
          %2851 = vmatpush.msra.mxu0 %v1725
          %2852 = vmatpush.msra.mxu0 %v1717
          %2853 = vmatpush.msra.mxu0 %v1709
          %2854 = vmatpush.msra.mxu0 %v1701
          %2855 = vmatpush.msra.mxu0 %v1693
          %2856 = vmatpush.msra.mxu0 %v1685
          %2857 = vmatpush.msra.mxu0 %v1677
          %2858 = vmatmul.f32.gmra.mxu0 %v1412
          %v2859 = vpop.f32.mrf.mxu0
          %v2860 = vadd.f32 %v2840, %v2859
          %2861 = vdwg.mxu0
          %2862 = vmatpush.msra.mxu0 %v1925
          %2863 = vmatpush.msra.mxu0 %v1917
          %2864 = vmatpush.msra.mxu0 %v1909
          %2865 = vmatpush.msra.mxu0 %v1901
          %2866 = vmatpush.msra.mxu0 %v1893
          %2867 = vmatpush.msra.mxu0 %v1885
          %2868 = vmatpush.msra.mxu0 %v1877
          %2869 = vmatpush.msra.mxu0 %v1869
          %2870 = vmatpush.msra.mxu0 %v1861
          %2871 = vmatpush.msra.mxu0 %v1853
          %2872 = vmatpush.msra.mxu0 %v1845
          %2873 = vmatpush.msra.mxu0 %v1837
          %2874 = vmatpush.msra.mxu0 %v1829
          %2875 = vmatpush.msra.mxu0 %v1821
          %2876 = vmatpush.msra.mxu0 %v1813
          %2877 = vmatpush.msra.mxu0 %v1805
          %2878 = vmatmul.f32.gmra.mxu0 %v1413
          %v2879 = vpop.f32.mrf.mxu0
          %v2880 = vadd.f32 %v2860, %v2879
          %2881 = vdwg.mxu0
          %2882 = vmatpush.msra.mxu0 %v2053
          %2883 = vmatpush.msra.mxu0 %v2045
          %2884 = vmatpush.msra.mxu0 %v2037
          %2885 = vmatpush.msra.mxu0 %v2029
          %2886 = vmatpush.msra.mxu0 %v2021
          %2887 = vmatpush.msra.mxu0 %v2013
          %2888 = vmatpush.msra.mxu0 %v2005
          %2889 = vmatpush.msra.mxu0 %v1997
          %2890 = vmatpush.msra.mxu0 %v1989
          %2891 = vmatpush.msra.mxu0 %v1981
          %2892 = vmatpush.msra.mxu0 %v1973
          %2893 = vmatpush.msra.mxu0 %v1965
          %2894 = vmatpush.msra.mxu0 %v1957
          %2895 = vmatpush.msra.mxu0 %v1949
          %2896 = vmatpush.msra.mxu0 %v1941
          %2897 = vmatpush.msra.mxu0 %v1933
          %2898 = vmatmul.f32.gmra.mxu0 %v1414
          %v2899 = vpop.f32.mrf.mxu0
          %v2900 = vadd.f32 %v2880, %v2899
          %2901 = vdwg.mxu0
          %2902 = vmatpush.msra.mxu0 %v2181
          %2903 = vmatpush.msra.mxu0 %v2173
          %2904 = vmatpush.msra.mxu0 %v2165
          %2905 = vmatpush.msra.mxu0 %v2157
          %2906 = vmatpush.msra.mxu0 %v2149
          %2907 = vmatpush.msra.mxu0 %v2141
          %2908 = vmatpush.msra.mxu0 %v2133
          %2909 = vmatpush.msra.mxu0 %v2125
          %2910 = vmatpush.msra.mxu0 %v2117
          %2911 = vmatpush.msra.mxu0 %v2109
          %2912 = vmatpush.msra.mxu0 %v2101
          %2913 = vmatpush.msra.mxu0 %v2093
          %2914 = vmatpush.msra.mxu0 %v2085
          %2915 = vmatpush.msra.mxu0 %v2077
          %2916 = vmatpush.msra.mxu0 %v2069
          %2917 = vmatpush.msra.mxu0 %v2061
          %2918 = vmatmul.f32.gmra.mxu0 %v1415
          %v2919 = vpop.f32.mrf.mxu0
          %v2920 = vadd.f32 %v2900, %v2919
          %2921 = vdwg.mxu0
          %2922 = vmatpush.msra.mxu0 %v1542
          %2923 = vmatpush.msra.mxu0 %v1534
          %2924 = vmatpush.msra.mxu0 %v1526
          %2925 = vmatpush.msra.mxu0 %v1518
          %2926 = vmatpush.msra.mxu0 %v1510
          %2927 = vmatpush.msra.mxu0 %v1502
          %2928 = vmatpush.msra.mxu0 %v1494
          %2929 = vmatpush.msra.mxu0 %v1486
          %2930 = vmatpush.msra.mxu0 %v1478
          %2931 = vmatpush.msra.mxu0 %v1470
          %2932 = vmatpush.msra.mxu0 %v1462
          %2933 = vmatpush.msra.mxu0 %v1454
          %2934 = vmatpush.msra.mxu0 %v1446
          %2935 = vmatpush.msra.mxu0 %v1438
          %2936 = vmatpush.msra.mxu0 %v1430
          %2937 = vmatpush.msra.mxu0 %v1422
          %2938 = vmatmul.f32.gmra.mxu0 %v1410
          %v2939 = vpop.f32.mrf.mxu0
          %v2940 = vadd.f32 %v2192, %v2939
          %2941 = vdwg.mxu0
          %2942 = vmatpush.msra.mxu0 %v1670
          %2943 = vmatpush.msra.mxu0 %v1662
          %2944 = vmatpush.msra.mxu0 %v1654
          %2945 = vmatpush.msra.mxu0 %v1646
          %2946 = vmatpush.msra.mxu0 %v1638
          %2947 = vmatpush.msra.mxu0 %v1630
          %2948 = vmatpush.msra.mxu0 %v1622
          %2949 = vmatpush.msra.mxu0 %v1614
          %2950 = vmatpush.msra.mxu0 %v1606
          %2951 = vmatpush.msra.mxu0 %v1598
          %2952 = vmatpush.msra.mxu0 %v1590
          %2953 = vmatpush.msra.mxu0 %v1582
          %2954 = vmatpush.msra.mxu0 %v1574
          %2955 = vmatpush.msra.mxu0 %v1566
          %2956 = vmatpush.msra.mxu0 %v1558
          %2957 = vmatpush.msra.mxu0 %v1550
          %2958 = vmatmul.f32.gmra.mxu0 %v1411
          %v2959 = vpop.f32.mrf.mxu0
          %v2960 = vadd.f32 %v2940, %v2959
          %2961 = vdwg.mxu0
          %2962 = vmatpush.msra.mxu0 %v1798
          %2963 = vmatpush.msra.mxu0 %v1790
          %2964 = vmatpush.msra.mxu0 %v1782
          %2965 = vmatpush.msra.mxu0 %v1774
          %2966 = vmatpush.msra.mxu0 %v1766
          %2967 = vmatpush.msra.mxu0 %v1758
          %2968 = vmatpush.msra.mxu0 %v1750
          %2969 = vmatpush.msra.mxu0 %v1742
          %2970 = vmatpush.msra.mxu0 %v1734
          %2971 = vmatpush.msra.mxu0 %v1726
          %2972 = vmatpush.msra.mxu0 %v1718
          %2973 = vmatpush.msra.mxu0 %v1710
          %2974 = vmatpush.msra.mxu0 %v1702
          %2975 = vmatpush.msra.mxu0 %v1694
          %2976 = vmatpush.msra.mxu0 %v1686
          %2977 = vmatpush.msra.mxu0 %v1678
          %2978 = vmatmul.f32.gmra.mxu0 %v1412
          %v2979 = vpop.f32.mrf.mxu0
          %v2980 = vadd.f32 %v2960, %v2979
          %2981 = vdwg.mxu0
          %2982 = vmatpush.msra.mxu0 %v1926
          %2983 = vmatpush.msra.mxu0 %v1918
          %2984 = vmatpush.msra.mxu0 %v1910
          %2985 = vmatpush.msra.mxu0 %v1902
          %2986 = vmatpush.msra.mxu0 %v1894
          %2987 = vmatpush.msra.mxu0 %v1886
          %2988 = vmatpush.msra.mxu0 %v1878
          %2989 = vmatpush.msra.mxu0 %v1870
          %2990 = vmatpush.msra.mxu0 %v1862
          %2991 = vmatpush.msra.mxu0 %v1854
          %2992 = vmatpush.msra.mxu0 %v1846
          %2993 = vmatpush.msra.mxu0 %v1838
          %2994 = vmatpush.msra.mxu0 %v1830
          %2995 = vmatpush.msra.mxu0 %v1822
          %2996 = vmatpush.msra.mxu0 %v1814
          %2997 = vmatpush.msra.mxu0 %v1806
          %2998 = vmatmul.f32.gmra.mxu0 %v1413
          %v2999 = vpop.f32.mrf.mxu0
          %v3000 = vadd.f32 %v2980, %v2999
          %3001 = vdwg.mxu0
          %3002 = vmatpush.msra.mxu0 %v2054
          %3003 = vmatpush.msra.mxu0 %v2046
          %3004 = vmatpush.msra.mxu0 %v2038
          %3005 = vmatpush.msra.mxu0 %v2030
          %3006 = vmatpush.msra.mxu0 %v2022
          %3007 = vmatpush.msra.mxu0 %v2014
          %3008 = vmatpush.msra.mxu0 %v2006
          %3009 = vmatpush.msra.mxu0 %v1998
          %3010 = vmatpush.msra.mxu0 %v1990
          %3011 = vmatpush.msra.mxu0 %v1982
          %3012 = vmatpush.msra.mxu0 %v1974
          %3013 = vmatpush.msra.mxu0 %v1966
          %3014 = vmatpush.msra.mxu0 %v1958
          %3015 = vmatpush.msra.mxu0 %v1950
          %3016 = vmatpush.msra.mxu0 %v1942
          %3017 = vmatpush.msra.mxu0 %v1934
          %3018 = vmatmul.f32.gmra.mxu0 %v1414
          %v3019 = vpop.f32.mrf.mxu0
          %v3020 = vadd.f32 %v3000, %v3019
          %3021 = vdwg.mxu0
          %3022 = vmatpush.msra.mxu0 %v2182
          %3023 = vmatpush.msra.mxu0 %v2174
          %3024 = vmatpush.msra.mxu0 %v2166
          %3025 = vmatpush.msra.mxu0 %v2158
          %3026 = vmatpush.msra.mxu0 %v2150
          %3027 = vmatpush.msra.mxu0 %v2142
          %3028 = vmatpush.msra.mxu0 %v2134
          %3029 = vmatpush.msra.mxu0 %v2126
          %3030 = vmatpush.msra.mxu0 %v2118
          %3031 = vmatpush.msra.mxu0 %v2110
          %3032 = vmatpush.msra.mxu0 %v2102
          %3033 = vmatpush.msra.mxu0 %v2094
          %3034 = vmatpush.msra.mxu0 %v2086
          %3035 = vmatpush.msra.mxu0 %v2078
          %3036 = vmatpush.msra.mxu0 %v2070
          %3037 = vmatpush.msra.mxu0 %v2062
          %3038 = vmatmul.f32.gmra.mxu0 %v1415
          %v3039 = vpop.f32.mrf.mxu0
          %v3040 = vadd.f32 %v3020, %v3039
          %3041 = vdwg.mxu0
          %3042 = vmatpush.msra.mxu0 %v1543
          %3043 = vmatpush.msra.mxu0 %v1535
          %3044 = vmatpush.msra.mxu0 %v1527
          %3045 = vmatpush.msra.mxu0 %v1519
          %3046 = vmatpush.msra.mxu0 %v1511
          %3047 = vmatpush.msra.mxu0 %v1503
          %3048 = vmatpush.msra.mxu0 %v1495
          %3049 = vmatpush.msra.mxu0 %v1487
          %3050 = vmatpush.msra.mxu0 %v1479
          %3051 = vmatpush.msra.mxu0 %v1471
          %3052 = vmatpush.msra.mxu0 %v1463
          %3053 = vmatpush.msra.mxu0 %v1455
          %3054 = vmatpush.msra.mxu0 %v1447
          %3055 = vmatpush.msra.mxu0 %v1439
          %3056 = vmatpush.msra.mxu0 %v1431
          %3057 = vmatpush.msra.mxu0 %v1423
          %3058 = vmatmul.f32.gmra.mxu0 %v1410
          %v3059 = vpop.f32.mrf.mxu0
          %v3060 = vadd.f32 %v2193, %v3059
          %3061 = vdwg.mxu0
          %3062 = vmatpush.msra.mxu0 %v1671
          %3063 = vmatpush.msra.mxu0 %v1663
          %3064 = vmatpush.msra.mxu0 %v1655
          %3065 = vmatpush.msra.mxu0 %v1647
          %3066 = vmatpush.msra.mxu0 %v1639
          %3067 = vmatpush.msra.mxu0 %v1631
          %3068 = vmatpush.msra.mxu0 %v1623
          %3069 = vmatpush.msra.mxu0 %v1615
          %3070 = vmatpush.msra.mxu0 %v1607
          %3071 = vmatpush.msra.mxu0 %v1599
          %3072 = vmatpush.msra.mxu0 %v1591
          %3073 = vmatpush.msra.mxu0 %v1583
          %3074 = vmatpush.msra.mxu0 %v1575
          %3075 = vmatpush.msra.mxu0 %v1567
          %3076 = vmatpush.msra.mxu0 %v1559
          %3077 = vmatpush.msra.mxu0 %v1551
          %3078 = vmatmul.f32.gmra.mxu0 %v1411
          %v3079 = vpop.f32.mrf.mxu0
          %v3080 = vadd.f32 %v3060, %v3079
          %3081 = vdwg.mxu0
          %3082 = vmatpush.msra.mxu0 %v1799
          %3083 = vmatpush.msra.mxu0 %v1791
          %3084 = vmatpush.msra.mxu0 %v1783
          %3085 = vmatpush.msra.mxu0 %v1775
          %3086 = vmatpush.msra.mxu0 %v1767
          %3087 = vmatpush.msra.mxu0 %v1759
          %3088 = vmatpush.msra.mxu0 %v1751
          %3089 = vmatpush.msra.mxu0 %v1743
          %3090 = vmatpush.msra.mxu0 %v1735
          %3091 = vmatpush.msra.mxu0 %v1727
          %3092 = vmatpush.msra.mxu0 %v1719
          %3093 = vmatpush.msra.mxu0 %v1711
          %3094 = vmatpush.msra.mxu0 %v1703
          %3095 = vmatpush.msra.mxu0 %v1695
          %3096 = vmatpush.msra.mxu0 %v1687
          %3097 = vmatpush.msra.mxu0 %v1679
          %3098 = vmatmul.f32.gmra.mxu0 %v1412
          %v3099 = vpop.f32.mrf.mxu0
          %v3100 = vadd.f32 %v3080, %v3099
          %3101 = vdwg.mxu0
          %3102 = vmatpush.msra.mxu0 %v1927
          %3103 = vmatpush.msra.mxu0 %v1919
          %3104 = vmatpush.msra.mxu0 %v1911
          %3105 = vmatpush.msra.mxu0 %v1903
          %3106 = vmatpush.msra.mxu0 %v1895
          %3107 = vmatpush.msra.mxu0 %v1887
          %3108 = vmatpush.msra.mxu0 %v1879
          %3109 = vmatpush.msra.mxu0 %v1871
          %3110 = vmatpush.msra.mxu0 %v1863
          %3111 = vmatpush.msra.mxu0 %v1855
          %3112 = vmatpush.msra.mxu0 %v1847
          %3113 = vmatpush.msra.mxu0 %v1839
          %3114 = vmatpush.msra.mxu0 %v1831
          %3115 = vmatpush.msra.mxu0 %v1823
          %3116 = vmatpush.msra.mxu0 %v1815
          %3117 = vmatpush.msra.mxu0 %v1807
          %3118 = vmatmul.f32.gmra.mxu0 %v1413
          %v3119 = vpop.f32.mrf.mxu0
          %v3120 = vadd.f32 %v3100, %v3119
          %3121 = vdwg.mxu0
          %3122 = vmatpush.msra.mxu0 %v2055
          %3123 = vmatpush.msra.mxu0 %v2047
          %3124 = vmatpush.msra.mxu0 %v2039
          %3125 = vmatpush.msra.mxu0 %v2031
          %3126 = vmatpush.msra.mxu0 %v2023
          %3127 = vmatpush.msra.mxu0 %v2015
          %3128 = vmatpush.msra.mxu0 %v2007
          %3129 = vmatpush.msra.mxu0 %v1999
          %3130 = vmatpush.msra.mxu0 %v1991
          %3131 = vmatpush.msra.mxu0 %v1983
          %3132 = vmatpush.msra.mxu0 %v1975
          %3133 = vmatpush.msra.mxu0 %v1967
          %3134 = vmatpush.msra.mxu0 %v1959
          %3135 = vmatpush.msra.mxu0 %v1951
          %3136 = vmatpush.msra.mxu0 %v1943
          %3137 = vmatpush.msra.mxu0 %v1935
          %3138 = vmatmul.f32.gmra.mxu0 %v1414
          %v3139 = vpop.f32.mrf.mxu0
          %v3140 = vadd.f32 %v3120, %v3139
          %3141 = vdwg.mxu0
          %3142 = vmatpush.msra.mxu0 %v2183
          %3143 = vmatpush.msra.mxu0 %v2175
          %3144 = vmatpush.msra.mxu0 %v2167
          %3145 = vmatpush.msra.mxu0 %v2159
          %3146 = vmatpush.msra.mxu0 %v2151
          %3147 = vmatpush.msra.mxu0 %v2143
          %3148 = vmatpush.msra.mxu0 %v2135
          %3149 = vmatpush.msra.mxu0 %v2127
          %3150 = vmatpush.msra.mxu0 %v2119
          %3151 = vmatpush.msra.mxu0 %v2111
          %3152 = vmatpush.msra.mxu0 %v2103
          %3153 = vmatpush.msra.mxu0 %v2095
          %3154 = vmatpush.msra.mxu0 %v2087
          %3155 = vmatpush.msra.mxu0 %v2079
          %3156 = vmatpush.msra.mxu0 %v2071
          %3157 = vmatpush.msra.mxu0 %v2063
          %3158 = vmatmul.f32.gmra.mxu0 %v1415
          %v3159 = vpop.f32.mrf.mxu0
          %v3160 = vadd.f32 %v3140, %v3159
          %3161 = vdwg.mxu0
          %v3162 = vmax.f32 %v2320, 0.0
          %v3163 = vmax.f32 %v2440, 0.0
          %v3164 = vmax.f32 %v2560, 0.0
          %v3165 = vmax.f32 %v2680, 0.0
          %v3166 = vmax.f32 %v2800, 0.0
          %v3167 = vmax.f32 %v2920, 0.0
          %v3168 = vmax.f32 %v3040, 0.0
          %v3169 = vmax.f32 %v3160, 0.0
          %v3170 = vld [vmem:[%s3] sm:$0xff]
          %v3171 = vld [vmem:[%s3 + $0x8] sm:$0xff]
          %v3172 = vld [vmem:[%s3 + $0x10] sm:$0xff]
          %v3173 = vld [vmem:[%s3 + $0x18] sm:$0xff]
          %v3174 = vld [vmem:[%s3 + $0x20] sm:$0xff]
          %v3175 = vld [vmem:[%s3 + $0x28] sm:$0xff]
          %v3176 = vld [vmem:[%s3 + $0x30] sm:$0xff]
          %v3177 = vld [vmem:[%s3 + $0x38] sm:$0xff]
          %v3178 = vld [vmem:[%s3 + $0x40] sm:$0xff]
          %v3179 = vld [vmem:[%s3 + $0x48] sm:$0xff]
          %v3180 = vld [vmem:[%s3 + $0x50] sm:$0xff]
          %v3181 = vld [vmem:[%s3 + $0x58] sm:$0xff]
          %v3182 = vld [vmem:[%s3 + $0x60] sm:$0xff]
          %v3183 = vld [vmem:[%s3 + $0x68] sm:$0xff]
          %v3184 = vld [vmem:[%s3 + $0x70] sm:$0xff]
          %v3185 = vld [vmem:[%s3 + $0x78] sm:$0xff]
          %v3186 = vld [vmem:[%s3 + $0x80] sm:$0xff]
          %v3187 = vld [vmem:[%s3 + $0x88] sm:$0xff]
          %v3188 = vld [vmem:[%s3 + $0x90] sm:$0xff]
          %v3189 = vld [vmem:[%s3 + $0x98] sm:$0xff]
          %v3190 = vld [vmem:[%s3 + $0xa0] sm:$0xff]
          %v3191 = vld [vmem:[%s3 + $0xa8] sm:$0xff]
          %v3192 = vld [vmem:[%s3 + $0xb0] sm:$0xff]
          %v3193 = vld [vmem:[%s3 + $0xb8] sm:$0xff]
          %v3194 = vld [vmem:[%s3 + $0xc0] sm:$0xff]
          %v3195 = vld [vmem:[%s3 + $0xc8] sm:$0xff]
          %v3196 = vld [vmem:[%s3 + $0xd0] sm:$0xff]
          %v3197 = vld [vmem:[%s3 + $0xd8] sm:$0xff]
          %v3198 = vld [vmem:[%s3 + $0xe0] sm:$0xff]
          %v3199 = vld [vmem:[%s3 + $0xe8] sm:$0xff]
          %v3200 = vld [vmem:[%s3 + $0xf0] sm:$0xff]
          %v3201 = vld [vmem:[%s3 + $0xf8] sm:$0xff]
          %v3202 = vld [vmem:[%s3 + $0x100] sm:$0xff]
          %v3203 = vld [vmem:[%s3 + $0x108] sm:$0xff]
          %v3204 = vld [vmem:[%s3 + $0x110] sm:$0xff]
          %v3205 = vld [vmem:[%s3 + $0x118] sm:$0xff]
          %v3206 = vld [vmem:[%s3 + $0x120] sm:$0xff]
          %v3207 = vld [vmem:[%s3 + $0x128] sm:$0xff]
          %v3208 = vld [vmem:[%s3 + $0x130] sm:$0xff]
          %v3209 = vld [vmem:[%s3 + $0x138] sm:$0xff]
          %v3210 = vld [vmem:[%s3 + $0x140] sm:$0xff]
          %v3211 = vld [vmem:[%s3 + $0x148] sm:$0xff]
          %v3212 = vld [vmem:[%s3 + $0x150] sm:$0xff]
          %v3213 = vld [vmem:[%s3 + $0x158] sm:$0xff]
          %v3214 = vld [vmem:[%s3 + $0x160] sm:$0xff]
          %v3215 = vld [vmem:[%s3 + $0x168] sm:$0xff]
          %v3216 = vld [vmem:[%s3 + $0x170] sm:$0xff]
          %v3217 = vld [vmem:[%s3 + $0x178] sm:$0xff]
          %v3218 = vld [vmem:[%s3 + $0x180] sm:$0xff]
          %v3219 = vld [vmem:[%s3 + $0x188] sm:$0xff]
          %v3220 = vld [vmem:[%s3 + $0x190] sm:$0xff]
          %v3221 = vld [vmem:[%s3 + $0x198] sm:$0xff]
          %v3222 = vld [vmem:[%s3 + $0x1a0] sm:$0xff]
          %v3223 = vld [vmem:[%s3 + $0x1a8] sm:$0xff]
          %v3224 = vld [vmem:[%s3 + $0x1b0] sm:$0xff]
          %v3225 = vld [vmem:[%s3 + $0x1b8] sm:$0xff]
          %v3226 = vld [vmem:[%s3 + $0x1c0] sm:$0xff]
          %v3227 = vld [vmem:[%s3 + $0x1c8] sm:$0xff]
          %v3228 = vld [vmem:[%s3 + $0x1d0] sm:$0xff]
          %v3229 = vld [vmem:[%s3 + $0x1d8] sm:$0xff]
          %v3230 = vld [vmem:[%s3 + $0x1e0] sm:$0xff]
          %v3231 = vld [vmem:[%s3 + $0x1e8] sm:$0xff]
          %v3232 = vld [vmem:[%s3 + $0x1f0] sm:$0xff]
          %v3233 = vld [vmem:[%s3 + $0x1f8] sm:$0xff]
          %v3234 = vld [vmem:[%s3 + $0x200] sm:$0xff]
          %v3235 = vld [vmem:[%s3 + $0x208] sm:$0xff]
          %v3236 = vld [vmem:[%s3 + $0x210] sm:$0xff]
          %v3237 = vld [vmem:[%s3 + $0x218] sm:$0xff]
          %v3238 = vld [vmem:[%s3 + $0x220] sm:$0xff]
          %v3239 = vld [vmem:[%s3 + $0x228] sm:$0xff]
          %v3240 = vld [vmem:[%s3 + $0x230] sm:$0xff]
          %v3241 = vld [vmem:[%s3 + $0x238] sm:$0xff]
          %v3242 = vld [vmem:[%s3 + $0x240] sm:$0xff]
          %v3243 = vld [vmem:[%s3 + $0x248] sm:$0xff]
          %v3244 = vld [vmem:[%s3 + $0x250] sm:$0xff]
          %v3245 = vld [vmem:[%s3 + $0x258] sm:$0xff]
          %v3246 = vld [vmem:[%s3 + $0x260] sm:$0xff]
          %v3247 = vld [vmem:[%s3 + $0x268] sm:$0xff]
          %v3248 = vld [vmem:[%s3 + $0x270] sm:$0xff]
          %v3249 = vld [vmem:[%s3 + $0x278] sm:$0xff]
          %v3250 = vld [vmem:[%s3 + $0x280] sm:$0xff]
          %v3251 = vld [vmem:[%s3 + $0x288] sm:$0xff]
          %v3252 = vld [vmem:[%s3 + $0x290] sm:$0xff]
          %v3253 = vld [vmem:[%s3 + $0x298] sm:$0xff]
          %v3254 = vld [vmem:[%s3 + $0x2a0] sm:$0xff]
          %v3255 = vld [vmem:[%s3 + $0x2a8] sm:$0xff]
          %v3256 = vld [vmem:[%s3 + $0x2b0] sm:$0xff]
          %v3257 = vld [vmem:[%s3 + $0x2b8] sm:$0xff]
          %v3258 = vld [vmem:[%s3 + $0x2c0] sm:$0xff]
          %v3259 = vld [vmem:[%s3 + $0x2c8] sm:$0xff]
          %v3260 = vld [vmem:[%s3 + $0x2d0] sm:$0xff]
          %v3261 = vld [vmem:[%s3 + $0x2d8] sm:$0xff]
          %v3262 = vld [vmem:[%s3 + $0x2e0] sm:$0xff]
          %v3263 = vld [vmem:[%s3 + $0x2e8] sm:$0xff]
          %v3264 = vld [vmem:[%s3 + $0x2f0] sm:$0xff]
          %v3265 = vld [vmem:[%s3 + $0x2f8] sm:$0xff]
          %v3266 = vld [vmem:[%s3 + $0x300] sm:$0xff]
          %v3267 = vld [vmem:[%s3 + $0x308] sm:$0xff]
          %v3268 = vld [vmem:[%s3 + $0x310] sm:$0xff]
          %v3269 = vld [vmem:[%s3 + $0x318] sm:$0xff]
          %v3270 = vld [vmem:[%s3 + $0x320] sm:$0xff]
          %v3271 = vld [vmem:[%s3 + $0x328] sm:$0xff]
          %v3272 = vld [vmem:[%s3 + $0x330] sm:$0xff]
          %v3273 = vld [vmem:[%s3 + $0x338] sm:$0xff]
          %v3274 = vld [vmem:[%s3 + $0x340] sm:$0xff]
          %v3275 = vld [vmem:[%s3 + $0x348] sm:$0xff]
          %v3276 = vld [vmem:[%s3 + $0x350] sm:$0xff]
          %v3277 = vld [vmem:[%s3 + $0x358] sm:$0xff]
          %v3278 = vld [vmem:[%s3 + $0x360] sm:$0xff]
          %v3279 = vld [vmem:[%s3 + $0x368] sm:$0xff]
          %v3280 = vld [vmem:[%s3 + $0x370] sm:$0xff]
          %v3281 = vld [vmem:[%s3 + $0x378] sm:$0xff]
          %v3282 = vld [vmem:[%s3 + $0x380] sm:$0xff]
          %v3283 = vld [vmem:[%s3 + $0x388] sm:$0xff]
          %v3284 = vld [vmem:[%s3 + $0x390] sm:$0xff]
          %v3285 = vld [vmem:[%s3 + $0x398] sm:$0xff]
          %v3286 = vld [vmem:[%s3 + $0x3a0] sm:$0xff]
          %v3287 = vld [vmem:[%s3 + $0x3a8] sm:$0xff]
          %v3288 = vld [vmem:[%s3 + $0x3b0] sm:$0xff]
          %v3289 = vld [vmem:[%s3 + $0x3b8] sm:$0xff]
          %v3290 = vld [vmem:[%s3 + $0x3c0] sm:$0xff]
          %v3291 = vld [vmem:[%s3 + $0x3c8] sm:$0xff]
          %v3292 = vld [vmem:[%s3 + $0x3d0] sm:$0xff]
          %v3293 = vld [vmem:[%s3 + $0x3d8] sm:$0xff]
          %v3294 = vld [vmem:[%s3 + $0x3e0] sm:$0xff]
          %v3295 = vld [vmem:[%s3 + $0x3e8] sm:$0xff]
          %v3296 = vld [vmem:[%s3 + $0x3f0] sm:$0xff]
          %v3297 = vld [vmem:[%s3 + $0x3f8] sm:$0xff]
          %v3298 = vld [vmem:[%s4] sm:$0x1]
          %v3300 = vperm.slane %v3298, 0
          %3302 = vmatpush.msra.mxu0 %v3185
          %3303 = vmatpush.msra.mxu0 %v3184
          %3304 = vmatpush.msra.mxu0 %v3183
          %3305 = vmatpush.msra.mxu0 %v3182
          %3306 = vmatpush.msra.mxu0 %v3181
          %3307 = vmatpush.msra.mxu0 %v3180
          %3308 = vmatpush.msra.mxu0 %v3179
          %3309 = vmatpush.msra.mxu0 %v3178
          %3310 = vmatpush.msra.mxu0 %v3177
          %3311 = vmatpush.msra.mxu0 %v3176
          %3312 = vmatpush.msra.mxu0 %v3175
          %3313 = vmatpush.msra.mxu0 %v3174
          %3314 = vmatpush.msra.mxu0 %v3173
          %3315 = vmatpush.msra.mxu0 %v3172
          %3316 = vmatpush.msra.mxu0 %v3171
          %3317 = vmatpush.msra.mxu0 %v3170
          %3318 = vmatmul.f32.gmra.mxu0 %v3162
          %v3319 = vpop.f32.mrf.mxu0
          %v3320 = vadd.f32 %v3300, %v3319
          %3321 = vdwg.mxu0
          %3322 = vmatpush.msra.mxu0 %v3201
          %3323 = vmatpush.msra.mxu0 %v3200
          %3324 = vmatpush.msra.mxu0 %v3199
          %3325 = vmatpush.msra.mxu0 %v3198
          %3326 = vmatpush.msra.mxu0 %v3197
          %3327 = vmatpush.msra.mxu0 %v3196
          %3328 = vmatpush.msra.mxu0 %v3195
          %3329 = vmatpush.msra.mxu0 %v3194
          %3330 = vmatpush.msra.mxu0 %v3193
          %3331 = vmatpush.msra.mxu0 %v3192
          %3332 = vmatpush.msra.mxu0 %v3191
          %3333 = vmatpush.msra.mxu0 %v3190
          %3334 = vmatpush.msra.mxu0 %v3189
          %3335 = vmatpush.msra.mxu0 %v3188
          %3336 = vmatpush.msra.mxu0 %v3187
          %3337 = vmatpush.msra.mxu0 %v3186
          %3338 = vmatmul.f32.gmra.mxu0 %v3163
          %v3339 = vpop.f32.mrf.mxu0
          %v3340 = vadd.f32 %v3320, %v3339
          %3341 = vdwg.mxu0
          %3342 = vmatpush.msra.mxu0 %v3217
          %3343 = vmatpush.msra.mxu0 %v3216
          %3344 = vmatpush.msra.mxu0 %v3215
          %3345 = vmatpush.msra.mxu0 %v3214
          %3346 = vmatpush.msra.mxu0 %v3213
          %3347 = vmatpush.msra.mxu0 %v3212
          %3348 = vmatpush.msra.mxu0 %v3211
          %3349 = vmatpush.msra.mxu0 %v3210
          %3350 = vmatpush.msra.mxu0 %v3209
          %3351 = vmatpush.msra.mxu0 %v3208
          %3352 = vmatpush.msra.mxu0 %v3207
          %3353 = vmatpush.msra.mxu0 %v3206
          %3354 = vmatpush.msra.mxu0 %v3205
          %3355 = vmatpush.msra.mxu0 %v3204
          %3356 = vmatpush.msra.mxu0 %v3203
          %3357 = vmatpush.msra.mxu0 %v3202
          %3358 = vmatmul.f32.gmra.mxu0 %v3164
          %v3359 = vpop.f32.mrf.mxu0
          %v3360 = vadd.f32 %v3340, %v3359
          %3361 = vdwg.mxu0
          %3362 = vmatpush.msra.mxu0 %v3233
          %3363 = vmatpush.msra.mxu0 %v3232
          %3364 = vmatpush.msra.mxu0 %v3231
          %3365 = vmatpush.msra.mxu0 %v3230
          %3366 = vmatpush.msra.mxu0 %v3229
          %3367 = vmatpush.msra.mxu0 %v3228
          %3368 = vmatpush.msra.mxu0 %v3227
          %3369 = vmatpush.msra.mxu0 %v3226
          %3370 = vmatpush.msra.mxu0 %v3225
          %3371 = vmatpush.msra.mxu0 %v3224
          %3372 = vmatpush.msra.mxu0 %v3223
          %3373 = vmatpush.msra.mxu0 %v3222
          %3374 = vmatpush.msra.mxu0 %v3221
          %3375 = vmatpush.msra.mxu0 %v3220
          %3376 = vmatpush.msra.mxu0 %v3219
          %3377 = vmatpush.msra.mxu0 %v3218
          %3378 = vmatmul.f32.gmra.mxu0 %v3165
          %v3379 = vpop.f32.mrf.mxu0
          %v3380 = vadd.f32 %v3360, %v3379
          %3381 = vdwg.mxu0
          %3382 = vmatpush.msra.mxu0 %v3249
          %3383 = vmatpush.msra.mxu0 %v3248
          %3384 = vmatpush.msra.mxu0 %v3247
          %3385 = vmatpush.msra.mxu0 %v3246
          %3386 = vmatpush.msra.mxu0 %v3245
          %3387 = vmatpush.msra.mxu0 %v3244
          %3388 = vmatpush.msra.mxu0 %v3243
          %3389 = vmatpush.msra.mxu0 %v3242
          %3390 = vmatpush.msra.mxu0 %v3241
          %3391 = vmatpush.msra.mxu0 %v3240
          %3392 = vmatpush.msra.mxu0 %v3239
          %3393 = vmatpush.msra.mxu0 %v3238
          %3394 = vmatpush.msra.mxu0 %v3237
          %3395 = vmatpush.msra.mxu0 %v3236
          %3396 = vmatpush.msra.mxu0 %v3235
          %3397 = vmatpush.msra.mxu0 %v3234
          %3398 = vmatmul.f32.gmra.mxu0 %v3166
          %v3399 = vpop.f32.mrf.mxu0
          %v3400 = vadd.f32 %v3380, %v3399
          %3401 = vdwg.mxu0
          %3402 = vmatpush.msra.mxu0 %v3265
          %3403 = vmatpush.msra.mxu0 %v3264
          %3404 = vmatpush.msra.mxu0 %v3263
          %3405 = vmatpush.msra.mxu0 %v3262
          %3406 = vmatpush.msra.mxu0 %v3261
          %3407 = vmatpush.msra.mxu0 %v3260
          %3408 = vmatpush.msra.mxu0 %v3259
          %3409 = vmatpush.msra.mxu0 %v3258
          %3410 = vmatpush.msra.mxu0 %v3257
          %3411 = vmatpush.msra.mxu0 %v3256
          %3412 = vmatpush.msra.mxu0 %v3255
          %3413 = vmatpush.msra.mxu0 %v3254
          %3414 = vmatpush.msra.mxu0 %v3253
          %3415 = vmatpush.msra.mxu0 %v3252
          %3416 = vmatpush.msra.mxu0 %v3251
          %3417 = vmatpush.msra.mxu0 %v3250
          %3418 = vmatmul.f32.gmra.mxu0 %v3167
          %v3419 = vpop.f32.mrf.mxu0
          %v3420 = vadd.f32 %v3400, %v3419
          %3421 = vdwg.mxu0
          %3422 = vmatpush.msra.mxu0 %v3281
          %3423 = vmatpush.msra.mxu0 %v3280
          %3424 = vmatpush.msra.mxu0 %v3279
          %3425 = vmatpush.msra.mxu0 %v3278
          %3426 = vmatpush.msra.mxu0 %v3277
          %3427 = vmatpush.msra.mxu0 %v3276
          %3428 = vmatpush.msra.mxu0 %v3275
          %3429 = vmatpush.msra.mxu0 %v3274
          %3430 = vmatpush.msra.mxu0 %v3273
          %3431 = vmatpush.msra.mxu0 %v3272
          %3432 = vmatpush.msra.mxu0 %v3271
          %3433 = vmatpush.msra.mxu0 %v3270
          %3434 = vmatpush.msra.mxu0 %v3269
          %3435 = vmatpush.msra.mxu0 %v3268
          %3436 = vmatpush.msra.mxu0 %v3267
          %3437 = vmatpush.msra.mxu0 %v3266
          %3438 = vmatmul.f32.gmra.mxu0 %v3168
          %v3439 = vpop.f32.mrf.mxu0
          %v3440 = vadd.f32 %v3420, %v3439
          %3441 = vdwg.mxu0
          %3442 = vmatpush.msra.mxu0 %v3297
          %3443 = vmatpush.msra.mxu0 %v3296
          %3444 = vmatpush.msra.mxu0 %v3295
          %3445 = vmatpush.msra.mxu0 %v3294
          %3446 = vmatpush.msra.mxu0 %v3293
          %3447 = vmatpush.msra.mxu0 %v3292
          %3448 = vmatpush.msra.mxu0 %v3291
          %3449 = vmatpush.msra.mxu0 %v3290
          %3450 = vmatpush.msra.mxu0 %v3289
          %3451 = vmatpush.msra.mxu0 %v3288
          %3452 = vmatpush.msra.mxu0 %v3287
          %3453 = vmatpush.msra.mxu0 %v3286
          %3454 = vmatpush.msra.mxu0 %v3285
          %3455 = vmatpush.msra.mxu0 %v3284
          %3456 = vmatpush.msra.mxu0 %v3283
          %3457 = vmatpush.msra.mxu0 %v3282
          %3458 = vmatmul.f32.gmra.mxu0 %v3169
          %v3459 = vpop.f32.mrf.mxu0
          %v3460 = vadd.f32 %v3440, %v3459
          %3461 = vdwg.mxu0
          %3462 = vst [vmem:[%s644] sm:$0xff] %v3460
        $region71: #{vssm_two_heads_forward.1} parent=58 // pred_fallthru
          _
        %p3463 = scmp.lt.s32.totalorder %s20, 0
        %s3464 = scalar_select %p3463, %s20, 0
        %s3465 = smul.addr %s3464, 8
        %s3466 = scalar_lea.vmem %s5, %s3465
        // Predicated region
        $region72: #{vssm_two_heads_forward.1} parent=58 // pred_check
          %p3467 = pneg %p158
        $region73: #{vssm_two_heads_forward.1} parent=58 // pred_check_branch
          %3469 = sbr.rel (%p3467) target = $region75
        $region74: #{vssm_two_heads_forward.1} parent=58 // pred_region
          _
        $region75: #{vssm_two_heads_forward.1} parent=58 // pred_fallthru
          _
        // Predicated region
        $region76: #{vssm_two_heads_forward.1} parent=58 // pred_check
          %p3470 = pneg %p158
        $region77: #{vssm_two_heads_forward.1} parent=58 // pred_check_branch
          %3472 = sbr.rel (%p3470) target = $region79
        $region78: #{vssm_two_heads_forward.1} parent=58 // pred_region
          %p3473 = scmp.lt.s32.totalorder %s20, 0
          %s3474 = scalar_select %p3473, %s20, 0
          %s3475 = smul.addr %s3474, 8
          %s3476 = scalar_lea.vmem %s5, %s3475
        $region79: #{vssm_two_heads_forward.1} parent=58 // pred_fallthru
          _
      $region59: #{vssm_two_heads_forward.1} parent=5 // pred_fallthru
        _
      %p3477 = scmp.le.s32.totalorder 2, %s11
      // Predicated region
      $region80: #{vssm_two_heads_forward.1} parent=5 // pred_check
        %p3478 = pneg %p3477
      $region81: #{vssm_two_heads_forward.1} parent=5 // pred_check_branch
        %3480 = sbr.rel (%p3478) target = $region83
      $region82: #{vssm_two_heads_forward.1} parent=5 // pred_region
        %s3481 = ssub.s32 %s11, 2
      $region83: #{vssm_two_heads_forward.1} parent=5 // pred_fallthru
        _
    $region6: #{vssm_two_heads_forward.1} parent=1 // loop_footer
      %s15 = sadd.s32 1, %s11
    $region7: #{vssm_two_heads_forward.1} parent=1 // loop_footer_branch
      %10 = sbr.rel target = $region3
    $region8: #{vssm_two_heads_forward.1} parent=1 // loop_exit
      _

</llo_original>
